<compile_context>
chip_gen: v5e
topology: v5e:2x2
jax: 0.10.0
libtpu: 0.0.40
codegen_flags: <defaults>
</compile_context>

<pallas_src>
import functools
import math

import jax
import jax.numpy as jnp
from jax.experimental import pallas as pl
from jax.experimental.pallas import tpu as pltpu

PRIOR_MU = 0.0
PRIOR_SIGMA = 0.1
BN_EPS = 1e-5
NUM_CLASSES = 10


# --------------------------------------------------------------------------
# In-kernel counter-based RNG (works in interpret mode; pltpu.prng_* does not)
# --------------------------------------------------------------------------
def _hash_u32(x, seed):
    # murmur3-style finalizer on uint32 counters.
    x = x * jnp.uint32(0x9E3779B1) + seed
    x = x ^ (x >> 16)
    x = x * jnp.uint32(0x7FEB352D)
    x = x ^ (x >> 15)
    x = x * jnp.uint32(0x846CA68B)
    x = x ^ (x >> 16)
    return x


def _uniform_01(bits):
    # 24-bit-mantissa uniform in (0, 1) (strictly > 0 so log() is safe).
    return (bits >> 8).astype(jnp.float32) * jnp.float32(1.0 / (1 << 24)) \
        + jnp.float32(1.0 / (1 << 25))


def _std_normal(idx_u32, seed_u32):
    # Box-Muller from two independent hashes of the same counter.
    u1 = _uniform_01(_hash_u32(idx_u32, seed_u32))
    u2 = _uniform_01(_hash_u32(idx_u32, seed_u32 ^ jnp.uint32(0x85EBCA6B)))
    return jnp.sqrt(-2.0 * jnp.log(u1)) * jnp.cos(jnp.float32(2.0 * math.pi) * u2)


def _salted(seed_ref, salt):
    return seed_ref[...].astype(jnp.uint32) + jnp.uint32((salt * 0x9E3779B9) & 0xFFFFFFFF)


# --------------------------------------------------------------------------
# Fused conv kernel: on-chip weight sampling + KL partials + matmul + BN/ReLU
# --------------------------------------------------------------------------
def _conv_bn_kernel(seed_ref, p_ref, mu_ref, rho_ref, *rest,
                    add_res, relu, salt, k_valid, total_k):
    if add_res:
        res_ref, o_ref, kl_ref = rest
    else:
        o_ref, kl_ref = rest
    c = pl.program_id(0)
    k = pl.program_id(1)
    tcout, tk = mu_ref.shape

    @pl.when(k == 0)
    def _init():
        o_ref[...] = jnp.zeros_like(o_ref)
        kl_ref[...] = jnp.zeros_like(kl_ref)

    # bf16 -> f32 upcast on load (v5e has no bf16 VPU/EUP; HBM saving still holds).
    mu = mu_ref[...].astype(jnp.float32)
    rho = rho_ref[...].astype(jnp.float32)
    # numerically stable softplus
    sigma = jnp.maximum(rho, 0.0) + jnp.log(1.0 + jnp.exp(-jnp.abs(rho)))

    # On-chip eps ~ N(0,1) from the global element coordinates (tiling-invariant).
    row = jax.lax.broadcasted_iota(jnp.int32, (tcout, tk), 0) + c * tcout
    col = jax.lax.broadcasted_iota(jnp.int32, (tcout, tk), 1) + k * tk
    idx = (row * total_k + col).astype(jnp.uint32)
    eps = _std_normal(idx, _salted(seed_ref, salt))
    w = mu + sigma * eps                                  # sampled weight tile

    # im2col matmul: contract dim 1 of both operands -> no weight transpose.
    o_ref[...] += jax.lax.dot_general(
        p_ref[...], w, (((1,), (1,)), ((), ())),
        preferred_element_type=jnp.float32)               # (M, tcout)

    # KL( N(mu, sigma^2) || N(prior_mu, prior_sigma^2) ), lane-axis reduce only;
    # the cross-channel sum happens once in the wrapper.
    kl = (jnp.float32(math.log(PRIOR_SIGMA)) - jnp.log(sigma)
          + (sigma * sigma + (mu - PRIOR_MU) ** 2) * jnp.float32(0.5 / PRIOR_SIGMA ** 2)
          - 0.5)
    if k_valid < total_k:                                 # static: padded K columns
        kl = jnp.where(col < k_valid, kl, 0.0)
    kl_ref[...] += jnp.sum(kl, axis=1, keepdims=True)     # (tcout, 1)

    @pl.when(k == pl.num_programs(1) - 1)
    def _finalize():
        x = o_ref[...]
        # BatchNorm2d training mode: per-channel batch stats, gamma=1, beta=0.
        mean = jnp.mean(x, axis=0, keepdims=True)
        var = jnp.mean(jnp.square(x - mean), axis=0, keepdims=True)
        y = (x - mean) * jax.lax.rsqrt(var + BN_EPS)
        if add_res:
            y = y + res_ref[...]
        if relu:
            y = jnp.maximum(y, 0.0)
        o_ref[...] = y


def _pick_tk(K, tcout):
    # Bound per-step weight-tile elements so the fused-sampling temporaries plus
    # the double-buffered bf16 streams stay inside scoped VMEM on v5e/v6e/v7x.
    max_elems = 640 * 1024
    tk = K
    while tcout * tk > max_elems and tk % 256 == 0:
        tk //= 2
    assert K % tk == 0, (K, tk)
    return tk


def pallas_conv_bn(patches, mu2, rho2, seed, residual=None, relu=False,
                   salt=0, k_valid=None):
    """(M,K) im2col patches x sampled (Cout,K) weights -> BN(+res)(+ReLU), KL."""
    M, K = patches.shape
    Cout = mu2.shape[0]
    if k_valid is None:
        k_valid = K
    # TODO(synk): on v7x the Cout<256 layers run on one TensorCore; an M-split
    # 'parallel' axis would break the fused batch-stat BN (needs a two-pass
    # reduction) and a tcout=64 split of Cout=128 gives unaligned lane blocks.
    nc = 2 if Cout >= 256 else 1
    tcout = Cout // nc
    tk = _pick_tk(K, tcout)
    nk = K // tk
    add_res = residual is not None

    in_specs = [
        pl.BlockSpec((1, 1), lambda c, k: (0, 0)),          # RNG seed
        pl.BlockSpec((M, tk), lambda c, k: (0, k)),          # patches (f32)
        pl.BlockSpec((tcout, tk), lambda c, k: (c, k)),      # mu (bf16)
        pl.BlockSpec((tcout, tk), lambda c, k: (c, k)),      # rho (bf16)
    ]
    args = [seed, patches, mu2, rho2]
    if add_res:
        in_specs.append(pl.BlockSpec((M, tcout), lambda c, k: (0, c)))
        args.append(residual)

    # scoped-VMEM request sized from actual blocks + fused-sampling temporaries.
    tile_e = tcout * tk
    vmem_bytes = (8 * tile_e * 4
                  + 4 * (M * tk * 4 + 2 * tile_e * 2)
                  + 2 * M * tcout * 4 + 2 * tcout * 4
                  + (2 * M * tcout * 4 if add_res else 0))
    vmem_limit = int(min(max(vmem_bytes, 16 << 20), 40 << 20))

    cost = pl.CostEstimate(
        flops=int(2 * M * K * Cout + 40 * Cout * K),
        transcendentals=int(6 * Cout * K),
        bytes_accessed=int(4 * M * K + 2 * 2 * Cout * K + 4 * M * Cout
                           + 4 * Cout + (4 * M * Cout if add_res else 0)))

    kern = functools.partial(_conv_bn_kernel, add_res=add_res, relu=relu,
                             salt=salt, k_valid=k_valid, total_k=K)
    out, kl_vec = pl.pallas_call(
        kern,
        out_shape=[jax.ShapeDtypeStruct((M, Cout), jnp.float32),
                   jax.ShapeDtypeStruct((Cout, 1), jnp.float32)],
        grid=(nc, nk),
        in_specs=in_specs,
        out_specs=[pl.BlockSpec((M, tcout), lambda c, k: (0, c)),
                   pl.BlockSpec((tcout, 1), lambda c, k: (c, 0))],
        compiler_params=pltpu.CompilerParams(
            dimension_semantics=("parallel", "arbitrary"),
            vmem_limit_bytes=vmem_limit),
        cost_estimate=cost,
    )(*args)
    return out, jnp.sum(kl_vec)


# --------------------------------------------------------------------------
# MaxPool2d(kernel=3, stride=2, padding=1): boundaries handled in-kernel
# --------------------------------------------------------------------------
def _maxpool_kernel(xe_ref, xo_ref, o_ref):
    # xe: input columns 2w, xo: columns 2w+1, both (N, H, W/2, C).
    xe = xe_ref[...]
    xo = xo_ref[...]
    n, h, w2, c = xe.shape
    neg = jnp.float32(-1e30)     # inputs are post-ReLU (>=0) so this acts like -inf pad
    # column direction: output col j covers input cols {2j-1, 2j, 2j+1}
    xo_prev = jnp.concatenate(
        [jnp.full((n, h, 1, c), neg, xe.dtype), xo[:, :, :-1, :]], axis=2)
    colmax = jnp.maximum(jnp.maximum(xe, xo), xo_prev)          # (N, H, W/2, C)
    # row direction: output row i covers rows {2i-1, 2i, 2i+1}
    cm = colmax.reshape(n, h // 2, 2, w2, c)                    # leading-dim split only
    ce = cm[:, :, 0]
    co = cm[:, :, 1]
    co_prev = jnp.concatenate(
        [jnp.full((n, 1, w2, c), neg, xe.dtype), co[:, :-1]], axis=1)
    o_ref[...] = jnp.maximum(jnp.maximum(ce, co), co_prev)


def pallas_maxpool_3x3_s2_p1(x_nhwc):
    N, H, W, C = x_nhwc.shape
    assert H % 2 == 0 and W % 2 == 0
    xe = x_nhwc[:, :, 0::2, :]
    xo = x_nhwc[:, :, 1::2, :]
    W2 = W // 2
    return pl.pallas_call(
        _maxpool_kernel,
        out_shape=jax.ShapeDtypeStruct((N, H // 2, W2, C), jnp.float32),
        grid=(1,),
        in_specs=[pl.BlockSpec((N, H, W2, C), lambda i: (0, 0, 0, 0)),
                  pl.BlockSpec((N, H, W2, C), lambda i: (0, 0, 0, 0))],
        out_specs=pl.BlockSpec((N, H // 2, W2, C), lambda i: (0, 0, 0, 0)),
    )(xe, xo)


# --------------------------------------------------------------------------
# Tail: global avg-pool + Dropout(0.5, hash mask) + Bayesian linear, fused
# --------------------------------------------------------------------------
def _tail_kernel(seed_ref, x_ref, w_ref, b_ref, o_ref, *, salt):
    pooled = jnp.mean(x_ref[...], axis=1)                  # (N, C) adaptive avg pool
    n, c = pooled.shape
    row = jax.lax.broadcasted_iota(jnp.int32, (n, c), 0)
    col = jax.lax.broadcasted_iota(jnp.int32, (n, c), 1)
    u = _uniform_01(_hash_u32((row * c + col).astype(jnp.uint32),
                              _salted(seed_ref, salt)))
    keep = (u < 0.5).astype(jnp.float32)                   # Bernoulli(0.5) keep mask
    xd = pooled * keep * 2.0                               # inverted dropout scaling
    o_ref[...] = jax.lax.dot_general(
        xd, w_ref[...], (((1,), (1,)), ((), ())),
        preferred_element_type=jnp.float32) + b_ref[...]


def pallas_avgpool_dropout_fc(x_nhwc, w, b, seed, salt):
    N, H, W, C = x_nhwc.shape
    n_out = w.shape[0]
    x3 = x_nhwc.reshape(N, H * W, C)
    kern = functools.partial(_tail_kernel, salt=salt)
    return pl.pallas_call(
        kern,
        out_shape=jax.ShapeDtypeStruct((N, n_out), jnp.float32),
        grid=(1,),
        in_specs=[pl.BlockSpec((1, 1), lambda i: (0, 0)),
                  pl.BlockSpec((N, H * W, C), lambda i: (0, 0, 0)),
                  pl.BlockSpec((n_out, C), lambda i: (0, 0)),
                  pl.BlockSpec((1, n_out), lambda i: (0, 0))],
        out_specs=pl.BlockSpec((N, n_out), lambda i: (0, 0)),
    )(seed, x3, w, b.reshape(1, n_out))


# ------------------------- Bayesian layers (glue) -------------------------
def kl_gauss(mu, sigma, prior_mu=PRIOR_MU, prior_sigma=PRIOR_SIGMA):
    return jnp.sum(jnp.log(prior_sigma) - jnp.log(sigma)
                   + (sigma ** 2 + (mu - prior_mu) ** 2) / (2.0 * prior_sigma ** 2)
                   - 0.5)


def im2col(x_nhwc, kh, kw, stride, pad):
    # TODO(synk): patches are still materialized in HBM by the XLA wrapper; an
    # in-kernel window gather (memory_space=pl.ANY + manual DMA) is not implemented.
    N, H, W, C = x_nhwc.shape
    Ho = (H + 2 * pad - kh) // stride + 1
    Wo = (W + 2 * pad - kw) // stride + 1
    xp = jnp.pad(x_nhwc, ((0, 0), (pad, pad), (pad, pad), (0, 0)))
    cols = []
    for i in range(kh):
        for j in range(kw):
            cols.append(xp[:, i:i + stride * (Ho - 1) + 1:stride,
                           j:j + stride * (Wo - 1) + 1:stride, :])
    # column order (C, kh*kw) matches the (Cout, Cin, kh, kw) weight reshape.
    patches = jnp.stack(cols, axis=-1).reshape(N * Ho * Wo, C * kh * kw)
    return patches, Ho, Wo


def bayes_conv_bn(x_nhwc, cp, stride, pad, seed, salt, residual=None, relu=False):
    """Conv2dReparameterization (bias=False) + BatchNorm2d (+residual) (+ReLU)."""
    cout, cin, kh, kw = cp['mu'].shape
    N = x_nhwc.shape[0]
    patches, Ho, Wo = im2col(x_nhwc, kh, kw, stride, pad)
    K = cin * kh * kw
    mu2 = cp['mu'].reshape(cout, K)
    rho2 = cp['rho'].reshape(cout, K)
    k_valid = K
    if K < 128:
        # Pad K to a lane-dense 128: zero patches keep the matmul exact and the
        # in-kernel KL mask (k_valid) keeps the KL exact.
        patches = jnp.pad(patches, ((0, 0), (0, 128 - K)))
        mu2 = jnp.pad(mu2, ((0, 0), (0, 128 - K)))
        rho2 = jnp.pad(rho2, ((0, 0), (0, 128 - K)))
    res2 = residual.reshape(N * Ho * Wo, cout) if residual is not None else None
    out, kl = pallas_conv_bn(patches, mu2, rho2, seed,
                             residual=res2, relu=relu, salt=salt, k_valid=k_valid)
    return out.reshape(N, Ho, Wo, cout), kl


def basic_block(x, bp, seed, salt):
    out, kl1 = bayes_conv_bn(x, bp['conv1'], bp['stride'], 1, seed, salt, relu=True)
    if bp['down'] is not None:
        identity, kld = bayes_conv_bn(x, bp['down'], bp['stride'], 0, seed, salt + 2,
                                      relu=False)
    else:
        identity, kld = x, 0.0
    # conv2 + bn2 + skip-add + relu fused in one Pallas call
    out, kl2 = bayes_conv_bn(out, bp['conv2'], 1, 1, seed, salt + 1,
                             residual=identity, relu=True)
    return out, kl1 + kl2 + kld


# --------------------------- parameter creation ---------------------------
def conv_params(key, cout, cin, k):
    # mu/rho stored bf16 in HBM (halves the dominant weight stream); eps is
    # generated on-chip per forward pass.
    k1, k2 = jax.random.split(key, 2)
    shape = (cout, cin, k, k)
    return {'mu': (0.1 * jax.random.normal(k1, shape, jnp.float32)).astype(jnp.bfloat16),
            'rho': (-3.0 + 0.1 * jax.random.normal(k2, shape, jnp.float32)).astype(jnp.bfloat16)}


def init_params(key):
    keys = iter(jax.random.split(key, 64))
    p = {'conv1': conv_params(next(keys), 64, 1, 7)}

    def make_layer(cin, cout, stride):
        b0 = {'stride': stride,
              'conv1': conv_params(next(keys), cout, cin, 3),
              'conv2': conv_params(next(keys), cout, cout, 3),
              'down': (conv_params(next(keys), cout, cin, 1)
                       if (stride != 1 or cin != cout) else None)}
        b1 = {'stride': 1,
              'conv1': conv_params(next(keys), cout, cout, 3),
              'conv2': conv_params(next(keys), cout, cout, 3),
              'down': None}
        return [b0, b1]

    p['layer1'] = make_layer(64, 64, 1)
    p['layer2'] = make_layer(64, 128, 2)
    p['layer3'] = make_layer(128, 256, 2)
    p['layer4'] = make_layer(256, 512, 2)

    kw1, kw2, kb1, kb2 = jax.random.split(next(keys), 4)
    p['fc'] = {
        'mu_w': 0.1 * jax.random.normal(kw1, (NUM_CLASSES, 512), jnp.float32),
        'rho_w': -3.0 + 0.1 * jax.random.normal(kw2, (NUM_CLASSES, 512), jnp.float32),
        'mu_b': 0.1 * jax.random.normal(kb1, (NUM_CLASSES,), jnp.float32),
        'rho_b': -3.0 + 0.1 * jax.random.normal(kb2, (NUM_CLASSES,), jnp.float32),
    }
    return p


# -------------------------------- forward --------------------------------
def forward(x_nchw, params, rng_key):
    x = jnp.transpose(x_nchw, (0, 2, 3, 1)).astype(jnp.float32)   # NCHW -> NHWC
    k_seed, k_w, k_b = jax.random.split(rng_key, 3)
    # One (1,1) int32 seed feeds every kernel; per-conv static salts decorrelate.
    seed = jax.random.randint(k_seed, (1, 1), 0, 2 ** 31 - 1, dtype=jnp.int32)

    kl_total = 0.0
    salt = 1
    out, kl = bayes_conv_bn(x, params['conv1'], 2, 3, seed, salt, relu=True)
    salt += 1
    kl_total += kl
    out = pallas_maxpool_3x3_s2_p1(out)

    for name in ('layer1', 'layer2', 'layer3', 'layer4'):
        for bp in params[name]:
            out, kl = basic_block(out, bp, seed, salt)
            salt += 3
            kl_total += kl

    # Bayesian FC: sample w/b and their KL in the wrapper (5K params); avgpool +
    # dropout + matmul run fused in the tail kernel.
    fc = params['fc']
    sig_w = jax.nn.softplus(fc['rho_w'])
    sig_b = jax.nn.softplus(fc['rho_b'])
    w = fc['mu_w'] + sig_w * jax.random.normal(k_w, fc['mu_w'].shape, jnp.float32)
    b = fc['mu_b'] + sig_b * jax.random.normal(k_b, fc['mu_b'].shape, jnp.float32)
    kl_total += kl_gauss(fc['mu_w'], sig_w) + kl_gauss(fc['mu_b'], sig_b)

    logits = pallas_avgpool_dropout_fc(out, w, b, seed, salt)
    # TODO(synk): optional C=128 lane padding for the 64-channel stem/layer1
    # outputs (v5e lane-dense stores) is not applied; those stores stay masked.
    return logits, kl_total


if __name__ == "__main__":
    root = jax.random.PRNGKey(0)
    kx, kp, kd = jax.random.split(root, 3)
    x = jax.random.normal(kx, (2, 1, 32, 32), dtype=jnp.float32)  # NCHW, 1 channel
    params = init_params(kp)
    logits, kl_total = forward(x, params, kd)
    jax.block_until_ready((logits, kl_total))
    assert logits.shape == (2, NUM_CLASSES)
    assert kl_total.shape == ()
    print("KERNEL_OK")
</pallas_src>

<mosaic_0001>
module attributes {stable_mosaic.version = 11 : i64} {
  func.func @_conv_bn_kernel(%arg0: i32, %arg1: i32, %arg2: memref<1x1xi32, #tpu.memory_space<vmem>>, %arg3: memref<512x128xf32, #tpu.memory_space<vmem>>, %arg4: memref<64x128xbf16, #tpu.memory_space<vmem>>, %arg5: memref<64x128xbf16, #tpu.memory_space<vmem>>, %arg6: memref<512x64xf32, #tpu.memory_space<vmem>>, %arg7: memref<64x1xf32, #tpu.memory_space<vmem>>) attributes {dimension_semantics = [#tpu.dimension_semantics<parallel>, #tpu.dimension_semantics<arbitrary>], iteration_bounds = array<i64: 1, 1>, scalar_prefetch = 0 : i64, scratch_operands = 0 : i64, tpu.core_type = #tpu.core_type<tc>, window_params = [{pipeline_mode = #tpu.pipeline_mode<synchronous>, transform_indices = @transform_0, window_bounds = array<i64: 1, 1>}, {transform_indices = @transform_1, window_bounds = array<i64: 512, 128>}, {transform_indices = @transform_2, window_bounds = array<i64: 64, 128>}, {transform_indices = @transform_3, window_bounds = array<i64: 64, 128>}, {transform_indices = @transform_4, window_bounds = array<i64: 512, 64>}, {transform_indices = @transform_5, window_bounds = array<i64: 64, 1>}]} {
    %c0_i32 = arith.constant 0 : i32
    %0 = arith.cmpi eq, %arg1, %c0_i32 : i32
    %1 = arith.extui %0 : i1 to i32
    %c0_i32_0 = arith.constant 0 : i32
    %2 = arith.cmpi ne, %1, %c0_i32_0 : i32
    scf.if %2 {
      %cst_42 = arith.constant 0.000000e+00 : f32
      %121 = vector.broadcast %cst_42 : f32 to vector<512x64xf32>
      %c0_43 = arith.constant 0 : index
      %c0_44 = arith.constant 0 : index
      %122 = vector.load %arg6[%c0_43, %c0_44] : memref<512x64xf32, #tpu.memory_space<vmem>>, vector<512x64xf32>
      tpu.vector_store %arg6[%c0_43, %c0_44], %121 {strides = array<i32>} : memref<512x64xf32, #tpu.memory_space<vmem>>, vector<512x64xf32>,
      %cst_45 = arith.constant 0.000000e+00 : f32
      %123 = vector.broadcast %cst_45 : f32 to vector<64x1xf32>
      %c0_46 = arith.constant 0 : index
      %c0_47 = arith.constant 0 : index
      %124 = vector.load %arg7[%c0_46, %c0_47] : memref<64x1xf32, #tpu.memory_space<vmem>>, vector<64x1xf32>
      tpu.vector_store %arg7[%c0_46, %c0_47], %123 {strides = array<i32>} : memref<64x1xf32, #tpu.memory_space<vmem>>, vector<64x1xf32>,
    } else {
    }
    %c0 = arith.constant 0 : index
    %c0_1 = arith.constant 0 : index
    %3 = vector.load %arg4[%c0, %c0_1] : memref<64x128xbf16, #tpu.memory_space<vmem>>, vector<64x128xbf16>
    %4 = arith.extf %3 : vector<64x128xbf16> to vector<64x128xf32>
    %c0_2 = arith.constant 0 : index
    %c0_3 = arith.constant 0 : index
    %5 = vector.load %arg5[%c0_2, %c0_3] : memref<64x128xbf16, #tpu.memory_space<vmem>>, vector<64x128xbf16>
    %6 = arith.extf %5 : vector<64x128xbf16> to vector<64x128xf32>
    %cst = arith.constant 0.000000e+00 : f32
    %7 = vector.broadcast %cst : f32 to vector<64x128xf32>
    %8 = arith.maximumf %6, %7 : vector<64x128xf32>
    %9 = math.absf %6 : vector<64x128xf32>
    %cst_4 = arith.constant 0.000000e+00 : f32
    %10 = vector.broadcast %cst_4 : f32 to vector<64x128xf32>
    %11 = arith.subf %10, %9 : vector<64x128xf32>
    %12 = math.exp %11 : vector<64x128xf32>
    %cst_5 = arith.constant 1.000000e+00 : f32
    %13 = vector.broadcast %cst_5 : f32 to vector<64x128xf32>
    %14 = arith.addf %13, %12 : vector<64x128xf32>
    %15 = math.log %14 : vector<64x128xf32>
    %16 = arith.addf %8, %15 : vector<64x128xf32>
    %17 = tpu.iota {dimensions = array<i32: 0>} : vector<64x128xi32>
    %c64_i32 = arith.constant 64 : i32
    %18 = arith.muli %arg0, %c64_i32 : i32
    %19 = vector.broadcast %18 : i32 to vector<64x128xi32>
    %20 = arith.addi %17, %19 : vector<64x128xi32>
    %21 = tpu.iota {dimensions = array<i32: 1>} : vector<64x128xi32>
    %c128_i32 = arith.constant 128 : i32
    %22 = arith.muli %arg1, %c128_i32 : i32
    %23 = vector.broadcast %22 : i32 to vector<64x128xi32>
    %24 = arith.addi %21, %23 : vector<64x128xi32>
    %c128_i32_6 = arith.constant 128 : i32
    %25 = vector.broadcast %c128_i32_6 : i32 to vector<64x128xi32>
    %26 = arith.muli %20, %25 : vector<64x128xi32>
    %27 = arith.addi %26, %24 : vector<64x128xi32>
    %c0_7 = arith.constant 0 : index
    %c0_8 = arith.constant 0 : index
    %28 = vector.load %arg2[%c0_7, %c0_8] : memref<1x1xi32, #tpu.memory_space<vmem>>, vector<1x1xi32>
    %c-1640531527_i32 = arith.constant -1640531527 : i32
    %29 = vector.broadcast %c-1640531527_i32 : i32 to vector<1x1xi32>
    %30 = arith.addi %28, %29 : vector<1x1xi32>
    %c-1640531535_i32 = arith.constant -1640531535 : i32
    %31 = vector.broadcast %c-1640531535_i32 : i32 to vector<64x128xi32>
    %32 = arith.muli %27, %31 : vector<64x128xi32>
    %33 = vector.broadcast %30 : vector<1x1xi32> to vector<64x128xi32>
    %34 = arith.addi %32, %33 : vector<64x128xi32>
    %c16_i32 = arith.constant 16 : i32
    %35 = vector.broadcast %c16_i32 : i32 to vector<64x128xi32>
    %36 = arith.shrui %34, %35 : vector<64x128xi32>
    %37 = arith.xori %34, %36 : vector<64x128xi32>
    %c2146121005_i32 = arith.constant 2146121005 : i32
    %38 = vector.broadcast %c2146121005_i32 : i32 to vector<64x128xi32>
    %39 = arith.muli %37, %38 : vector<64x128xi32>
    %c15_i32 = arith.constant 15 : i32
    %40 = vector.broadcast %c15_i32 : i32 to vector<64x128xi32>
    %41 = arith.shrui %39, %40 : vector<64x128xi32>
    %42 = arith.xori %39, %41 : vector<64x128xi32>
    %c-2073254261_i32 = arith.constant -2073254261 : i32
    %43 = vector.broadcast %c-2073254261_i32 : i32 to vector<64x128xi32>
    %44 = arith.muli %42, %43 : vector<64x128xi32>
    %c16_i32_9 = arith.constant 16 : i32
    %45 = vector.broadcast %c16_i32_9 : i32 to vector<64x128xi32>
    %46 = arith.shrui %44, %45 : vector<64x128xi32>
    %47 = arith.xori %44, %46 : vector<64x128xi32>
    %c8_i32 = arith.constant 8 : i32
    %48 = vector.broadcast %c8_i32 : i32 to vector<64x128xi32>
    %49 = arith.shrui %47, %48 : vector<64x128xi32>
    %50 = arith.uitofp %49 : vector<64x128xi32> to vector<64x128xf32>
    %cst_10 = arith.constant 5.96046448E-8 : f32
    %51 = vector.broadcast %cst_10 : f32 to vector<64x128xf32>
    %52 = arith.mulf %50, %51 : vector<64x128xf32>
    %cst_11 = arith.constant 2.98023224E-8 : f32
    %53 = vector.broadcast %cst_11 : f32 to vector<64x128xf32>
    %54 = arith.addf %52, %53 : vector<64x128xf32>
    %c-2048144789_i32 = arith.constant -2048144789 : i32
    %55 = vector.broadcast %c-2048144789_i32 : i32 to vector<1x1xi32>
    %56 = arith.xori %30, %55 : vector<1x1xi32>
    %c-1640531535_i32_12 = arith.constant -1640531535 : i32
    %57 = vector.broadcast %c-1640531535_i32_12 : i32 to vector<64x128xi32>
    %58 = arith.muli %27, %57 : vector<64x128xi32>
    %59 = vector.broadcast %56 : vector<1x1xi32> to vector<64x128xi32>
    %60 = arith.addi %58, %59 : vector<64x128xi32>
    %c16_i32_13 = arith.constant 16 : i32
    %61 = vector.broadcast %c16_i32_13 : i32 to vector<64x128xi32>
    %62 = arith.shrui %60, %61 : vector<64x128xi32>
    %63 = arith.xori %60, %62 : vector<64x128xi32>
    %c2146121005_i32_14 = arith.constant 2146121005 : i32
    %64 = vector.broadcast %c2146121005_i32_14 : i32 to vector<64x128xi32>
    %65 = arith.muli %63, %64 : vector<64x128xi32>
    %c15_i32_15 = arith.constant 15 : i32
    %66 = vector.broadcast %c15_i32_15 : i32 to vector<64x128xi32>
    %67 = arith.shrui %65, %66 : vector<64x128xi32>
    %68 = arith.xori %65, %67 : vector<64x128xi32>
    %c-2073254261_i32_16 = arith.constant -2073254261 : i32
    %69 = vector.broadcast %c-2073254261_i32_16 : i32 to vector<64x128xi32>
    %70 = arith.muli %68, %69 : vector<64x128xi32>
    %c16_i32_17 = arith.constant 16 : i32
    %71 = vector.broadcast %c16_i32_17 : i32 to vector<64x128xi32>
    %72 = arith.shrui %70, %71 : vector<64x128xi32>
    %73 = arith.xori %70, %72 : vector<64x128xi32>
    %c8_i32_18 = arith.constant 8 : i32
    %74 = vector.broadcast %c8_i32_18 : i32 to vector<64x128xi32>
    %75 = arith.shrui %73, %74 : vector<64x128xi32>
    %76 = arith.uitofp %75 : vector<64x128xi32> to vector<64x128xf32>
    %cst_19 = arith.constant 5.96046448E-8 : f32
    %77 = vector.broadcast %cst_19 : f32 to vector<64x128xf32>
    %78 = arith.mulf %76, %77 : vector<64x128xf32>
    %cst_20 = arith.constant 2.98023224E-8 : f32
    %79 = vector.broadcast %cst_20 : f32 to vector<64x128xf32>
    %80 = arith.addf %78, %79 : vector<64x128xf32>
    %81 = math.log %54 : vector<64x128xf32>
    %cst_21 = arith.constant -2.000000e+00 : f32
    %82 = vector.broadcast %cst_21 : f32 to vector<64x128xf32>
    %83 = arith.mulf %82, %81 : vector<64x128xf32>
    %84 = math.sqrt %83 : vector<64x128xf32>
    %cst_22 = arith.constant 6.28318548 : f32
    %85 = vector.broadcast %cst_22 : f32 to vector<64x128xf32>
    %86 = arith.mulf %85, %80 : vector<64x128xf32>
    %87 = math.cos %86 : vector<64x128xf32>
    %88 = arith.mulf %84, %87 : vector<64x128xf32>
    %89 = arith.mulf %16, %88 : vector<64x128xf32>
    %90 = arith.addf %4, %89 : vector<64x128xf32>
    %c0_23 = arith.constant 0 : index
    %c0_24 = arith.constant 0 : index
    %91 = vector.load %arg6[%c0_23, %c0_24] : memref<512x64xf32, #tpu.memory_space<vmem>>, vector<512x64xf32>
    %c0_25 = arith.constant 0 : index
    %c0_26 = arith.constant 0 : index
    %92 = vector.load %arg3[%c0_25, %c0_26] : memref<512x128xf32, #tpu.memory_space<vmem>>, vector<512x128xf32>
    %cst_27 = arith.constant dense<0.000000e+00> : vector<512x64xf32>
    %93 = tpu.matmul %92, %90, %cst_27 {dimension_numbers = #tpu.dot_dimension_numbers<[1], [1], [0], [0], [0, 0, 1, 0], [], []>} : vector<512x128xf32>, vector<64x128xf32>, vector<512x64xf32> -> vector<512x64xf32>
    %94 = arith.addf %91, %93 : vector<512x64xf32>
    %c0_28 = arith.constant 0 : index
    %c0_29 = arith.constant 0 : index
    %95 = vector.load %arg6[%c0_28, %c0_29] : memref<512x64xf32, #tpu.memory_space<vmem>>, vector<512x64xf32>
    tpu.vector_store %arg6[%c0_28, %c0_29], %94 {strides = array<i32>} : memref<512x64xf32, #tpu.memory_space<vmem>>, vector<512x64xf32>,
    %96 = math.log %16 : vector<64x128xf32>
    %cst_30 = arith.constant -2.30258512 : f32
    %97 = vector.broadcast %cst_30 : f32 to vector<64x128xf32>
    %98 = arith.subf %97, %96 : vector<64x128xf32>
    %99 = arith.mulf %16, %16 : vector<64x128xf32>
    %cst_31 = arith.constant 0.000000e+00 : f32
    %100 = vector.broadcast %cst_31 : f32 to vector<64x128xf32>
    %101 = arith.subf %4, %100 : vector<64x128xf32>
    %102 = arith.mulf %101, %101 : vector<64x128xf32>
    %103 = arith.addf %99, %102 : vector<64x128xf32>
    %cst_32 = arith.constant 5.000000e+01 : f32
    %104 = vector.broadcast %cst_32 : f32 to vector<64x128xf32>
    %105 = arith.mulf %103, %104 : vector<64x128xf32>
    %106 = arith.addf %98, %105 : vector<64x128xf32>
    %cst_33 = arith.constant 5.000000e-01 : f32
    %107 = vector.broadcast %cst_33 : f32 to vector<64x128xf32>
    %108 = arith.subf %106, %107 : vector<64x128xf32>
    %c49_i32 = arith.constant 49 : i32
    %109 = vector.broadcast %c49_i32 : i32 to vector<64x128xi32>
    %110 = arith.cmpi slt, %24, %109 : vector<64x128xi32>
    %cst_34 = arith.constant 0.000000e+00 : f32
    %111 = vector.broadcast %cst_34 : f32 to vector<64x128xf32>
    %112 = arith.select %110, %108, %111 : vector<64x128xi1>, vector<64x128xf32>
    %c0_35 = arith.constant 0 : index
    %c0_36 = arith.constant 0 : index
    %113 = vector.load %arg7[%c0_35, %c0_36] : memref<64x1xf32, #tpu.memory_space<vmem>>, vector<64x1xf32>
    %cst_37 = arith.constant dense<0.000000e+00> : vector<64xf32>
    %114 = vector.multi_reduction <add>, %112, %cst_37 [1] : vector<64x128xf32> to vector<64xf32>
    %115 = vector.shape_cast %114 : vector<64xf32> to vector<64x1xf32>
    %116 = arith.addf %113, %115 : vector<64x1xf32>
    %c0_38 = arith.constant 0 : index
    %c0_39 = arith.constant 0 : index
    %117 = vector.load %arg7[%c0_38, %c0_39] : memref<64x1xf32, #tpu.memory_space<vmem>>, vector<64x1xf32>
    tpu.vector_store %arg7[%c0_38, %c0_39], %116 {strides = array<i32>} : memref<64x1xf32, #tpu.memory_space<vmem>>, vector<64x1xf32>,
    %c0_i32_40 = arith.constant 0 : i32
    %118 = arith.cmpi eq, %arg1, %c0_i32_40 : i32
    %119 = arith.extui %118 : i1 to i32
    %c0_i32_41 = arith.constant 0 : i32
    %120 = arith.cmpi ne, %119, %c0_i32_41 : i32
    scf.if %120 {
      %c0_42 = arith.constant 0 : index
      %c0_43 = arith.constant 0 : index
      %121 = vector.load %arg6[%c0_42, %c0_43] : memref<512x64xf32, #tpu.memory_space<vmem>>, vector<512x64xf32>
      %cst_44 = arith.constant dense<0.000000e+00> : vector<64xf32>
      %122 = vector.multi_reduction <add>, %121, %cst_44 [0] : vector<512x64xf32> to vector<64xf32>
      %123 = vector.shape_cast %122 : vector<64xf32> to vector<1x64xf32>
      %cst_45 = arith.constant 5.120000e+02 : f32
      %124 = vector.broadcast %cst_45 : f32 to vector<1x64xf32>
      %125 = arith.divf %123, %124 : vector<1x64xf32>
      %126 = vector.broadcast %125 : vector<1x64xf32> to vector<512x64xf32>
      %127 = arith.subf %121, %126 : vector<512x64xf32>
      %128 = arith.mulf %127, %127 : vector<512x64xf32>
      %cst_46 = arith.constant dense<0.000000e+00> : vector<64xf32>
      %129 = vector.multi_reduction <add>, %128, %cst_46 [0] : vector<512x64xf32> to vector<64xf32>
      %130 = vector.shape_cast %129 : vector<64xf32> to vector<1x64xf32>
      %cst_47 = arith.constant 5.120000e+02 : f32
      %131 = vector.broadcast %cst_47 : f32 to vector<1x64xf32>
      %132 = arith.divf %130, %131 : vector<1x64xf32>
      %133 = vector.broadcast %125 : vector<1x64xf32> to vector<512x64xf32>
      %134 = arith.subf %121, %133 : vector<512x64xf32>
      %cst_48 = arith.constant 9.99999974E-6 : f32
      %135 = vector.broadcast %cst_48 : f32 to vector<1x64xf32>
      %136 = arith.addf %132, %135 : vector<1x64xf32>
      %137 = math.rsqrt %136 : vector<1x64xf32>
      %138 = vector.broadcast %137 : vector<1x64xf32> to vector<512x64xf32>
      %139 = arith.mulf %134, %138 : vector<512x64xf32>
      %cst_49 = arith.constant 0.000000e+00 : f32
      %140 = vector.broadcast %cst_49 : f32 to vector<512x64xf32>
      %141 = arith.maximumf %139, %140 : vector<512x64xf32>
      %c0_50 = arith.constant 0 : index
      %c0_51 = arith.constant 0 : index
      %142 = vector.load %arg6[%c0_50, %c0_51] : memref<512x64xf32, #tpu.memory_space<vmem>>, vector<512x64xf32>
      tpu.vector_store %arg6[%c0_50, %c0_51], %141 {strides = array<i32>} : memref<512x64xf32, #tpu.memory_space<vmem>>, vector<512x64xf32>,
    } else {
    }
    return
  }
  func.func @transform_0(%arg0: i32, %arg1: i32) -> (i32, i32) {
    %c0_i32 = arith.constant 0 : i32
    %c0_i32_0 = arith.constant 0 : i32
    %c0_i32_1 = arith.constant 0 : i32
    return %c0_i32, %c0_i32_0 : i32, i32
  }
  func.func @transform_1(%arg0: i32, %arg1: i32) -> (i32, i32) {
    %c0_i32 = arith.constant 0 : i32
    %c0_i32_0 = arith.constant 0 : i32
    return %c0_i32, %arg1 : i32, i32
  }
  func.func @transform_2(%arg0: i32, %arg1: i32) -> (i32, i32) {
    %c0_i32 = arith.constant 0 : i32
    return %arg0, %arg1 : i32, i32
  }
  func.func @transform_3(%arg0: i32, %arg1: i32) -> (i32, i32) {
    %c0_i32 = arith.constant 0 : i32
    return %arg0, %arg1 : i32, i32
  }
  func.func @transform_4(%arg0: i32, %arg1: i32) -> (i32, i32) {
    %c0_i32 = arith.constant 0 : i32
    %c0_i32_0 = arith.constant 0 : i32
    return %c0_i32, %arg0 : i32, i32
  }
  func.func @transform_5(%arg0: i32, %arg1: i32) -> (i32, i32) {
    %c0_i32 = arith.constant 0 : i32
    %c0_i32_0 = arith.constant 0 : i32
    return %arg0, %c0_i32 : i32, i32
  }
}

</mosaic_0001>

<llo_original>
// kernel: tpu_custom_call.1
$region0: #{tpu_custom_call.1}
  #allocation0 [shape = 'u32[]', space=smem, size = 0x4, offset = 0x4, fixed_abs, tag = 'smem constant byte address 0x4 - core index']
  #allocation1 [shape = 'u32[72,128]{1,0:T(1,128)}', space=vmem, size = 0x9000, scoped, tag = 'internal scratch']
  #allocation2 [shape = 's32[1,1]{1,0:T(1,128)S(1)}', space=vmem, size = 0x200, scoped, tag = 'scoped memory for tpu_custom_call.1']
  %s0 = inlined_call_operand.<no memory space> [shape: s32[1,1], index: 0, kind: input, shape index: {}]
  %s1 = inlined_call_operand.hbm [shape: f32[512,128], index: 1, kind: input, shape index: {}]
  %s2 = inlined_call_operand.hbm [shape: bf16[64,128], index: 2, kind: input, shape index: {}]
  %s3 = inlined_call_operand.hbm [shape: bf16[64,128], index: 3, kind: input, shape index: {}]
  %s4 = inlined_call_operand.vmem [shape: f32[512,64], index: 4, kind: output, shape index: {0}]
  %s5 = inlined_call_operand.vmem [shape: f32[64,1], index: 5, kind: output, shape index: {1}]
  %6 = xla_tuple %s4, %s5
  %s7 = sld [smem:[#allocation0]]
  $region54: #{tpu_custom_call.1} parent=0
    _
  %s9 = ssub.s32 1, %s7
  %s10 = scalar_select 0, %s9, %s7
  %v11 = vstv %s0
  %12 = vst [vmem:[#allocation2] sm:$0x1] %v11
  $region1: #{tpu_custom_call.1} parent=0
    #allocation3 [shape = 'u8[262144]{0}', space=vmem, size = 0x40000, scoped, tag = 'input window, operand 1, single buffered']
    #allocation4 [shape = 's32[1]{0}', space=sflag, size = 0x4, scoped, tag = 'scoped memory for tpu_custom_call.1']
    #allocation5 [shape = 'u8[16384]{0}', space=vmem, size = 0x4000, scoped, tag = 'input window, operand 2, single buffered']
    #allocation6 [shape = 's32[1]{0}', space=sflag, size = 0x4, scoped, tag = 'scoped memory for tpu_custom_call.1']
    #allocation7 [shape = 'u8[16384]{0}', space=vmem, size = 0x4000, scoped, tag = 'input window, operand 3, single buffered']
    %13 = vsyncpa [#allocation4], 0
    %14 = vsyncpa [#allocation6], 0
    // Predicated region
    $region2: #{tpu_custom_call.1} parent=1 // pred_check
      _
    $region3: #{tpu_custom_call.1} parent=1 // pred_check_branch
      %16 = sbr.rel (0) target = $region5
    $region4: #{tpu_custom_call.1} parent=1 // pred_region
      _
    $region5: #{tpu_custom_call.1} parent=1 // pred_fallthru
      _
    // Predicated region
    $region6: #{tpu_custom_call.1} parent=1 // pred_check
      _
    $region7: #{tpu_custom_call.1} parent=1 // pred_check_branch
      %18 = sbr.rel (0) target = $region9
    $region8: #{tpu_custom_call.1} parent=1 // pred_region
      %20 = vsyncadd [#allocation4], 0
      %s21 = sshll.u32 %s1, 4
      %s22 = int_to_ptr.hbm [resolvable:$true] %s21
      %s23 = sshll.u32 [#allocation3], 4
      %s24 = int_to_ptr.vmem [resolvable:$true] %s23
      %29 = dma.hbm_to_vmem [thread:$0]  %s22, 8192, %s24, [#allocation4], 128, 128, 8
    $region9: #{tpu_custom_call.1} parent=1 // pred_fallthru
      _
    // Predicated region
    $region10: #{tpu_custom_call.1} parent=1 // pred_check
      _
    $region11: #{tpu_custom_call.1} parent=1 // pred_check_branch
      %31 = sbr.rel (0) target = $region13
    $region12: #{tpu_custom_call.1} parent=1 // pred_region
      %33 = vsyncadd [#allocation6], 0
      %s34 = sshll.u32 %s2, 4
      %s35 = int_to_ptr.hbm [resolvable:$true] %s34
      %s36 = sshll.u32 [#allocation5], 4
      %s37 = int_to_ptr.vmem [resolvable:$true] %s36
      %42 = dma.hbm_to_vmem [thread:$0]  %s35, 512, %s37, [#allocation6], 64, 64, 4
    $region13: #{tpu_custom_call.1} parent=1 // pred_fallthru
      _
    // Predicated region
    $region14: #{tpu_custom_call.1} parent=1 // pred_check
      _
    $region15: #{tpu_custom_call.1} parent=1 // pred_check_branch
      %44 = sbr.rel (0) target = $region17
    $region16: #{tpu_custom_call.1} parent=1 // pred_region
      %46 = vsyncadd [#allocation6], 0
      %s47 = sshll.u32 %s3, 4
      %s48 = int_to_ptr.hbm [resolvable:$true] %s47
      %s49 = sshll.u32 [#allocation7], 4
      %s50 = int_to_ptr.vmem [resolvable:$true] %s49
      %55 = dma.hbm_to_vmem [thread:$0]  %s48, 512, %s50, [#allocation6], 64, 64, 4
    $region17: #{tpu_custom_call.1} parent=1 // pred_fallthru
      _
    // Predicated region
    $region18: #{tpu_custom_call.1} parent=1 // pred_check
      _
    $region19: #{tpu_custom_call.1} parent=1 // pred_check_branch
      %57 = sbr.rel (0) target = $region21
    $region20: #{tpu_custom_call.1} parent=1 // pred_region
      %59 = dma.done [#allocation4], 8192
    $region21: #{tpu_custom_call.1} parent=1 // pred_fallthru
      _
    // Predicated region
    $region22: #{tpu_custom_call.1} parent=1 // pred_check
      _
    $region23: #{tpu_custom_call.1} parent=1 // pred_check_branch
      %61 = sbr.rel (0) target = $region25
    $region24: #{tpu_custom_call.1} parent=1 // pred_region
      %63 = dma.done [#allocation6], 512
    $region25: #{tpu_custom_call.1} parent=1 // pred_fallthru
      _
    // Predicated region
    $region26: #{tpu_custom_call.1} parent=1 // pred_check
      _
    $region27: #{tpu_custom_call.1} parent=1 // pred_check_branch
      %65 = sbr.rel (0) target = $region29
    $region28: #{tpu_custom_call.1} parent=1 // pred_region
      %67 = dma.done [#allocation6], 512
    $region29: #{tpu_custom_call.1} parent=1 // pred_fallthru
      _
    %p68 = scmp.eq.s32.totalorder 0, 0
    // Predicated region
    $region30: #{tpu_custom_call.1} parent=1 // pred_check
      %p69 = pneg %p68
    $region31: #{tpu_custom_call.1} parent=1 // pred_check_branch
      %71 = sbr.rel (%p69) target = $region33
    $region32: #{tpu_custom_call.1} parent=1 // pred_region
      %vm72 = vcmask 523264
      %73 = vst.msk [vmem:[%s4] sm:$0xff] %vm72, 0.0
      %74 = vst.msk [vmem:[%s4 + $0x8] sm:$0xff] %vm72, 0.0
      %75 = vst.msk [vmem:[%s4 + $0x10] sm:$0xff] %vm72, 0.0
      %76 = vst.msk [vmem:[%s4 + $0x18] sm:$0xff] %vm72, 0.0
      %77 = vst.msk [vmem:[%s4 + $0x20] sm:$0xff] %vm72, 0.0
      %78 = vst.msk [vmem:[%s4 + $0x28] sm:$0xff] %vm72, 0.0
      %79 = vst.msk [vmem:[%s4 + $0x30] sm:$0xff] %vm72, 0.0
      %80 = vst.msk [vmem:[%s4 + $0x38] sm:$0xff] %vm72, 0.0
      %81 = vst.msk [vmem:[%s4 + $0x40] sm:$0xff] %vm72, 0.0
      %82 = vst.msk [vmem:[%s4 + $0x48] sm:$0xff] %vm72, 0.0
      %83 = vst.msk [vmem:[%s4 + $0x50] sm:$0xff] %vm72, 0.0
      %84 = vst.msk [vmem:[%s4 + $0x58] sm:$0xff] %vm72, 0.0
      %85 = vst.msk [vmem:[%s4 + $0x60] sm:$0xff] %vm72, 0.0
      %86 = vst.msk [vmem:[%s4 + $0x68] sm:$0xff] %vm72, 0.0
      %87 = vst.msk [vmem:[%s4 + $0x70] sm:$0xff] %vm72, 0.0
      %88 = vst.msk [vmem:[%s4 + $0x78] sm:$0xff] %vm72, 0.0
      %89 = vst.msk [vmem:[%s4 + $0x80] sm:$0xff] %vm72, 0.0
      %90 = vst.msk [vmem:[%s4 + $0x88] sm:$0xff] %vm72, 0.0
      %91 = vst.msk [vmem:[%s4 + $0x90] sm:$0xff] %vm72, 0.0
      %92 = vst.msk [vmem:[%s4 + $0x98] sm:$0xff] %vm72, 0.0
      %93 = vst.msk [vmem:[%s4 + $0xa0] sm:$0xff] %vm72, 0.0
      %94 = vst.msk [vmem:[%s4 + $0xa8] sm:$0xff] %vm72, 0.0
      %95 = vst.msk [vmem:[%s4 + $0xb0] sm:$0xff] %vm72, 0.0
      %96 = vst.msk [vmem:[%s4 + $0xb8] sm:$0xff] %vm72, 0.0
      %97 = vst.msk [vmem:[%s4 + $0xc0] sm:$0xff] %vm72, 0.0
      %98 = vst.msk [vmem:[%s4 + $0xc8] sm:$0xff] %vm72, 0.0
      %99 = vst.msk [vmem:[%s4 + $0xd0] sm:$0xff] %vm72, 0.0
      %100 = vst.msk [vmem:[%s4 + $0xd8] sm:$0xff] %vm72, 0.0
      %101 = vst.msk [vmem:[%s4 + $0xe0] sm:$0xff] %vm72, 0.0
      %102 = vst.msk [vmem:[%s4 + $0xe8] sm:$0xff] %vm72, 0.0
      %103 = vst.msk [vmem:[%s4 + $0xf0] sm:$0xff] %vm72, 0.0
      %104 = vst.msk [vmem:[%s4 + $0xf8] sm:$0xff] %vm72, 0.0
      %105 = vst.msk [vmem:[%s4 + $0x100] sm:$0xff] %vm72, 0.0
      %106 = vst.msk [vmem:[%s4 + $0x108] sm:$0xff] %vm72, 0.0
      %107 = vst.msk [vmem:[%s4 + $0x110] sm:$0xff] %vm72, 0.0
      %108 = vst.msk [vmem:[%s4 + $0x118] sm:$0xff] %vm72, 0.0
      %109 = vst.msk [vmem:[%s4 + $0x120] sm:$0xff] %vm72, 0.0
      %110 = vst.msk [vmem:[%s4 + $0x128] sm:$0xff] %vm72, 0.0
      %111 = vst.msk [vmem:[%s4 + $0x130] sm:$0xff] %vm72, 0.0
      %112 = vst.msk [vmem:[%s4 + $0x138] sm:$0xff] %vm72, 0.0
      %113 = vst.msk [vmem:[%s4 + $0x140] sm:$0xff] %vm72, 0.0
      %114 = vst.msk [vmem:[%s4 + $0x148] sm:$0xff] %vm72, 0.0
      %115 = vst.msk [vmem:[%s4 + $0x150] sm:$0xff] %vm72, 0.0
      %116 = vst.msk [vmem:[%s4 + $0x158] sm:$0xff] %vm72, 0.0
      %117 = vst.msk [vmem:[%s4 + $0x160] sm:$0xff] %vm72, 0.0
      %118 = vst.msk [vmem:[%s4 + $0x168] sm:$0xff] %vm72, 0.0
      %119 = vst.msk [vmem:[%s4 + $0x170] sm:$0xff] %vm72, 0.0
      %120 = vst.msk [vmem:[%s4 + $0x178] sm:$0xff] %vm72, 0.0
      %121 = vst.msk [vmem:[%s4 + $0x180] sm:$0xff] %vm72, 0.0
      %122 = vst.msk [vmem:[%s4 + $0x188] sm:$0xff] %vm72, 0.0
      %123 = vst.msk [vmem:[%s4 + $0x190] sm:$0xff] %vm72, 0.0
      %124 = vst.msk [vmem:[%s4 + $0x198] sm:$0xff] %vm72, 0.0
      %125 = vst.msk [vmem:[%s4 + $0x1a0] sm:$0xff] %vm72, 0.0
      %126 = vst.msk [vmem:[%s4 + $0x1a8] sm:$0xff] %vm72, 0.0
      %127 = vst.msk [vmem:[%s4 + $0x1b0] sm:$0xff] %vm72, 0.0
      %128 = vst.msk [vmem:[%s4 + $0x1b8] sm:$0xff] %vm72, 0.0
      %129 = vst.msk [vmem:[%s4 + $0x1c0] sm:$0xff] %vm72, 0.0
      %130 = vst.msk [vmem:[%s4 + $0x1c8] sm:$0xff] %vm72, 0.0
      %131 = vst.msk [vmem:[%s4 + $0x1d0] sm:$0xff] %vm72, 0.0
      %132 = vst.msk [vmem:[%s4 + $0x1d8] sm:$0xff] %vm72, 0.0
      %133 = vst.msk [vmem:[%s4 + $0x1e0] sm:$0xff] %vm72, 0.0
      %134 = vst.msk [vmem:[%s4 + $0x1e8] sm:$0xff] %vm72, 0.0
      %135 = vst.msk [vmem:[%s4 + $0x1f0] sm:$0xff] %vm72, 0.0
      %136 = vst.msk [vmem:[%s4 + $0x1f8] sm:$0xff] %vm72, 0.0
      %vm137 = vcmask 7168
      %138 = vst.msk [vmem:[%s5] sm:$0xff] %vm137, 0.0
      %139 = vst.msk [vmem:[%s5 + $0x8] sm:$0xff] %vm137, 0.0
      %140 = vst.msk [vmem:[%s5 + $0x10] sm:$0xff] %vm137, 0.0
      %141 = vst.msk [vmem:[%s5 + $0x18] sm:$0xff] %vm137, 0.0
      %142 = vst.msk [vmem:[%s5 + $0x20] sm:$0xff] %vm137, 0.0
      %143 = vst.msk [vmem:[%s5 + $0x28] sm:$0xff] %vm137, 0.0
      %144 = vst.msk [vmem:[%s5 + $0x30] sm:$0xff] %vm137, 0.0
      %145 = vst.msk [vmem:[%s5 + $0x38] sm:$0xff] %vm137, 0.0
    $region33: #{tpu_custom_call.1} parent=1 // pred_fallthru
      _
    %v146 = vld [vmem:[#allocation5] sm:$0xf]
    %v147 = vld [vmem:[#allocation5 + $0x4] sm:$0xf]
    %v148 = vld [vmem:[#allocation5 + $0x8] sm:$0xf]
    %v149 = vld [vmem:[#allocation5 + $0xc] sm:$0xf]
    %v150 = vld [vmem:[#allocation5 + $0x10] sm:$0xf]
    %v151 = vld [vmem:[#allocation5 + $0x14] sm:$0xf]
    %v152 = vld [vmem:[#allocation5 + $0x18] sm:$0xf]
    %v153 = vld [vmem:[#allocation5 + $0x1c] sm:$0xf]
    %v154 = vunpack.c.l.bf16 %v146
    %v155 = vunpack.c.l.bf16 %v147
    %v156 = vunpack.c.l.bf16 %v148
    %v157 = vunpack.c.l.bf16 %v149
    %v158 = vunpack.c.l.bf16 %v150
    %v159 = vunpack.c.l.bf16 %v151
    %v160 = vunpack.c.l.bf16 %v152
    %v161 = vunpack.c.l.bf16 %v153
    %v162 = vld [vmem:[#allocation7] sm:$0xf]
    %v163 = vld [vmem:[#allocation7 + $0x4] sm:$0xf]
    %v164 = vld [vmem:[#allocation7 + $0x8] sm:$0xf]
    %v165 = vld [vmem:[#allocation7 + $0xc] sm:$0xf]
    %v166 = vld [vmem:[#allocation7 + $0x10] sm:$0xf]
    %v167 = vld [vmem:[#allocation7 + $0x14] sm:$0xf]
    %v168 = vld [vmem:[#allocation7 + $0x18] sm:$0xf]
    %v169 = vld [vmem:[#allocation7 + $0x1c] sm:$0xf]
    %v170 = vunpack.c.l.bf16 %v162
    %v171 = vunpack.c.l.bf16 %v163
    %v172 = vunpack.c.l.bf16 %v164
    %v173 = vunpack.c.l.bf16 %v165
    %v174 = vunpack.c.l.bf16 %v166
    %v175 = vunpack.c.l.bf16 %v167
    %v176 = vunpack.c.l.bf16 %v168
    %v177 = vunpack.c.l.bf16 %v169
    %v178 = vmax.f32 %v170, 0.0
    %v179 = vmax.f32 %v171, 0.0
    %v180 = vmax.f32 %v172, 0.0
    %v181 = vmax.f32 %v173, 0.0
    %v182 = vmax.f32 %v174, 0.0
    %v183 = vmax.f32 %v175, 0.0
    %v184 = vmax.f32 %v176, 0.0
    %v185 = vmax.f32 %v177, 0.0
    %v186 = vand.u32 2147483647, %v170
    %v187 = vand.u32 2147483647, %v171
    %v188 = vand.u32 2147483647, %v172
    %v189 = vand.u32 2147483647, %v173
    %v190 = vand.u32 2147483647, %v174
    %v191 = vand.u32 2147483647, %v175
    %v192 = vand.u32 2147483647, %v176
    %v193 = vand.u32 2147483647, %v177
    %v194 = vsub.f32 0.0, %v186
    %v195 = vsub.f32 0.0, %v187
    %v196 = vsub.f32 0.0, %v188
    %v197 = vsub.f32 0.0, %v189
    %v198 = vsub.f32 0.0, %v190
    %v199 = vsub.f32 0.0, %v191
    %v200 = vsub.f32 0.0, %v192
    %v201 = vsub.f32 0.0, %v193
    %v202 = vmul.f32 %v194, 1.442695
    %v203 = vpow.pop %v202
    %v204 = vmul.f32 %v195, 1.442695
    %v205 = vpow.pop %v204
    %v206 = vmul.f32 %v196, 1.442695
    %v207 = vpow.pop %v206
    %v208 = vmul.f32 %v197, 1.442695
    %v209 = vpow.pop %v208
    %v210 = vmul.f32 %v198, 1.442695
    %v211 = vpow.pop %v210
    %v212 = vmul.f32 %v199, 1.442695
    %v213 = vpow.pop %v212
    %v214 = vmul.f32 %v200, 1.442695
    %v215 = vpow.pop %v214
    %v216 = vmul.f32 %v201, 1.442695
    %v217 = vpow.pop %v216
    %v218 = vadd.f32 %v203, 1.0
    %v219 = vadd.f32 %v205, 1.0
    %v220 = vadd.f32 %v207, 1.0
    %v221 = vadd.f32 %v209, 1.0
    %v222 = vadd.f32 %v211, 1.0
    %v223 = vadd.f32 %v213, 1.0
    %v224 = vadd.f32 %v215, 1.0
    %v225 = vadd.f32 %v217, 1.0
    %v226 = vlog2.pop %v218
    %v227 = vmul.f32 %v226, 0.6931472
    %v228 = vlog2.pop %v219
    %v229 = vmul.f32 %v228, 0.6931472
    %v230 = vlog2.pop %v220
    %v231 = vmul.f32 %v230, 0.6931472
    %v232 = vlog2.pop %v221
    %v233 = vmul.f32 %v232, 0.6931472
    %v234 = vlog2.pop %v222
    %v235 = vmul.f32 %v234, 0.6931472
    %v236 = vlog2.pop %v223
    %v237 = vmul.f32 %v236, 0.6931472
    %v238 = vlog2.pop %v224
    %v239 = vmul.f32 %v238, 0.6931472
    %v240 = vlog2.pop %v225
    %v241 = vmul.f32 %v240, 0.6931472
    %v242 = vadd.f32 %v178, %v227
    %v243 = vadd.f32 %v179, %v229
    %v244 = vadd.f32 %v180, %v231
    %v245 = vadd.f32 %v181, %v233
    %v246 = vadd.f32 %v182, %v235
    %v247 = vadd.f32 %v183, %v237
    %v248 = vadd.f32 %v184, %v239
    %v249 = vadd.f32 %v185, %v241
    %v250 = vlaneseq
    %v251 = vshrl.u32 %v250, 7
    %v252 = vadd.s32 %v251, 8
    %v253 = vadd.s32 %v251, 16
    %v254 = vadd.s32 %v251, 24
    %v255 = vadd.s32 %v251, 32
    %v256 = vadd.s32 %v251, 40
    %v257 = vadd.s32 %v251, 48
    %v258 = vadd.s32 %v251, 56
    %s259 = smul.u32 0, 64
    %v260 = vstv %s259
    %v261 = vadd.s32 %v251, %v260
    %v262 = vadd.s32 %v252, %v260
    %v263 = vadd.s32 %v253, %v260
    %v264 = vadd.s32 %v254, %v260
    %v265 = vadd.s32 %v255, %v260
    %v266 = vadd.s32 %v256, %v260
    %v267 = vadd.s32 %v257, %v260
    %v268 = vadd.s32 %v258, %v260
    %v269 = vlaneseq
    %v270 = vand.u32 %v269, 127
    %s271 = smul.u32 0, 128
    %v272 = vstv %s271
    %v273 = vadd.s32 %v270, %v272
    %v274 = vmul.u32 %v261, 128
    %v275 = vmul.u32 %v262, 128
    %v276 = vmul.u32 %v263, 128
    %v277 = vmul.u32 %v264, 128
    %v278 = vmul.u32 %v265, 128
    %v279 = vmul.u32 %v266, 128
    %v280 = vmul.u32 %v267, 128
    %v281 = vmul.u32 %v268, 128
    %v282 = vadd.s32 %v274, %v273
    %v283 = vadd.s32 %v275, %v273
    %v284 = vadd.s32 %v276, %v273
    %v285 = vadd.s32 %v277, %v273
    %v286 = vadd.s32 %v278, %v273
    %v287 = vadd.s32 %v279, %v273
    %v288 = vadd.s32 %v280, %v273
    %v289 = vadd.s32 %v281, %v273
    %v290 = vld [vmem:[#allocation2] sm:$0x1]
    %v291 = vadd.s32 %v290, 2654435769
    %v292 = vmul.u32 %v282, 2654435761
    %v293 = vmul.u32 %v283, 2654435761
    %v294 = vmul.u32 %v284, 2654435761
    %v295 = vmul.u32 %v285, 2654435761
    %v296 = vmul.u32 %v286, 2654435761
    %v297 = vmul.u32 %v287, 2654435761
    %v298 = vmul.u32 %v288, 2654435761
    %v299 = vmul.u32 %v289, 2654435761
    %v300 = vperm.slane %v291, 0
    %301 = vset.pattern.permute.xlu0 0
    %302 = vperm.xlu0 %301, %v300
    %v303 = vpop.permute.xlu0 %302
    %v304 = vadd.s32 %v292, %v303
    %v305 = vadd.s32 %v293, %v303
    %v306 = vadd.s32 %v294, %v303
    %v307 = vadd.s32 %v295, %v303
    %v308 = vadd.s32 %v296, %v303
    %v309 = vadd.s32 %v297, %v303
    %v310 = vadd.s32 %v298, %v303
    %v311 = vadd.s32 %v299, %v303
    %v312 = vshrl.u32 %v304, 16
    %v313 = vshrl.u32 %v305, 16
    %v314 = vshrl.u32 %v306, 16
    %v315 = vshrl.u32 %v307, 16
    %v316 = vshrl.u32 %v308, 16
    %v317 = vshrl.u32 %v309, 16
    %v318 = vshrl.u32 %v310, 16
    %v319 = vshrl.u32 %v311, 16
    %v320 = vxor.u32 %v304, %v312
    %v321 = vxor.u32 %v305, %v313
    %v322 = vxor.u32 %v306, %v314
    %v323 = vxor.u32 %v307, %v315
    %v324 = vxor.u32 %v308, %v316
    %v325 = vxor.u32 %v309, %v317
    %v326 = vxor.u32 %v310, %v318
    %v327 = vxor.u32 %v311, %v319
    %v328 = vmul.u32 %v320, 2146121005
    %v329 = vmul.u32 %v321, 2146121005
    %v330 = vmul.u32 %v322, 2146121005
    %v331 = vmul.u32 %v323, 2146121005
    %v332 = vmul.u32 %v324, 2146121005
    %v333 = vmul.u32 %v325, 2146121005
    %v334 = vmul.u32 %v326, 2146121005
    %v335 = vmul.u32 %v327, 2146121005
    %v336 = vshrl.u32 %v328, 15
    %v337 = vshrl.u32 %v329, 15
    %v338 = vshrl.u32 %v330, 15
    %v339 = vshrl.u32 %v331, 15
    %v340 = vshrl.u32 %v332, 15
    %v341 = vshrl.u32 %v333, 15
    %v342 = vshrl.u32 %v334, 15
    %v343 = vshrl.u32 %v335, 15
    %v344 = vxor.u32 %v328, %v336
    %v345 = vxor.u32 %v329, %v337
    %v346 = vxor.u32 %v330, %v338
    %v347 = vxor.u32 %v331, %v339
    %v348 = vxor.u32 %v332, %v340
    %v349 = vxor.u32 %v333, %v341
    %v350 = vxor.u32 %v334, %v342
    %v351 = vxor.u32 %v335, %v343
    %v352 = vmul.u32 %v344, 2221713035
    %v353 = vmul.u32 %v345, 2221713035
    %v354 = vmul.u32 %v346, 2221713035
    %v355 = vmul.u32 %v347, 2221713035
    %v356 = vmul.u32 %v348, 2221713035
    %v357 = vmul.u32 %v349, 2221713035
    %v358 = vmul.u32 %v350, 2221713035
    %v359 = vmul.u32 %v351, 2221713035
    %v360 = vshrl.u32 %v352, 16
    %v361 = vshrl.u32 %v353, 16
    %v362 = vshrl.u32 %v354, 16
    %v363 = vshrl.u32 %v355, 16
    %v364 = vshrl.u32 %v356, 16
    %v365 = vshrl.u32 %v357, 16
    %v366 = vshrl.u32 %v358, 16
    %v367 = vshrl.u32 %v359, 16
    %v368 = vxor.u32 %v352, %v360
    %v369 = vxor.u32 %v353, %v361
    %v370 = vxor.u32 %v354, %v362
    %v371 = vxor.u32 %v355, %v363
    %v372 = vxor.u32 %v356, %v364
    %v373 = vxor.u32 %v357, %v365
    %v374 = vxor.u32 %v358, %v366
    %v375 = vxor.u32 %v359, %v367
    %v376 = vshrl.u32 %v368, 8
    %v377 = vshrl.u32 %v369, 8
    %v378 = vshrl.u32 %v370, 8
    %v379 = vshrl.u32 %v371, 8
    %v380 = vshrl.u32 %v372, 8
    %v381 = vshrl.u32 %v373, 8
    %v382 = vshrl.u32 %v374, 8
    %v383 = vshrl.u32 %v375, 8
    %v384 = vshrl.u32 %v376, 16
    %v385 = vand.u32 %v376, 65535
    %v386 = vcvt.s32.f32 %v384
    %v387 = vmul.f32 %v386, 65536.0
    %v388 = vcvt.s32.f32 %v385
    %v389 = vadd.f32 %v387, %v388
    %v390 = vshrl.u32 %v377, 16
    %v391 = vand.u32 %v377, 65535
    %v392 = vcvt.s32.f32 %v390
    %v393 = vmul.f32 %v392, 65536.0
    %v394 = vcvt.s32.f32 %v391
    %v395 = vadd.f32 %v393, %v394
    %v396 = vshrl.u32 %v378, 16
    %v397 = vand.u32 %v378, 65535
    %v398 = vcvt.s32.f32 %v396
    %v399 = vmul.f32 %v398, 65536.0
    %v400 = vcvt.s32.f32 %v397
    %v401 = vadd.f32 %v399, %v400
    %v402 = vshrl.u32 %v379, 16
    %v403 = vand.u32 %v379, 65535
    %v404 = vcvt.s32.f32 %v402
    %v405 = vmul.f32 %v404, 65536.0
    %v406 = vcvt.s32.f32 %v403
    %v407 = vadd.f32 %v405, %v406
    %v408 = vshrl.u32 %v380, 16
    %v409 = vand.u32 %v380, 65535
    %v410 = vcvt.s32.f32 %v408
    %v411 = vmul.f32 %v410, 65536.0
    %v412 = vcvt.s32.f32 %v409
    %v413 = vadd.f32 %v411, %v412
    %v414 = vshrl.u32 %v381, 16
    %v415 = vand.u32 %v381, 65535
    %v416 = vcvt.s32.f32 %v414
    %v417 = vmul.f32 %v416, 65536.0
    %v418 = vcvt.s32.f32 %v415
    %v419 = vadd.f32 %v417, %v418
    %v420 = vshrl.u32 %v382, 16
    %v421 = vand.u32 %v382, 65535
    %v422 = vcvt.s32.f32 %v420
    %v423 = vmul.f32 %v422, 65536.0
    %v424 = vcvt.s32.f32 %v421
    %v425 = vadd.f32 %v423, %v424
    %v426 = vshrl.u32 %v383, 16
    %v427 = vand.u32 %v383, 65535
    %v428 = vcvt.s32.f32 %v426
    %v429 = vmul.f32 %v428, 65536.0
    %v430 = vcvt.s32.f32 %v427
    %v431 = vadd.f32 %v429, %v430
    %v432 = vmul.f32 %v389, 5.9604645e-08
    %v433 = vmul.f32 %v395, 5.9604645e-08
    %v434 = vmul.f32 %v401, 5.9604645e-08
    %v435 = vmul.f32 %v407, 5.9604645e-08
    %v436 = vmul.f32 %v413, 5.9604645e-08
    %v437 = vmul.f32 %v419, 5.9604645e-08
    %v438 = vmul.f32 %v425, 5.9604645e-08
    %v439 = vmul.f32 %v431, 5.9604645e-08
    %v440 = vadd.f32 %v432, 2.9802322e-08
    %v441 = vadd.f32 %v433, 2.9802322e-08
    %v442 = vadd.f32 %v434, 2.9802322e-08
    %v443 = vadd.f32 %v435, 2.9802322e-08
    %v444 = vadd.f32 %v436, 2.9802322e-08
    %v445 = vadd.f32 %v437, 2.9802322e-08
    %v446 = vadd.f32 %v438, 2.9802322e-08
    %v447 = vadd.f32 %v439, 2.9802322e-08
    %v448 = vxor.u32 %v291, 2246822507
    %v449 = vperm.slane %v448, 0
    %450 = vset.pattern.permute.xlu0 0
    %451 = vperm.xlu0 %450, %v449
    %v452 = vpop.permute.xlu0 %451
    %v453 = vadd.s32 %v292, %v452
    %v454 = vadd.s32 %v293, %v452
    %v455 = vadd.s32 %v294, %v452
    %v456 = vadd.s32 %v295, %v452
    %v457 = vadd.s32 %v296, %v452
    %v458 = vadd.s32 %v297, %v452
    %v459 = vadd.s32 %v298, %v452
    %v460 = vadd.s32 %v299, %v452
    %v461 = vshrl.u32 %v453, 16
    %v462 = vshrl.u32 %v454, 16
    %v463 = vshrl.u32 %v455, 16
    %v464 = vshrl.u32 %v456, 16
    %v465 = vshrl.u32 %v457, 16
    %v466 = vshrl.u32 %v458, 16
    %v467 = vshrl.u32 %v459, 16
    %v468 = vshrl.u32 %v460, 16
    %v469 = vxor.u32 %v453, %v461
    %v470 = vxor.u32 %v454, %v462
    %v471 = vxor.u32 %v455, %v463
    %v472 = vxor.u32 %v456, %v464
    %v473 = vxor.u32 %v457, %v465
    %v474 = vxor.u32 %v458, %v466
    %v475 = vxor.u32 %v459, %v467
    %v476 = vxor.u32 %v460, %v468
    %v477 = vmul.u32 %v469, 2146121005
    %v478 = vmul.u32 %v470, 2146121005
    %v479 = vmul.u32 %v471, 2146121005
    %v480 = vmul.u32 %v472, 2146121005
    %v481 = vmul.u32 %v473, 2146121005
    %v482 = vmul.u32 %v474, 2146121005
    %v483 = vmul.u32 %v475, 2146121005
    %v484 = vmul.u32 %v476, 2146121005
    %v485 = vshrl.u32 %v477, 15
    %v486 = vshrl.u32 %v478, 15
    %v487 = vshrl.u32 %v479, 15
    %v488 = vshrl.u32 %v480, 15
    %v489 = vshrl.u32 %v481, 15
    %v490 = vshrl.u32 %v482, 15
    %v491 = vshrl.u32 %v483, 15
    %v492 = vshrl.u32 %v484, 15
    %v493 = vxor.u32 %v477, %v485
    %v494 = vxor.u32 %v478, %v486
    %v495 = vxor.u32 %v479, %v487
    %v496 = vxor.u32 %v480, %v488
    %v497 = vxor.u32 %v481, %v489
    %v498 = vxor.u32 %v482, %v490
    %v499 = vxor.u32 %v483, %v491
    %v500 = vxor.u32 %v484, %v492
    %v501 = vmul.u32 %v493, 2221713035
    %v502 = vmul.u32 %v494, 2221713035
    %v503 = vmul.u32 %v495, 2221713035
    %v504 = vmul.u32 %v496, 2221713035
    %v505 = vmul.u32 %v497, 2221713035
    %v506 = vmul.u32 %v498, 2221713035
    %v507 = vmul.u32 %v499, 2221713035
    %v508 = vmul.u32 %v500, 2221713035
    %v509 = vshrl.u32 %v501, 16
    %v510 = vshrl.u32 %v502, 16
    %v511 = vshrl.u32 %v503, 16
    %v512 = vshrl.u32 %v504, 16
    %v513 = vshrl.u32 %v505, 16
    %v514 = vshrl.u32 %v506, 16
    %v515 = vshrl.u32 %v507, 16
    %v516 = vshrl.u32 %v508, 16
    %v517 = vxor.u32 %v501, %v509
    %v518 = vxor.u32 %v502, %v510
    %v519 = vxor.u32 %v503, %v511
    %v520 = vxor.u32 %v504, %v512
    %v521 = vxor.u32 %v505, %v513
    %v522 = vxor.u32 %v506, %v514
    %v523 = vxor.u32 %v507, %v515
    %v524 = vxor.u32 %v508, %v516
    %v525 = vshrl.u32 %v517, 8
    %v526 = vshrl.u32 %v518, 8
    %v527 = vshrl.u32 %v519, 8
    %v528 = vshrl.u32 %v520, 8
    %v529 = vshrl.u32 %v521, 8
    %v530 = vshrl.u32 %v522, 8
    %v531 = vshrl.u32 %v523, 8
    %v532 = vshrl.u32 %v524, 8
    %v533 = vshrl.u32 %v525, 16
    %v534 = vand.u32 %v525, 65535
    %v535 = vcvt.s32.f32 %v533
    %v536 = vmul.f32 %v535, 65536.0
    %v537 = vcvt.s32.f32 %v534
    %v538 = vadd.f32 %v536, %v537
    %v539 = vshrl.u32 %v526, 16
    %v540 = vand.u32 %v526, 65535
    %v541 = vcvt.s32.f32 %v539
    %v542 = vmul.f32 %v541, 65536.0
    %v543 = vcvt.s32.f32 %v540
    %v544 = vadd.f32 %v542, %v543
    %v545 = vshrl.u32 %v527, 16
    %v546 = vand.u32 %v527, 65535
    %v547 = vcvt.s32.f32 %v545
    %v548 = vmul.f32 %v547, 65536.0
    %v549 = vcvt.s32.f32 %v546
    %v550 = vadd.f32 %v548, %v549
    %v551 = vshrl.u32 %v528, 16
    %v552 = vand.u32 %v528, 65535
    %v553 = vcvt.s32.f32 %v551
    %v554 = vmul.f32 %v553, 65536.0
    %v555 = vcvt.s32.f32 %v552
    %v556 = vadd.f32 %v554, %v555
    %v557 = vshrl.u32 %v529, 16
    %v558 = vand.u32 %v529, 65535
    %v559 = vcvt.s32.f32 %v557
    %v560 = vmul.f32 %v559, 65536.0
    %v561 = vcvt.s32.f32 %v558
    %v562 = vadd.f32 %v560, %v561
    %v563 = vshrl.u32 %v530, 16
    %v564 = vand.u32 %v530, 65535
    %v565 = vcvt.s32.f32 %v563
    %v566 = vmul.f32 %v565, 65536.0
    %v567 = vcvt.s32.f32 %v564
    %v568 = vadd.f32 %v566, %v567
    %v569 = vshrl.u32 %v531, 16
    %v570 = vand.u32 %v531, 65535
    %v571 = vcvt.s32.f32 %v569
    %v572 = vmul.f32 %v571, 65536.0
    %v573 = vcvt.s32.f32 %v570
    %v574 = vadd.f32 %v572, %v573
    %v575 = vshrl.u32 %v532, 16
    %v576 = vand.u32 %v532, 65535
    %v577 = vcvt.s32.f32 %v575
    %v578 = vmul.f32 %v577, 65536.0
    %v579 = vcvt.s32.f32 %v576
    %v580 = vadd.f32 %v578, %v579
    %v581 = vmul.f32 %v538, 5.9604645e-08
    %v582 = vmul.f32 %v544, 5.9604645e-08
    %v583 = vmul.f32 %v550, 5.9604645e-08
    %v584 = vmul.f32 %v556, 5.9604645e-08
    %v585 = vmul.f32 %v562, 5.9604645e-08
    %v586 = vmul.f32 %v568, 5.9604645e-08
    %v587 = vmul.f32 %v574, 5.9604645e-08
    %v588 = vmul.f32 %v580, 5.9604645e-08
    %v589 = vadd.f32 %v581, 2.9802322e-08
    %v590 = vadd.f32 %v582, 2.9802322e-08
    %v591 = vadd.f32 %v583, 2.9802322e-08
    %v592 = vadd.f32 %v584, 2.9802322e-08
    %v593 = vadd.f32 %v585, 2.9802322e-08
    %v594 = vadd.f32 %v586, 2.9802322e-08
    %v595 = vadd.f32 %v587, 2.9802322e-08
    %v596 = vadd.f32 %v588, 2.9802322e-08
    %v597 = vlog2.pop %v440
    %v598 = vmul.f32 %v597, 0.6931472
    %v599 = vlog2.pop %v441
    %v600 = vmul.f32 %v599, 0.6931472
    %v601 = vlog2.pop %v442
    %v602 = vmul.f32 %v601, 0.6931472
    %v603 = vlog2.pop %v443
    %v604 = vmul.f32 %v603, 0.6931472
    %v605 = vlog2.pop %v444
    %v606 = vmul.f32 %v605, 0.6931472
    %v607 = vlog2.pop %v445
    %v608 = vmul.f32 %v607, 0.6931472
    %v609 = vlog2.pop %v446
    %v610 = vmul.f32 %v609, 0.6931472
    %v611 = vlog2.pop %v447
    %v612 = vmul.f32 %v611, 0.6931472
    %v613 = vmul.f32 %v598, -2.0
    %v614 = vmul.f32 %v600, -2.0
    %v615 = vmul.f32 %v602, -2.0
    %v616 = vmul.f32 %v604, -2.0
    %v617 = vmul.f32 %v606, -2.0
    %v618 = vmul.f32 %v608, -2.0
    %v619 = vmul.f32 %v610, -2.0
    %v620 = vmul.f32 %v612, -2.0
    %v621 = vrsqrt.pop %v613
    %v622 = vmul.f32 %v621, %v613
    %v623 = vmul.f32 %v622, %v621
    %v624 = vmul.f32 0.5, %v623
    %v625 = vsub.f32 1.5, %v624
    %v626 = vmul.f32 %v621, %v625
    %v627 = vmul.f32 %v613, %v626
    %vm628 = vcmp.eq.f32.partialorder %v613, inf
    %v629 = vsel %vm628, %v613, %v627
    %vm630 = vcmp.eq.f32.partialorder %v613, 0.0
    %v631 = vand.u32 %v613, 2147483648
    %v632 = vsel %vm630, %v631, %v629
    %v633 = vrsqrt.pop %v614
    %v634 = vmul.f32 %v633, %v614
    %v635 = vmul.f32 %v634, %v633
    %v636 = vmul.f32 0.5, %v635
    %v637 = vsub.f32 1.5, %v636
    %v638 = vmul.f32 %v633, %v637
    %v639 = vmul.f32 %v614, %v638
    %vm640 = vcmp.eq.f32.partialorder %v614, inf
    %v641 = vsel %vm640, %v614, %v639
    %vm642 = vcmp.eq.f32.partialorder %v614, 0.0
    %v643 = vand.u32 %v614, 2147483648
    %v644 = vsel %vm642, %v643, %v641
    %v645 = vrsqrt.pop %v615
    %v646 = vmul.f32 %v645, %v615
    %v647 = vmul.f32 %v646, %v645
    %v648 = vmul.f32 0.5, %v647
    %v649 = vsub.f32 1.5, %v648
    %v650 = vmul.f32 %v645, %v649
    %v651 = vmul.f32 %v615, %v650
    %vm652 = vcmp.eq.f32.partialorder %v615, inf
    %v653 = vsel %vm652, %v615, %v651
    %vm654 = vcmp.eq.f32.partialorder %v615, 0.0
    %v655 = vand.u32 %v615, 2147483648
    %v656 = vsel %vm654, %v655, %v653
    %v657 = vrsqrt.pop %v616
    %v658 = vmul.f32 %v657, %v616
    %v659 = vmul.f32 %v658, %v657
    %v660 = vmul.f32 0.5, %v659
    %v661 = vsub.f32 1.5, %v660
    %v662 = vmul.f32 %v657, %v661
    %v663 = vmul.f32 %v616, %v662
    %vm664 = vcmp.eq.f32.partialorder %v616, inf
    %v665 = vsel %vm664, %v616, %v663
    %vm666 = vcmp.eq.f32.partialorder %v616, 0.0
    %v667 = vand.u32 %v616, 2147483648
    %v668 = vsel %vm666, %v667, %v665
    %v669 = vrsqrt.pop %v617
    %v670 = vmul.f32 %v669, %v617
    %v671 = vmul.f32 %v670, %v669
    %v672 = vmul.f32 0.5, %v671
    %v673 = vsub.f32 1.5, %v672
    %v674 = vmul.f32 %v669, %v673
    %v675 = vmul.f32 %v617, %v674
    %vm676 = vcmp.eq.f32.partialorder %v617, inf
    %v677 = vsel %vm676, %v617, %v675
    %vm678 = vcmp.eq.f32.partialorder %v617, 0.0
    %v679 = vand.u32 %v617, 2147483648
    %v680 = vsel %vm678, %v679, %v677
    %v681 = vrsqrt.pop %v618
    %v682 = vmul.f32 %v681, %v618
    %v683 = vmul.f32 %v682, %v681
    %v684 = vmul.f32 0.5, %v683
    %v685 = vsub.f32 1.5, %v684
    %v686 = vmul.f32 %v681, %v685
    %v687 = vmul.f32 %v618, %v686
    %vm688 = vcmp.eq.f32.partialorder %v618, inf
    %v689 = vsel %vm688, %v618, %v687
    %vm690 = vcmp.eq.f32.partialorder %v618, 0.0
    %v691 = vand.u32 %v618, 2147483648
    %v692 = vsel %vm690, %v691, %v689
    %v693 = vrsqrt.pop %v619
    %v694 = vmul.f32 %v693, %v619
    %v695 = vmul.f32 %v694, %v693
    %v696 = vmul.f32 0.5, %v695
    %v697 = vsub.f32 1.5, %v696
    %v698 = vmul.f32 %v693, %v697
    %v699 = vmul.f32 %v619, %v698
    %vm700 = vcmp.eq.f32.partialorder %v619, inf
    %v701 = vsel %vm700, %v619, %v699
    %vm702 = vcmp.eq.f32.partialorder %v619, 0.0
    %v703 = vand.u32 %v619, 2147483648
    %v704 = vsel %vm702, %v703, %v701
    %v705 = vrsqrt.pop %v620
    %v706 = vmul.f32 %v705, %v620
    %v707 = vmul.f32 %v706, %v705
    %v708 = vmul.f32 0.5, %v707
    %v709 = vsub.f32 1.5, %v708
    %v710 = vmul.f32 %v705, %v709
    %v711 = vmul.f32 %v620, %v710
    %vm712 = vcmp.eq.f32.partialorder %v620, inf
    %v713 = vsel %vm712, %v620, %v711
    %vm714 = vcmp.eq.f32.partialorder %v620, 0.0
    %v715 = vand.u32 %v620, 2147483648
    %v716 = vsel %vm714, %v715, %v713
    %v717 = vmul.f32 %v589, 6.2831855
    %v718 = vmul.f32 %v590, 6.2831855
    %v719 = vmul.f32 %v591, 6.2831855
    %v720 = vmul.f32 %v592, 6.2831855
    %v721 = vmul.f32 %v593, 6.2831855
    %v722 = vmul.f32 %v594, 6.2831855
    %v723 = vmul.f32 %v595, 6.2831855
    %v724 = vmul.f32 %v596, 6.2831855
    %v725 = vand.u32 2147483647, %v717
    %vm726 = vcmp.le.f32.partialorder %v725, 0.7853982
    %vm727 = vcmp.lt.s32.totalorder %v717, 0
    %v728 = vand.u32 %v717, 2139095040
    %v729 = vshrl.u32 %v728, 23
    %v730 = vsub.s32 %v729, 127
    %v731 = vand.u32 2147483647, %v717
    %v732 = vand.u32 %v731, 8388607
    %v733 = vor.u32 %v732, 8388608
    %v734 = vsub.s32 0, %v733
    %v735 = vadd.s32 %v730, 1
    %vm736 = vcmp.gt.s32.totalorder %v735, 0
    %v737 = vsel %vm736, %v735, 0
    %v738 = vshrl.u32 %v737, 5
    %v739 = vand.u32 %v737, 31
    %v740 = vsub.s32 32, %v739
    %v741 = vshrl.u32 683565275, %v740
    %v742 = vshll.u32 683565275, %v739
    %v743 = vshrl.u32 2475754826, %v740
    %v744 = vor.u32 %v742, %v743
    %v745 = vshll.u32 2475754826, %v739
    %v746 = vshrl.u32 2131351028, %v740
    %v747 = vor.u32 %v745, %v746
    %v748 = vshll.u32 2131351028, %v739
    %v749 = vshrl.u32 2102212464, %v740
    %v750 = vor.u32 %v748, %v749
    %v751 = vshll.u32 2102212464, %v739
    %v752 = vshrl.u32 920167782, %v740
    %v753 = vor.u32 %v751, %v752
    %v754 = vshll.u32 920167782, %v739
    %v755 = vshrl.u32 1326507024, %v740
    %v756 = vor.u32 %v754, %v755
    %vm757 = vcmp.lt.s32.totalorder %v738, 1
    %vm758 = vcmp.lt.s32.totalorder %v738, 2
    %vm759 = vcmp.lt.s32.totalorder %v738, 3
    %vm760 = vcmp.lt.s32.totalorder %v738, 4
    %v761 = vsel %vm757, %v741, %v744
    %v762 = vsel %vm760, %v750, 2102212464
    %v763 = vsel %vm759, %v747, %v762
    %v764 = vsel %vm758, %v761, %v763
    %v765 = vsel %vm757, %v744, %v747
    %v766 = vsel %vm760, %v753, 920167782
    %v767 = vsel %vm759, %v750, %v766
    %v768 = vsel %vm758, %v765, %v767
    %v769 = vsel %vm757, %v747, %v750
    %v770 = vsel %vm760, %v756, 1326507024
    %v771 = vsel %vm759, %v753, %v770
    %v772 = vsel %vm758, %v769, %v771
    %v773 = vshll.u32 %v733, 8
    %v774 = vand.u32 %v773, 65535
    %v775 = vshrl.u32 %v773, 16
    %v776 = vand.u32 %v772, 65535
    %v777 = vshrl.u32 %v772, 16
    %v778 = vmul.u32 %v774, %v776
    %v779 = vmul.u32 %v774, %v777
    %v780 = vmul.u32 %v775, %v776
    %v781 = vmul.u32 %v775, %v777
    %v782 = vshll.u32 %v779, 16
    %v783 = vshrl.u32 %v779, 16
    %v784 = vshll.u32 %v780, 16
    %v785 = vshrl.u32 %v780, 16
    %vm786 = vc.u32 %v778, %v782
    %v787 = vsel %vm786, 1, 0
    %v788 = vadd.s32 %v778, %v782
    %v789 = vadd.s32 %v781, %v787
    %vm790 = vc.u32 %v788, %v784
    %v791 = vsel %vm790, 1, 0
    %v792 = vadd.s32 %v788, %v784
    %v793 = vadd.s32 %v789, %v791
    %v794 = vadd.s32 %v793, %v783
    %v795 = vadd.s32 %v794, %v785
    %v796 = vand.u32 %v773, 65535
    %v797 = vshrl.u32 %v773, 16
    %v798 = vand.u32 %v768, 65535
    %v799 = vshrl.u32 %v768, 16
    %v800 = vmul.u32 %v796, %v798
    %v801 = vmul.u32 %v796, %v799
    %v802 = vmul.u32 %v797, %v798
    %v803 = vmul.u32 %v797, %v799
    %v804 = vshll.u32 %v801, 16
    %v805 = vshrl.u32 %v801, 16
    %v806 = vshll.u32 %v802, 16
    %v807 = vshrl.u32 %v802, 16
    %vm808 = vc.u32 %v800, %v804
    %v809 = vsel %vm808, 1, 0
    %v810 = vadd.s32 %v800, %v804
    %v811 = vadd.s32 %v803, %v809
    %vm812 = vc.u32 %v810, %v806
    %v813 = vsel %vm812, 1, 0
    %v814 = vadd.s32 %v810, %v806
    %v815 = vadd.s32 %v811, %v813
    %v816 = vadd.s32 %v815, %v805
    %v817 = vadd.s32 %v816, %v807
    %v818 = vmul.u32 %v773, %v764
    %v819 = vadd.s32 %v795, %v814
    %vm820 = vc.u32 %v795, %v814
    %v821 = vadd.s32 %v817, 1
    %v822 = vsel %vm820, %v821, %v817
    %v823 = vadd.s32 %v818, %v822
    %v824 = vadd.s32 %v823, 536870912
    %v825 = vshrl.u32 %v824, 30
    %v826 = vshll.u32 %v825, 30
    %v827 = vsub.s32 %v823, %v826
    %vm828 = vcmp.lt.s32.totalorder %v827, 0
    %v829 = vsub.s32 0, %v827
    %v830 = vsel %vm828, %v829, %v827
    %v831 = vclz %v830
    %v832 = vsub.s32 %v831, 2
    %vm833 = vcmp.gt.s32.totalorder 0, %v832
    %v834 = vsel %vm833, 0, %v832
    %v835 = vsub.s32 32, %v834
    %v836 = vshll.u32 %v827, %v834
    %v837 = vshrl.u32 %v819, %v835
    %v838 = vor.u32 %v836, %v837
    %v839 = vsub.s32 4294967266, %v834
    %v840 = vadd.s32 %v839, 127
    %v841 = vshll.u32 %v840, 23
    %v842 = vor.u32 4788187, %v841
    %v843 = vand.u32 2147483647, %v842
    %v845 = vcvt.s32.f32 %v838
    %v846 = vmul.f32 %v845, %v843
    %v847 = vxor.u32 %v846, 2147483648
    %v848 = vsel %vm727, %v847, %v846
    %v849 = vsub.s32 4, %v825
    %v850 = vsel %vm727, %v849, %v825
    %v851 = vsel %vm726, %v717, %v848
    %v852 = vsel %vm726, 0, %v850
    %v853 = vmul.f32 %v851, %v851
    %v854 = vmul.f32 %v853, -0.001358992
    %v855 = vadd.f32 %v854, 0.041655596
    %v856 = vmul.f32 %v853, %v855
    %v857 = vadd.f32 %v856, -0.4999988
    %v858 = vmul.f32 %v853, %v857
    %v859 = vadd.f32 1.0, %v858
    %v860 = vmul.f32 %v851, %v851
    %v861 = vmul.f32 %v860, -0.00019511016
    %v862 = vadd.f32 %v861, 0.008332121
    %v863 = vmul.f32 %v860, %v862
    %v864 = vadd.f32 %v863, -0.16666654
    %v865 = vmul.f32 %v860, %v864
    %v866 = vadd.f32 %v865, 1.0
    %v867 = vmul.f32 %v866, %v851
    %vm868 = vweird.f32 %v717
    %v869 = vand.u32 %v852, 3
    %vm870 = vcmp.lt.s32.totalorder %v869, 2
    %vm871 = vcmp.eq.s32.totalorder %v869, 0
    %v872 = vxor.u32 %v867, 2147483648
    %v873 = vsel %vm871, %v859, %v872
    %vm874 = vcmp.eq.s32.totalorder %v869, 2
    %v875 = vxor.u32 %v859, 2147483648
    %v876 = vsel %vm874, %v875, %v867
    %v877 = vsel %vm870, %v873, %v876
    %v878 = vsel %vm868, nan, %v877
    %v879 = vand.u32 2147483647, %v718
    %vm880 = vcmp.le.f32.partialorder %v879, 0.7853982
    %vm881 = vcmp.lt.s32.totalorder %v718, 0
    %v882 = vand.u32 %v718, 2139095040
    %v883 = vshrl.u32 %v882, 23
    %v884 = vsub.s32 %v883, 127
    %v885 = vand.u32 2147483647, %v718
    %v886 = vand.u32 %v885, 8388607
    %v887 = vor.u32 %v886, 8388608
    %v888 = vsub.s32 0, %v887
    %v889 = vadd.s32 %v884, 1
    %vm890 = vcmp.gt.s32.totalorder %v889, 0
    %v891 = vsel %vm890, %v889, 0
    %v892 = vshrl.u32 %v891, 5
    %v893 = vand.u32 %v891, 31
    %v894 = vsub.s32 32, %v893
    %v895 = vshrl.u32 683565275, %v894
    %v896 = vshll.u32 683565275, %v893
    %v897 = vshrl.u32 2475754826, %v894
    %v898 = vor.u32 %v896, %v897
    %v899 = vshll.u32 2475754826, %v893
    %v900 = vshrl.u32 2131351028, %v894
    %v901 = vor.u32 %v899, %v900
    %v902 = vshll.u32 2131351028, %v893
    %v903 = vshrl.u32 2102212464, %v894
    %v904 = vor.u32 %v902, %v903
    %v905 = vshll.u32 2102212464, %v893
    %v906 = vshrl.u32 920167782, %v894
    %v907 = vor.u32 %v905, %v906
    %v908 = vshll.u32 920167782, %v893
    %v909 = vshrl.u32 1326507024, %v894
    %v910 = vor.u32 %v908, %v909
    %vm911 = vcmp.lt.s32.totalorder %v892, 1
    %vm912 = vcmp.lt.s32.totalorder %v892, 2
    %vm913 = vcmp.lt.s32.totalorder %v892, 3
    %vm914 = vcmp.lt.s32.totalorder %v892, 4
    %v915 = vsel %vm911, %v895, %v898
    %v916 = vsel %vm914, %v904, 2102212464
    %v917 = vsel %vm913, %v901, %v916
    %v918 = vsel %vm912, %v915, %v917
    %v919 = vsel %vm911, %v898, %v901
    %v920 = vsel %vm914, %v907, 920167782
    %v921 = vsel %vm913, %v904, %v920
    %v922 = vsel %vm912, %v919, %v921
    %v923 = vsel %vm911, %v901, %v904
    %v924 = vsel %vm914, %v910, 1326507024
    %v925 = vsel %vm913, %v907, %v924
    %v926 = vsel %vm912, %v923, %v925
    %v927 = vshll.u32 %v887, 8
    %v928 = vand.u32 %v927, 65535
    %v929 = vshrl.u32 %v927, 16
    %v930 = vand.u32 %v926, 65535
    %v931 = vshrl.u32 %v926, 16
    %v932 = vmul.u32 %v928, %v930
    %v933 = vmul.u32 %v928, %v931
    %v934 = vmul.u32 %v929, %v930
    %v935 = vmul.u32 %v929, %v931
    %v936 = vshll.u32 %v933, 16
    %v937 = vshrl.u32 %v933, 16
    %v938 = vshll.u32 %v934, 16
    %v939 = vshrl.u32 %v934, 16
    %vm940 = vc.u32 %v932, %v936
    %v941 = vsel %vm940, 1, 0
    %v942 = vadd.s32 %v932, %v936
    %v943 = vadd.s32 %v935, %v941
    %vm944 = vc.u32 %v942, %v938
    %v945 = vsel %vm944, 1, 0
    %v946 = vadd.s32 %v942, %v938
    %v947 = vadd.s32 %v943, %v945
    %v948 = vadd.s32 %v947, %v937
    %v949 = vadd.s32 %v948, %v939
    %v950 = vand.u32 %v927, 65535
    %v951 = vshrl.u32 %v927, 16
    %v952 = vand.u32 %v922, 65535
    %v953 = vshrl.u32 %v922, 16
    %v954 = vmul.u32 %v950, %v952
    %v955 = vmul.u32 %v950, %v953
    %v956 = vmul.u32 %v951, %v952
    %v957 = vmul.u32 %v951, %v953
    %v958 = vshll.u32 %v955, 16
    %v959 = vshrl.u32 %v955, 16
    %v960 = vshll.u32 %v956, 16
    %v961 = vshrl.u32 %v956, 16
    %vm962 = vc.u32 %v954, %v958
    %v963 = vsel %vm962, 1, 0
    %v964 = vadd.s32 %v954, %v958
    %v965 = vadd.s32 %v957, %v963
    %vm966 = vc.u32 %v964, %v960
    %v967 = vsel %vm966, 1, 0
    %v968 = vadd.s32 %v964, %v960
    %v969 = vadd.s32 %v965, %v967
    %v970 = vadd.s32 %v969, %v959
    %v971 = vadd.s32 %v970, %v961
    %v972 = vmul.u32 %v927, %v918
    %v973 = vadd.s32 %v949, %v968
    %vm974 = vc.u32 %v949, %v968
    %v975 = vadd.s32 %v971, 1
    %v976 = vsel %vm974, %v975, %v971
    %v977 = vadd.s32 %v972, %v976
    %v978 = vadd.s32 %v977, 536870912
    %v979 = vshrl.u32 %v978, 30
    %v980 = vshll.u32 %v979, 30
    %v981 = vsub.s32 %v977, %v980
    %vm982 = vcmp.lt.s32.totalorder %v981, 0
    %v983 = vsub.s32 0, %v981
    %v984 = vsel %vm982, %v983, %v981
    %v985 = vclz %v984
    %v986 = vsub.s32 %v985, 2
    %vm987 = vcmp.gt.s32.totalorder 0, %v986
    %v988 = vsel %vm987, 0, %v986
    %v989 = vsub.s32 32, %v988
    %v990 = vshll.u32 %v981, %v988
    %v991 = vshrl.u32 %v973, %v989
    %v992 = vor.u32 %v990, %v991
    %v993 = vsub.s32 4294967266, %v988
    %v994 = vadd.s32 %v993, 127
    %v995 = vshll.u32 %v994, 23
    %v996 = vor.u32 4788187, %v995
    %v997 = vand.u32 2147483647, %v996
    %v999 = vcvt.s32.f32 %v992
    %v1000 = vmul.f32 %v999, %v997
    %v1001 = vxor.u32 %v1000, 2147483648
    %v1002 = vsel %vm881, %v1001, %v1000
    %v1003 = vsub.s32 4, %v979
    %v1004 = vsel %vm881, %v1003, %v979
    %v1005 = vsel %vm880, %v718, %v1002
    %v1006 = vsel %vm880, 0, %v1004
    %v1007 = vmul.f32 %v1005, %v1005
    %v1008 = vmul.f32 %v1007, -0.001358992
    %v1009 = vadd.f32 %v1008, 0.041655596
    %v1010 = vmul.f32 %v1007, %v1009
    %v1011 = vadd.f32 %v1010, -0.4999988
    %v1012 = vmul.f32 %v1007, %v1011
    %v1013 = vadd.f32 1.0, %v1012
    %v1014 = vmul.f32 %v1005, %v1005
    %v1015 = vmul.f32 %v1014, -0.00019511016
    %v1016 = vadd.f32 %v1015, 0.008332121
    %v1017 = vmul.f32 %v1014, %v1016
    %v1018 = vadd.f32 %v1017, -0.16666654
    %v1019 = vmul.f32 %v1014, %v1018
    %v1020 = vadd.f32 %v1019, 1.0
    %v1021 = vmul.f32 %v1020, %v1005
    %vm1022 = vweird.f32 %v718
    %v1023 = vand.u32 %v1006, 3
    %vm1024 = vcmp.lt.s32.totalorder %v1023, 2
    %vm1025 = vcmp.eq.s32.totalorder %v1023, 0
    %v1026 = vxor.u32 %v1021, 2147483648
    %v1027 = vsel %vm1025, %v1013, %v1026
    %vm1028 = vcmp.eq.s32.totalorder %v1023, 2
    %v1029 = vxor.u32 %v1013, 2147483648
    %v1030 = vsel %vm1028, %v1029, %v1021
    %v1031 = vsel %vm1024, %v1027, %v1030
    %v1032 = vsel %vm1022, nan, %v1031
    %v1033 = vand.u32 2147483647, %v719
    %vm1034 = vcmp.le.f32.partialorder %v1033, 0.7853982
    %vm1035 = vcmp.lt.s32.totalorder %v719, 0
    %v1036 = vand.u32 %v719, 2139095040
    %v1037 = vshrl.u32 %v1036, 23
    %v1038 = vsub.s32 %v1037, 127
    %v1039 = vand.u32 2147483647, %v719
    %v1040 = vand.u32 %v1039, 8388607
    %v1041 = vor.u32 %v1040, 8388608
    %v1042 = vsub.s32 0, %v1041
    %v1043 = vadd.s32 %v1038, 1
    %vm1044 = vcmp.gt.s32.totalorder %v1043, 0
    %v1045 = vsel %vm1044, %v1043, 0
    %v1046 = vshrl.u32 %v1045, 5
    %v1047 = vand.u32 %v1045, 31
    %v1048 = vsub.s32 32, %v1047
    %v1049 = vshrl.u32 683565275, %v1048
    %v1050 = vshll.u32 683565275, %v1047
    %v1051 = vshrl.u32 2475754826, %v1048
    %v1052 = vor.u32 %v1050, %v1051
    %v1053 = vshll.u32 2475754826, %v1047
    %v1054 = vshrl.u32 2131351028, %v1048
    %v1055 = vor.u32 %v1053, %v1054
    %v1056 = vshll.u32 2131351028, %v1047
    %v1057 = vshrl.u32 2102212464, %v1048
    %v1058 = vor.u32 %v1056, %v1057
    %v1059 = vshll.u32 2102212464, %v1047
    %v1060 = vshrl.u32 920167782, %v1048
    %v1061 = vor.u32 %v1059, %v1060
    %v1062 = vshll.u32 920167782, %v1047
    %v1063 = vshrl.u32 1326507024, %v1048
    %v1064 = vor.u32 %v1062, %v1063
    %vm1065 = vcmp.lt.s32.totalorder %v1046, 1
    %vm1066 = vcmp.lt.s32.totalorder %v1046, 2
    %vm1067 = vcmp.lt.s32.totalorder %v1046, 3
    %vm1068 = vcmp.lt.s32.totalorder %v1046, 4
    %v1069 = vsel %vm1065, %v1049, %v1052
    %v1070 = vsel %vm1068, %v1058, 2102212464
    %v1071 = vsel %vm1067, %v1055, %v1070
    %v1072 = vsel %vm1066, %v1069, %v1071
    %v1073 = vsel %vm1065, %v1052, %v1055
    %v1074 = vsel %vm1068, %v1061, 920167782
    %v1075 = vsel %vm1067, %v1058, %v1074
    %v1076 = vsel %vm1066, %v1073, %v1075
    %v1077 = vsel %vm1065, %v1055, %v1058
    %v1078 = vsel %vm1068, %v1064, 1326507024
    %v1079 = vsel %vm1067, %v1061, %v1078
    %v1080 = vsel %vm1066, %v1077, %v1079
    %v1081 = vshll.u32 %v1041, 8
    %v1082 = vand.u32 %v1081, 65535
    %v1083 = vshrl.u32 %v1081, 16
    %v1084 = vand.u32 %v1080, 65535
    %v1085 = vshrl.u32 %v1080, 16
    %v1086 = vmul.u32 %v1082, %v1084
    %v1087 = vmul.u32 %v1082, %v1085
    %v1088 = vmul.u32 %v1083, %v1084
    %v1089 = vmul.u32 %v1083, %v1085
    %v1090 = vshll.u32 %v1087, 16
    %v1091 = vshrl.u32 %v1087, 16
    %v1092 = vshll.u32 %v1088, 16
    %v1093 = vshrl.u32 %v1088, 16
    %vm1094 = vc.u32 %v1086, %v1090
    %v1095 = vsel %vm1094, 1, 0
    %v1096 = vadd.s32 %v1086, %v1090
    %v1097 = vadd.s32 %v1089, %v1095
    %vm1098 = vc.u32 %v1096, %v1092
    %v1099 = vsel %vm1098, 1, 0
    %v1100 = vadd.s32 %v1096, %v1092
    %v1101 = vadd.s32 %v1097, %v1099
    %v1102 = vadd.s32 %v1101, %v1091
    %v1103 = vadd.s32 %v1102, %v1093
    %v1104 = vand.u32 %v1081, 65535
    %v1105 = vshrl.u32 %v1081, 16
    %v1106 = vand.u32 %v1076, 65535
    %v1107 = vshrl.u32 %v1076, 16
    %v1108 = vmul.u32 %v1104, %v1106
    %v1109 = vmul.u32 %v1104, %v1107
    %v1110 = vmul.u32 %v1105, %v1106
    %v1111 = vmul.u32 %v1105, %v1107
    %v1112 = vshll.u32 %v1109, 16
    %v1113 = vshrl.u32 %v1109, 16
    %v1114 = vshll.u32 %v1110, 16
    %v1115 = vshrl.u32 %v1110, 16
    %vm1116 = vc.u32 %v1108, %v1112
    %v1117 = vsel %vm1116, 1, 0
    %v1118 = vadd.s32 %v1108, %v1112
    %v1119 = vadd.s32 %v1111, %v1117
    %vm1120 = vc.u32 %v1118, %v1114
    %v1121 = vsel %vm1120, 1, 0
    %v1122 = vadd.s32 %v1118, %v1114
    %v1123 = vadd.s32 %v1119, %v1121
    %v1124 = vadd.s32 %v1123, %v1113
    %v1125 = vadd.s32 %v1124, %v1115
    %v1126 = vmul.u32 %v1081, %v1072
    %v1127 = vadd.s32 %v1103, %v1122
    %vm1128 = vc.u32 %v1103, %v1122
    %v1129 = vadd.s32 %v1125, 1
    %v1130 = vsel %vm1128, %v1129, %v1125
    %v1131 = vadd.s32 %v1126, %v1130
    %v1132 = vadd.s32 %v1131, 536870912
    %v1133 = vshrl.u32 %v1132, 30
    %v1134 = vshll.u32 %v1133, 30
    %v1135 = vsub.s32 %v1131, %v1134
    %vm1136 = vcmp.lt.s32.totalorder %v1135, 0
    %v1137 = vsub.s32 0, %v1135
    %v1138 = vsel %vm1136, %v1137, %v1135
    %v1139 = vclz %v1138
    %v1140 = vsub.s32 %v1139, 2
    %vm1141 = vcmp.gt.s32.totalorder 0, %v1140
    %v1142 = vsel %vm1141, 0, %v1140
    %v1143 = vsub.s32 32, %v1142
    %v1144 = vshll.u32 %v1135, %v1142
    %v1145 = vshrl.u32 %v1127, %v1143
    %v1146 = vor.u32 %v1144, %v1145
    %v1147 = vsub.s32 4294967266, %v1142
    %v1148 = vadd.s32 %v1147, 127
    %v1149 = vshll.u32 %v1148, 23
    %v1150 = vor.u32 4788187, %v1149
    %v1151 = vand.u32 2147483647, %v1150
    %v1153 = vcvt.s32.f32 %v1146
    %v1154 = vmul.f32 %v1153, %v1151
    %v1155 = vxor.u32 %v1154, 2147483648
    %v1156 = vsel %vm1035, %v1155, %v1154
    %v1157 = vsub.s32 4, %v1133
    %v1158 = vsel %vm1035, %v1157, %v1133
    %v1159 = vsel %vm1034, %v719, %v1156
    %v1160 = vsel %vm1034, 0, %v1158
    %v1161 = vmul.f32 %v1159, %v1159
    %v1162 = vmul.f32 %v1161, -0.001358992
    %v1163 = vadd.f32 %v1162, 0.041655596
    %v1164 = vmul.f32 %v1161, %v1163
    %v1165 = vadd.f32 %v1164, -0.4999988
    %v1166 = vmul.f32 %v1161, %v1165
    %v1167 = vadd.f32 1.0, %v1166
    %v1168 = vmul.f32 %v1159, %v1159
    %v1169 = vmul.f32 %v1168, -0.00019511016
    %v1170 = vadd.f32 %v1169, 0.008332121
    %v1171 = vmul.f32 %v1168, %v1170
    %v1172 = vadd.f32 %v1171, -0.16666654
    %v1173 = vmul.f32 %v1168, %v1172
    %v1174 = vadd.f32 %v1173, 1.0
    %v1175 = vmul.f32 %v1174, %v1159
    %vm1176 = vweird.f32 %v719
    %v1177 = vand.u32 %v1160, 3
    %vm1178 = vcmp.lt.s32.totalorder %v1177, 2
    %vm1179 = vcmp.eq.s32.totalorder %v1177, 0
    %v1180 = vxor.u32 %v1175, 2147483648
    %v1181 = vsel %vm1179, %v1167, %v1180
    %vm1182 = vcmp.eq.s32.totalorder %v1177, 2
    %v1183 = vxor.u32 %v1167, 2147483648
    %v1184 = vsel %vm1182, %v1183, %v1175
    %v1185 = vsel %vm1178, %v1181, %v1184
    %v1186 = vsel %vm1176, nan, %v1185
    %v1187 = vand.u32 2147483647, %v720
    %vm1188 = vcmp.le.f32.partialorder %v1187, 0.7853982
    %vm1189 = vcmp.lt.s32.totalorder %v720, 0
    %v1190 = vand.u32 %v720, 2139095040
    %v1191 = vshrl.u32 %v1190, 23
    %v1192 = vsub.s32 %v1191, 127
    %v1193 = vand.u32 2147483647, %v720
    %v1194 = vand.u32 %v1193, 8388607
    %v1195 = vor.u32 %v1194, 8388608
    %v1196 = vsub.s32 0, %v1195
    %v1197 = vadd.s32 %v1192, 1
    %vm1198 = vcmp.gt.s32.totalorder %v1197, 0
    %v1199 = vsel %vm1198, %v1197, 0
    %v1200 = vshrl.u32 %v1199, 5
    %v1201 = vand.u32 %v1199, 31
    %v1202 = vsub.s32 32, %v1201
    %v1203 = vshrl.u32 683565275, %v1202
    %v1204 = vshll.u32 683565275, %v1201
    %v1205 = vshrl.u32 2475754826, %v1202
    %v1206 = vor.u32 %v1204, %v1205
    %v1207 = vshll.u32 2475754826, %v1201
    %v1208 = vshrl.u32 2131351028, %v1202
    %v1209 = vor.u32 %v1207, %v1208
    %v1210 = vshll.u32 2131351028, %v1201
    %v1211 = vshrl.u32 2102212464, %v1202
    %v1212 = vor.u32 %v1210, %v1211
    %v1213 = vshll.u32 2102212464, %v1201
    %v1214 = vshrl.u32 920167782, %v1202
    %v1215 = vor.u32 %v1213, %v1214
    %v1216 = vshll.u32 920167782, %v1201
    %v1217 = vshrl.u32 1326507024, %v1202
    %v1218 = vor.u32 %v1216, %v1217
    %vm1219 = vcmp.lt.s32.totalorder %v1200, 1
    %vm1220 = vcmp.lt.s32.totalorder %v1200, 2
    %vm1221 = vcmp.lt.s32.totalorder %v1200, 3
    %vm1222 = vcmp.lt.s32.totalorder %v1200, 4
    %v1223 = vsel %vm1219, %v1203, %v1206
    %v1224 = vsel %vm1222, %v1212, 2102212464
    %v1225 = vsel %vm1221, %v1209, %v1224
    %v1226 = vsel %vm1220, %v1223, %v1225
    %v1227 = vsel %vm1219, %v1206, %v1209
    %v1228 = vsel %vm1222, %v1215, 920167782
    %v1229 = vsel %vm1221, %v1212, %v1228
    %v1230 = vsel %vm1220, %v1227, %v1229
    %v1231 = vsel %vm1219, %v1209, %v1212
    %v1232 = vsel %vm1222, %v1218, 1326507024
    %v1233 = vsel %vm1221, %v1215, %v1232
    %v1234 = vsel %vm1220, %v1231, %v1233
    %v1235 = vshll.u32 %v1195, 8
    %v1236 = vand.u32 %v1235, 65535
    %v1237 = vshrl.u32 %v1235, 16
    %v1238 = vand.u32 %v1234, 65535
    %v1239 = vshrl.u32 %v1234, 16
    %v1240 = vmul.u32 %v1236, %v1238
    %v1241 = vmul.u32 %v1236, %v1239
    %v1242 = vmul.u32 %v1237, %v1238
    %v1243 = vmul.u32 %v1237, %v1239
    %v1244 = vshll.u32 %v1241, 16
    %v1245 = vshrl.u32 %v1241, 16
    %v1246 = vshll.u32 %v1242, 16
    %v1247 = vshrl.u32 %v1242, 16
    %vm1248 = vc.u32 %v1240, %v1244
    %v1249 = vsel %vm1248, 1, 0
    %v1250 = vadd.s32 %v1240, %v1244
    %v1251 = vadd.s32 %v1243, %v1249
    %vm1252 = vc.u32 %v1250, %v1246
    %v1253 = vsel %vm1252, 1, 0
    %v1254 = vadd.s32 %v1250, %v1246
    %v1255 = vadd.s32 %v1251, %v1253
    %v1256 = vadd.s32 %v1255, %v1245
    %v1257 = vadd.s32 %v1256, %v1247
    %v1258 = vand.u32 %v1235, 65535
    %v1259 = vshrl.u32 %v1235, 16
    %v1260 = vand.u32 %v1230, 65535
    %v1261 = vshrl.u32 %v1230, 16
    %v1262 = vmul.u32 %v1258, %v1260
    %v1263 = vmul.u32 %v1258, %v1261
    %v1264 = vmul.u32 %v1259, %v1260
    %v1265 = vmul.u32 %v1259, %v1261
    %v1266 = vshll.u32 %v1263, 16
    %v1267 = vshrl.u32 %v1263, 16
    %v1268 = vshll.u32 %v1264, 16
    %v1269 = vshrl.u32 %v1264, 16
    %vm1270 = vc.u32 %v1262, %v1266
    %v1271 = vsel %vm1270, 1, 0
    %v1272 = vadd.s32 %v1262, %v1266
    %v1273 = vadd.s32 %v1265, %v1271
    %vm1274 = vc.u32 %v1272, %v1268
    %v1275 = vsel %vm1274, 1, 0
    %v1276 = vadd.s32 %v1272, %v1268
    %v1277 = vadd.s32 %v1273, %v1275
    %v1278 = vadd.s32 %v1277, %v1267
    %v1279 = vadd.s32 %v1278, %v1269
    %v1280 = vmul.u32 %v1235, %v1226
    %v1281 = vadd.s32 %v1257, %v1276
    %vm1282 = vc.u32 %v1257, %v1276
    %v1283 = vadd.s32 %v1279, 1
    %v1284 = vsel %vm1282, %v1283, %v1279
    %v1285 = vadd.s32 %v1280, %v1284
    %v1286 = vadd.s32 %v1285, 536870912
    %v1287 = vshrl.u32 %v1286, 30
    %v1288 = vshll.u32 %v1287, 30
    %v1289 = vsub.s32 %v1285, %v1288
    %vm1290 = vcmp.lt.s32.totalorder %v1289, 0
    %v1291 = vsub.s32 0, %v1289
    %v1292 = vsel %vm1290, %v1291, %v1289
    %v1293 = vclz %v1292
    %v1294 = vsub.s32 %v1293, 2
    %vm1295 = vcmp.gt.s32.totalorder 0, %v1294
    %v1296 = vsel %vm1295, 0, %v1294
    %v1297 = vsub.s32 32, %v1296
    %v1298 = vshll.u32 %v1289, %v1296
    %v1299 = vshrl.u32 %v1281, %v1297
    %v1300 = vor.u32 %v1298, %v1299
    %v1301 = vsub.s32 4294967266, %v1296
    %v1302 = vadd.s32 %v1301, 127
    %v1303 = vshll.u32 %v1302, 23
    %v1304 = vor.u32 4788187, %v1303
    %v1305 = vand.u32 2147483647, %v1304
    %v1307 = vcvt.s32.f32 %v1300
    %v1308 = vmul.f32 %v1307, %v1305
    %v1309 = vxor.u32 %v1308, 2147483648
    %v1310 = vsel %vm1189, %v1309, %v1308
    %v1311 = vsub.s32 4, %v1287
    %v1312 = vsel %vm1189, %v1311, %v1287
    %v1313 = vsel %vm1188, %v720, %v1310
    %v1314 = vsel %vm1188, 0, %v1312
    %v1315 = vmul.f32 %v1313, %v1313
    %v1316 = vmul.f32 %v1315, -0.001358992
    %v1317 = vadd.f32 %v1316, 0.041655596
    %v1318 = vmul.f32 %v1315, %v1317
    %v1319 = vadd.f32 %v1318, -0.4999988
    %v1320 = vmul.f32 %v1315, %v1319
    %v1321 = vadd.f32 1.0, %v1320
    %v1322 = vmul.f32 %v1313, %v1313
    %v1323 = vmul.f32 %v1322, -0.00019511016
    %v1324 = vadd.f32 %v1323, 0.008332121
    %v1325 = vmul.f32 %v1322, %v1324
    %v1326 = vadd.f32 %v1325, -0.16666654
    %v1327 = vmul.f32 %v1322, %v1326
    %v1328 = vadd.f32 %v1327, 1.0
    %v1329 = vmul.f32 %v1328, %v1313
    %vm1330 = vweird.f32 %v720
    %v1331 = vand.u32 %v1314, 3
    %vm1332 = vcmp.lt.s32.totalorder %v1331, 2
    %vm1333 = vcmp.eq.s32.totalorder %v1331, 0
    %v1334 = vxor.u32 %v1329, 2147483648
    %v1335 = vsel %vm1333, %v1321, %v1334
    %vm1336 = vcmp.eq.s32.totalorder %v1331, 2
    %v1337 = vxor.u32 %v1321, 2147483648
    %v1338 = vsel %vm1336, %v1337, %v1329
    %v1339 = vsel %vm1332, %v1335, %v1338
    %v1340 = vsel %vm1330, nan, %v1339
    %v1341 = vand.u32 2147483647, %v721
    %vm1342 = vcmp.le.f32.partialorder %v1341, 0.7853982
    %vm1343 = vcmp.lt.s32.totalorder %v721, 0
    %v1344 = vand.u32 %v721, 2139095040
    %v1345 = vshrl.u32 %v1344, 23
    %v1346 = vsub.s32 %v1345, 127
    %v1347 = vand.u32 2147483647, %v721
    %v1348 = vand.u32 %v1347, 8388607
    %v1349 = vor.u32 %v1348, 8388608
    %v1350 = vsub.s32 0, %v1349
    %v1351 = vadd.s32 %v1346, 1
    %vm1352 = vcmp.gt.s32.totalorder %v1351, 0
    %v1353 = vsel %vm1352, %v1351, 0
    %v1354 = vshrl.u32 %v1353, 5
    %v1355 = vand.u32 %v1353, 31
    %v1356 = vsub.s32 32, %v1355
    %v1357 = vshrl.u32 683565275, %v1356
    %v1358 = vshll.u32 683565275, %v1355
    %v1359 = vshrl.u32 2475754826, %v1356
    %v1360 = vor.u32 %v1358, %v1359
    %v1361 = vshll.u32 2475754826, %v1355
    %v1362 = vshrl.u32 2131351028, %v1356
    %v1363 = vor.u32 %v1361, %v1362
    %v1364 = vshll.u32 2131351028, %v1355
    %v1365 = vshrl.u32 2102212464, %v1356
    %v1366 = vor.u32 %v1364, %v1365
    %v1367 = vshll.u32 2102212464, %v1355
    %v1368 = vshrl.u32 920167782, %v1356
    %v1369 = vor.u32 %v1367, %v1368
    %v1370 = vshll.u32 920167782, %v1355
    %v1371 = vshrl.u32 1326507024, %v1356
    %v1372 = vor.u32 %v1370, %v1371
    %vm1373 = vcmp.lt.s32.totalorder %v1354, 1
    %vm1374 = vcmp.lt.s32.totalorder %v1354, 2
    %vm1375 = vcmp.lt.s32.totalorder %v1354, 3
    %vm1376 = vcmp.lt.s32.totalorder %v1354, 4
    %v1377 = vsel %vm1373, %v1357, %v1360
    %v1378 = vsel %vm1376, %v1366, 2102212464
    %v1379 = vsel %vm1375, %v1363, %v1378
    %v1380 = vsel %vm1374, %v1377, %v1379
    %v1381 = vsel %vm1373, %v1360, %v1363
    %v1382 = vsel %vm1376, %v1369, 920167782
    %v1383 = vsel %vm1375, %v1366, %v1382
    %v1384 = vsel %vm1374, %v1381, %v1383
    %v1385 = vsel %vm1373, %v1363, %v1366
    %v1386 = vsel %vm1376, %v1372, 1326507024
    %v1387 = vsel %vm1375, %v1369, %v1386
    %v1388 = vsel %vm1374, %v1385, %v1387
    %v1389 = vshll.u32 %v1349, 8
    %v1390 = vand.u32 %v1389, 65535
    %v1391 = vshrl.u32 %v1389, 16
    %v1392 = vand.u32 %v1388, 65535
    %v1393 = vshrl.u32 %v1388, 16
    %v1394 = vmul.u32 %v1390, %v1392
    %v1395 = vmul.u32 %v1390, %v1393
    %v1396 = vmul.u32 %v1391, %v1392
    %v1397 = vmul.u32 %v1391, %v1393
    %v1398 = vshll.u32 %v1395, 16
    %v1399 = vshrl.u32 %v1395, 16
    %v1400 = vshll.u32 %v1396, 16
    %v1401 = vshrl.u32 %v1396, 16
    %vm1402 = vc.u32 %v1394, %v1398
    %v1403 = vsel %vm1402, 1, 0
    %v1404 = vadd.s32 %v1394, %v1398
    %v1405 = vadd.s32 %v1397, %v1403
    %vm1406 = vc.u32 %v1404, %v1400
    %v1407 = vsel %vm1406, 1, 0
    %v1408 = vadd.s32 %v1404, %v1400
    %v1409 = vadd.s32 %v1405, %v1407
    %v1410 = vadd.s32 %v1409, %v1399
    %v1411 = vadd.s32 %v1410, %v1401
    %v1412 = vand.u32 %v1389, 65535
    %v1413 = vshrl.u32 %v1389, 16
    %v1414 = vand.u32 %v1384, 65535
    %v1415 = vshrl.u32 %v1384, 16
    %v1416 = vmul.u32 %v1412, %v1414
    %v1417 = vmul.u32 %v1412, %v1415
    %v1418 = vmul.u32 %v1413, %v1414
    %v1419 = vmul.u32 %v1413, %v1415
    %v1420 = vshll.u32 %v1417, 16
    %v1421 = vshrl.u32 %v1417, 16
    %v1422 = vshll.u32 %v1418, 16
    %v1423 = vshrl.u32 %v1418, 16
    %vm1424 = vc.u32 %v1416, %v1420
    %v1425 = vsel %vm1424, 1, 0
    %v1426 = vadd.s32 %v1416, %v1420
    %v1427 = vadd.s32 %v1419, %v1425
    %vm1428 = vc.u32 %v1426, %v1422
    %v1429 = vsel %vm1428, 1, 0
    %v1430 = vadd.s32 %v1426, %v1422
    %v1431 = vadd.s32 %v1427, %v1429
    %v1432 = vadd.s32 %v1431, %v1421
    %v1433 = vadd.s32 %v1432, %v1423
    %v1434 = vmul.u32 %v1389, %v1380
    %v1435 = vadd.s32 %v1411, %v1430
    %vm1436 = vc.u32 %v1411, %v1430
    %v1437 = vadd.s32 %v1433, 1
    %v1438 = vsel %vm1436, %v1437, %v1433
    %v1439 = vadd.s32 %v1434, %v1438
    %v1440 = vadd.s32 %v1439, 536870912
    %v1441 = vshrl.u32 %v1440, 30
    %v1442 = vshll.u32 %v1441, 30
    %v1443 = vsub.s32 %v1439, %v1442
    %vm1444 = vcmp.lt.s32.totalorder %v1443, 0
    %v1445 = vsub.s32 0, %v1443
    %v1446 = vsel %vm1444, %v1445, %v1443
    %v1447 = vclz %v1446
    %v1448 = vsub.s32 %v1447, 2
    %vm1449 = vcmp.gt.s32.totalorder 0, %v1448
    %v1450 = vsel %vm1449, 0, %v1448
    %v1451 = vsub.s32 32, %v1450
    %v1452 = vshll.u32 %v1443, %v1450
    %v1453 = vshrl.u32 %v1435, %v1451
    %v1454 = vor.u32 %v1452, %v1453
    %v1455 = vsub.s32 4294967266, %v1450
    %v1456 = vadd.s32 %v1455, 127
    %v1457 = vshll.u32 %v1456, 23
    %v1458 = vor.u32 4788187, %v1457
    %v1459 = vand.u32 2147483647, %v1458
    %v1461 = vcvt.s32.f32 %v1454
    %v1462 = vmul.f32 %v1461, %v1459
    %v1463 = vxor.u32 %v1462, 2147483648
    %v1464 = vsel %vm1343, %v1463, %v1462
    %v1465 = vsub.s32 4, %v1441
    %v1466 = vsel %vm1343, %v1465, %v1441
    %v1467 = vsel %vm1342, %v721, %v1464
    %v1468 = vsel %vm1342, 0, %v1466
    %v1469 = vmul.f32 %v1467, %v1467
    %v1470 = vmul.f32 %v1469, -0.001358992
    %v1471 = vadd.f32 %v1470, 0.041655596
    %v1472 = vmul.f32 %v1469, %v1471
    %v1473 = vadd.f32 %v1472, -0.4999988
    %v1474 = vmul.f32 %v1469, %v1473
    %v1475 = vadd.f32 1.0, %v1474
    %v1476 = vmul.f32 %v1467, %v1467
    %v1477 = vmul.f32 %v1476, -0.00019511016
    %v1478 = vadd.f32 %v1477, 0.008332121
    %v1479 = vmul.f32 %v1476, %v1478
    %v1480 = vadd.f32 %v1479, -0.16666654
    %v1481 = vmul.f32 %v1476, %v1480
    %v1482 = vadd.f32 %v1481, 1.0
    %v1483 = vmul.f32 %v1482, %v1467
    %vm1484 = vweird.f32 %v721
    %v1485 = vand.u32 %v1468, 3
    %vm1486 = vcmp.lt.s32.totalorder %v1485, 2
    %vm1487 = vcmp.eq.s32.totalorder %v1485, 0
    %v1488 = vxor.u32 %v1483, 2147483648
    %v1489 = vsel %vm1487, %v1475, %v1488
    %vm1490 = vcmp.eq.s32.totalorder %v1485, 2
    %v1491 = vxor.u32 %v1475, 2147483648
    %v1492 = vsel %vm1490, %v1491, %v1483
    %v1493 = vsel %vm1486, %v1489, %v1492
    %v1494 = vsel %vm1484, nan, %v1493
    %v1495 = vand.u32 2147483647, %v722
    %vm1496 = vcmp.le.f32.partialorder %v1495, 0.7853982
    %vm1497 = vcmp.lt.s32.totalorder %v722, 0
    %v1498 = vand.u32 %v722, 2139095040
    %v1499 = vshrl.u32 %v1498, 23
    %v1500 = vsub.s32 %v1499, 127
    %v1501 = vand.u32 2147483647, %v722
    %v1502 = vand.u32 %v1501, 8388607
    %v1503 = vor.u32 %v1502, 8388608
    %v1504 = vsub.s32 0, %v1503
    %v1505 = vadd.s32 %v1500, 1
    %vm1506 = vcmp.gt.s32.totalorder %v1505, 0
    %v1507 = vsel %vm1506, %v1505, 0
    %v1508 = vshrl.u32 %v1507, 5
    %v1509 = vand.u32 %v1507, 31
    %v1510 = vsub.s32 32, %v1509
    %v1511 = vshrl.u32 683565275, %v1510
    %v1512 = vshll.u32 683565275, %v1509
    %v1513 = vshrl.u32 2475754826, %v1510
    %v1514 = vor.u32 %v1512, %v1513
    %v1515 = vshll.u32 2475754826, %v1509
    %v1516 = vshrl.u32 2131351028, %v1510
    %v1517 = vor.u32 %v1515, %v1516
    %v1518 = vshll.u32 2131351028, %v1509
    %v1519 = vshrl.u32 2102212464, %v1510
    %v1520 = vor.u32 %v1518, %v1519
    %v1521 = vshll.u32 2102212464, %v1509
    %v1522 = vshrl.u32 920167782, %v1510
    %v1523 = vor.u32 %v1521, %v1522
    %v1524 = vshll.u32 920167782, %v1509
    %v1525 = vshrl.u32 1326507024, %v1510
    %v1526 = vor.u32 %v1524, %v1525
    %vm1527 = vcmp.lt.s32.totalorder %v1508, 1
    %vm1528 = vcmp.lt.s32.totalorder %v1508, 2
    %vm1529 = vcmp.lt.s32.totalorder %v1508, 3
    %vm1530 = vcmp.lt.s32.totalorder %v1508, 4
    %v1531 = vsel %vm1527, %v1511, %v1514
    %v1532 = vsel %vm1530, %v1520, 2102212464
    %v1533 = vsel %vm1529, %v1517, %v1532
    %v1534 = vsel %vm1528, %v1531, %v1533
    %v1535 = vsel %vm1527, %v1514, %v1517
    %v1536 = vsel %vm1530, %v1523, 920167782
    %v1537 = vsel %vm1529, %v1520, %v1536
    %v1538 = vsel %vm1528, %v1535, %v1537
    %v1539 = vsel %vm1527, %v1517, %v1520
    %v1540 = vsel %vm1530, %v1526, 1326507024
    %v1541 = vsel %vm1529, %v1523, %v1540
    %v1542 = vsel %vm1528, %v1539, %v1541
    %v1543 = vshll.u32 %v1503, 8
    %v1544 = vand.u32 %v1543, 65535
    %v1545 = vshrl.u32 %v1543, 16
    %v1546 = vand.u32 %v1542, 65535
    %v1547 = vshrl.u32 %v1542, 16
    %v1548 = vmul.u32 %v1544, %v1546
    %v1549 = vmul.u32 %v1544, %v1547
    %v1550 = vmul.u32 %v1545, %v1546
    %v1551 = vmul.u32 %v1545, %v1547
    %v1552 = vshll.u32 %v1549, 16
    %v1553 = vshrl.u32 %v1549, 16
    %v1554 = vshll.u32 %v1550, 16
    %v1555 = vshrl.u32 %v1550, 16
    %vm1556 = vc.u32 %v1548, %v1552
    %v1557 = vsel %vm1556, 1, 0
    %v1558 = vadd.s32 %v1548, %v1552
    %v1559 = vadd.s32 %v1551, %v1557
    %vm1560 = vc.u32 %v1558, %v1554
    %v1561 = vsel %vm1560, 1, 0
    %v1562 = vadd.s32 %v1558, %v1554
    %v1563 = vadd.s32 %v1559, %v1561
    %v1564 = vadd.s32 %v1563, %v1553
    %v1565 = vadd.s32 %v1564, %v1555
    %v1566 = vand.u32 %v1543, 65535
    %v1567 = vshrl.u32 %v1543, 16
    %v1568 = vand.u32 %v1538, 65535
    %v1569 = vshrl.u32 %v1538, 16
    %v1570 = vmul.u32 %v1566, %v1568
    %v1571 = vmul.u32 %v1566, %v1569
    %v1572 = vmul.u32 %v1567, %v1568
    %v1573 = vmul.u32 %v1567, %v1569
    %v1574 = vshll.u32 %v1571, 16
    %v1575 = vshrl.u32 %v1571, 16
    %v1576 = vshll.u32 %v1572, 16
    %v1577 = vshrl.u32 %v1572, 16
    %vm1578 = vc.u32 %v1570, %v1574
    %v1579 = vsel %vm1578, 1, 0
    %v1580 = vadd.s32 %v1570, %v1574
    %v1581 = vadd.s32 %v1573, %v1579
    %vm1582 = vc.u32 %v1580, %v1576
    %v1583 = vsel %vm1582, 1, 0
    %v1584 = vadd.s32 %v1580, %v1576
    %v1585 = vadd.s32 %v1581, %v1583
    %v1586 = vadd.s32 %v1585, %v1575
    %v1587 = vadd.s32 %v1586, %v1577
    %v1588 = vmul.u32 %v1543, %v1534
    %v1589 = vadd.s32 %v1565, %v1584
    %vm1590 = vc.u32 %v1565, %v1584
    %v1591 = vadd.s32 %v1587, 1
    %v1592 = vsel %vm1590, %v1591, %v1587
    %v1593 = vadd.s32 %v1588, %v1592
    %v1594 = vadd.s32 %v1593, 536870912
    %v1595 = vshrl.u32 %v1594, 30
    %v1596 = vshll.u32 %v1595, 30
    %v1597 = vsub.s32 %v1593, %v1596
    %vm1598 = vcmp.lt.s32.totalorder %v1597, 0
    %v1599 = vsub.s32 0, %v1597
    %v1600 = vsel %vm1598, %v1599, %v1597
    %v1601 = vclz %v1600
    %v1602 = vsub.s32 %v1601, 2
    %vm1603 = vcmp.gt.s32.totalorder 0, %v1602
    %v1604 = vsel %vm1603, 0, %v1602
    %v1605 = vsub.s32 32, %v1604
    %v1606 = vshll.u32 %v1597, %v1604
    %v1607 = vshrl.u32 %v1589, %v1605
    %v1608 = vor.u32 %v1606, %v1607
    %v1609 = vsub.s32 4294967266, %v1604
    %v1610 = vadd.s32 %v1609, 127
    %v1611 = vshll.u32 %v1610, 23
    %v1612 = vor.u32 4788187, %v1611
    %v1613 = vand.u32 2147483647, %v1612
    %v1615 = vcvt.s32.f32 %v1608
    %v1616 = vmul.f32 %v1615, %v1613
    %v1617 = vxor.u32 %v1616, 2147483648
    %v1618 = vsel %vm1497, %v1617, %v1616
    %v1619 = vsub.s32 4, %v1595
    %v1620 = vsel %vm1497, %v1619, %v1595
    %v1621 = vsel %vm1496, %v722, %v1618
    %v1622 = vsel %vm1496, 0, %v1620
    %v1623 = vmul.f32 %v1621, %v1621
    %v1624 = vmul.f32 %v1623, -0.001358992
    %v1625 = vadd.f32 %v1624, 0.041655596
    %v1626 = vmul.f32 %v1623, %v1625
    %v1627 = vadd.f32 %v1626, -0.4999988
    %v1628 = vmul.f32 %v1623, %v1627
    %v1629 = vadd.f32 1.0, %v1628
    %v1630 = vmul.f32 %v1621, %v1621
    %v1631 = vmul.f32 %v1630, -0.00019511016
    %v1632 = vadd.f32 %v1631, 0.008332121
    %v1633 = vmul.f32 %v1630, %v1632
    %v1634 = vadd.f32 %v1633, -0.16666654
    %v1635 = vmul.f32 %v1630, %v1634
    %v1636 = vadd.f32 %v1635, 1.0
    %v1637 = vmul.f32 %v1636, %v1621
    %vm1638 = vweird.f32 %v722
    %v1639 = vand.u32 %v1622, 3
    %vm1640 = vcmp.lt.s32.totalorder %v1639, 2
    %vm1641 = vcmp.eq.s32.totalorder %v1639, 0
    %v1642 = vxor.u32 %v1637, 2147483648
    %v1643 = vsel %vm1641, %v1629, %v1642
    %vm1644 = vcmp.eq.s32.totalorder %v1639, 2
    %v1645 = vxor.u32 %v1629, 2147483648
    %v1646 = vsel %vm1644, %v1645, %v1637
    %v1647 = vsel %vm1640, %v1643, %v1646
    %v1648 = vsel %vm1638, nan, %v1647
    %v1649 = vand.u32 2147483647, %v723
    %vm1650 = vcmp.le.f32.partialorder %v1649, 0.7853982
    %vm1651 = vcmp.lt.s32.totalorder %v723, 0
    %v1652 = vand.u32 %v723, 2139095040
    %v1653 = vshrl.u32 %v1652, 23
    %v1654 = vsub.s32 %v1653, 127
    %v1655 = vand.u32 2147483647, %v723
    %v1656 = vand.u32 %v1655, 8388607
    %v1657 = vor.u32 %v1656, 8388608
    %v1658 = vsub.s32 0, %v1657
    %v1659 = vadd.s32 %v1654, 1
    %vm1660 = vcmp.gt.s32.totalorder %v1659, 0
    %v1661 = vsel %vm1660, %v1659, 0
    %v1662 = vshrl.u32 %v1661, 5
    %v1663 = vand.u32 %v1661, 31
    %v1664 = vsub.s32 32, %v1663
    %v1665 = vshrl.u32 683565275, %v1664
    %v1666 = vshll.u32 683565275, %v1663
    %v1667 = vshrl.u32 2475754826, %v1664
    %v1668 = vor.u32 %v1666, %v1667
    %v1669 = vshll.u32 2475754826, %v1663
    %v1670 = vshrl.u32 2131351028, %v1664
    %v1671 = vor.u32 %v1669, %v1670
    %v1672 = vshll.u32 2131351028, %v1663
    %v1673 = vshrl.u32 2102212464, %v1664
    %v1674 = vor.u32 %v1672, %v1673
    %v1675 = vshll.u32 2102212464, %v1663
    %v1676 = vshrl.u32 920167782, %v1664
    %v1677 = vor.u32 %v1675, %v1676
    %v1678 = vshll.u32 920167782, %v1663
    %v1679 = vshrl.u32 1326507024, %v1664
    %v1680 = vor.u32 %v1678, %v1679
    %vm1681 = vcmp.lt.s32.totalorder %v1662, 1
    %vm1682 = vcmp.lt.s32.totalorder %v1662, 2
    %vm1683 = vcmp.lt.s32.totalorder %v1662, 3
    %vm1684 = vcmp.lt.s32.totalorder %v1662, 4
    %v1685 = vsel %vm1681, %v1665, %v1668
    %v1686 = vsel %vm1684, %v1674, 2102212464
    %v1687 = vsel %vm1683, %v1671, %v1686
    %v1688 = vsel %vm1682, %v1685, %v1687
    %v1689 = vsel %vm1681, %v1668, %v1671
    %v1690 = vsel %vm1684, %v1677, 920167782
    %v1691 = vsel %vm1683, %v1674, %v1690
    %v1692 = vsel %vm1682, %v1689, %v1691
    %v1693 = vsel %vm1681, %v1671, %v1674
    %v1694 = vsel %vm1684, %v1680, 1326507024
    %v1695 = vsel %vm1683, %v1677, %v1694
    %v1696 = vsel %vm1682, %v1693, %v1695
    %v1697 = vshll.u32 %v1657, 8
    %v1698 = vand.u32 %v1697, 65535
    %v1699 = vshrl.u32 %v1697, 16
    %v1700 = vand.u32 %v1696, 65535
    %v1701 = vshrl.u32 %v1696, 16
    %v1702 = vmul.u32 %v1698, %v1700
    %v1703 = vmul.u32 %v1698, %v1701
    %v1704 = vmul.u32 %v1699, %v1700
    %v1705 = vmul.u32 %v1699, %v1701
    %v1706 = vshll.u32 %v1703, 16
    %v1707 = vshrl.u32 %v1703, 16
    %v1708 = vshll.u32 %v1704, 16
    %v1709 = vshrl.u32 %v1704, 16
    %vm1710 = vc.u32 %v1702, %v1706
    %v1711 = vsel %vm1710, 1, 0
    %v1712 = vadd.s32 %v1702, %v1706
    %v1713 = vadd.s32 %v1705, %v1711
    %vm1714 = vc.u32 %v1712, %v1708
    %v1715 = vsel %vm1714, 1, 0
    %v1716 = vadd.s32 %v1712, %v1708
    %v1717 = vadd.s32 %v1713, %v1715
    %v1718 = vadd.s32 %v1717, %v1707
    %v1719 = vadd.s32 %v1718, %v1709
    %v1720 = vand.u32 %v1697, 65535
    %v1721 = vshrl.u32 %v1697, 16
    %v1722 = vand.u32 %v1692, 65535
    %v1723 = vshrl.u32 %v1692, 16
    %v1724 = vmul.u32 %v1720, %v1722
    %v1725 = vmul.u32 %v1720, %v1723
    %v1726 = vmul.u32 %v1721, %v1722
    %v1727 = vmul.u32 %v1721, %v1723
    %v1728 = vshll.u32 %v1725, 16
    %v1729 = vshrl.u32 %v1725, 16
    %v1730 = vshll.u32 %v1726, 16
    %v1731 = vshrl.u32 %v1726, 16
    %vm1732 = vc.u32 %v1724, %v1728
    %v1733 = vsel %vm1732, 1, 0
    %v1734 = vadd.s32 %v1724, %v1728
    %v1735 = vadd.s32 %v1727, %v1733
    %vm1736 = vc.u32 %v1734, %v1730
    %v1737 = vsel %vm1736, 1, 0
    %v1738 = vadd.s32 %v1734, %v1730
    %v1739 = vadd.s32 %v1735, %v1737
    %v1740 = vadd.s32 %v1739, %v1729
    %v1741 = vadd.s32 %v1740, %v1731
    %v1742 = vmul.u32 %v1697, %v1688
    %v1743 = vadd.s32 %v1719, %v1738
    %vm1744 = vc.u32 %v1719, %v1738
    %v1745 = vadd.s32 %v1741, 1
    %v1746 = vsel %vm1744, %v1745, %v1741
    %v1747 = vadd.s32 %v1742, %v1746
    %v1748 = vadd.s32 %v1747, 536870912
    %v1749 = vshrl.u32 %v1748, 30
    %v1750 = vshll.u32 %v1749, 30
    %v1751 = vsub.s32 %v1747, %v1750
    %vm1752 = vcmp.lt.s32.totalorder %v1751, 0
    %v1753 = vsub.s32 0, %v1751
    %v1754 = vsel %vm1752, %v1753, %v1751
    %v1755 = vclz %v1754
    %v1756 = vsub.s32 %v1755, 2
    %vm1757 = vcmp.gt.s32.totalorder 0, %v1756
    %v1758 = vsel %vm1757, 0, %v1756
    %v1759 = vsub.s32 32, %v1758
    %v1760 = vshll.u32 %v1751, %v1758
    %v1761 = vshrl.u32 %v1743, %v1759
    %v1762 = vor.u32 %v1760, %v1761
    %v1763 = vsub.s32 4294967266, %v1758
    %v1764 = vadd.s32 %v1763, 127
    %v1765 = vshll.u32 %v1764, 23
    %v1766 = vor.u32 4788187, %v1765
    %v1767 = vand.u32 2147483647, %v1766
    %v1769 = vcvt.s32.f32 %v1762
    %v1770 = vmul.f32 %v1769, %v1767
    %v1771 = vxor.u32 %v1770, 2147483648
    %v1772 = vsel %vm1651, %v1771, %v1770
    %v1773 = vsub.s32 4, %v1749
    %v1774 = vsel %vm1651, %v1773, %v1749
    %v1775 = vsel %vm1650, %v723, %v1772
    %v1776 = vsel %vm1650, 0, %v1774
    %v1777 = vmul.f32 %v1775, %v1775
    %v1778 = vmul.f32 %v1777, -0.001358992
    %v1779 = vadd.f32 %v1778, 0.041655596
    %v1780 = vmul.f32 %v1777, %v1779
    %v1781 = vadd.f32 %v1780, -0.4999988
    %v1782 = vmul.f32 %v1777, %v1781
    %v1783 = vadd.f32 1.0, %v1782
    %v1784 = vmul.f32 %v1775, %v1775
    %v1785 = vmul.f32 %v1784, -0.00019511016
    %v1786 = vadd.f32 %v1785, 0.008332121
    %v1787 = vmul.f32 %v1784, %v1786
    %v1788 = vadd.f32 %v1787, -0.16666654
    %v1789 = vmul.f32 %v1784, %v1788
    %v1790 = vadd.f32 %v1789, 1.0
    %v1791 = vmul.f32 %v1790, %v1775
    %vm1792 = vweird.f32 %v723
    %v1793 = vand.u32 %v1776, 3
    %vm1794 = vcmp.lt.s32.totalorder %v1793, 2
    %vm1795 = vcmp.eq.s32.totalorder %v1793, 0
    %v1796 = vxor.u32 %v1791, 2147483648
    %v1797 = vsel %vm1795, %v1783, %v1796
    %vm1798 = vcmp.eq.s32.totalorder %v1793, 2
    %v1799 = vxor.u32 %v1783, 2147483648
    %v1800 = vsel %vm1798, %v1799, %v1791
    %v1801 = vsel %vm1794, %v1797, %v1800
    %v1802 = vsel %vm1792, nan, %v1801
    %v1803 = vand.u32 2147483647, %v724
    %vm1804 = vcmp.le.f32.partialorder %v1803, 0.7853982
    %vm1805 = vcmp.lt.s32.totalorder %v724, 0
    %v1806 = vand.u32 %v724, 2139095040
    %v1807 = vshrl.u32 %v1806, 23
    %v1808 = vsub.s32 %v1807, 127
    %v1809 = vand.u32 2147483647, %v724
    %v1810 = vand.u32 %v1809, 8388607
    %v1811 = vor.u32 %v1810, 8388608
    %v1812 = vsub.s32 0, %v1811
    %v1813 = vadd.s32 %v1808, 1
    %vm1814 = vcmp.gt.s32.totalorder %v1813, 0
    %v1815 = vsel %vm1814, %v1813, 0
    %v1816 = vshrl.u32 %v1815, 5
    %v1817 = vand.u32 %v1815, 31
    %v1818 = vsub.s32 32, %v1817
    %v1819 = vshrl.u32 683565275, %v1818
    %v1820 = vshll.u32 683565275, %v1817
    %v1821 = vshrl.u32 2475754826, %v1818
    %v1822 = vor.u32 %v1820, %v1821
    %v1823 = vshll.u32 2475754826, %v1817
    %v1824 = vshrl.u32 2131351028, %v1818
    %v1825 = vor.u32 %v1823, %v1824
    %v1826 = vshll.u32 2131351028, %v1817
    %v1827 = vshrl.u32 2102212464, %v1818
    %v1828 = vor.u32 %v1826, %v1827
    %v1829 = vshll.u32 2102212464, %v1817
    %v1830 = vshrl.u32 920167782, %v1818
    %v1831 = vor.u32 %v1829, %v1830
    %v1832 = vshll.u32 920167782, %v1817
    %v1833 = vshrl.u32 1326507024, %v1818
    %v1834 = vor.u32 %v1832, %v1833
    %vm1835 = vcmp.lt.s32.totalorder %v1816, 1
    %vm1836 = vcmp.lt.s32.totalorder %v1816, 2
    %vm1837 = vcmp.lt.s32.totalorder %v1816, 3
    %vm1838 = vcmp.lt.s32.totalorder %v1816, 4
    %v1839 = vsel %vm1835, %v1819, %v1822
    %v1840 = vsel %vm1838, %v1828, 2102212464
    %v1841 = vsel %vm1837, %v1825, %v1840
    %v1842 = vsel %vm1836, %v1839, %v1841
    %v1843 = vsel %vm1835, %v1822, %v1825
    %v1844 = vsel %vm1838, %v1831, 920167782
    %v1845 = vsel %vm1837, %v1828, %v1844
    %v1846 = vsel %vm1836, %v1843, %v1845
    %v1847 = vsel %vm1835, %v1825, %v1828
    %v1848 = vsel %vm1838, %v1834, 1326507024
    %v1849 = vsel %vm1837, %v1831, %v1848
    %v1850 = vsel %vm1836, %v1847, %v1849
    %v1851 = vshll.u32 %v1811, 8
    %v1852 = vand.u32 %v1851, 65535
    %v1853 = vshrl.u32 %v1851, 16
    %v1854 = vand.u32 %v1850, 65535
    %v1855 = vshrl.u32 %v1850, 16
    %v1856 = vmul.u32 %v1852, %v1854
    %v1857 = vmul.u32 %v1852, %v1855
    %v1858 = vmul.u32 %v1853, %v1854
    %v1859 = vmul.u32 %v1853, %v1855
    %v1860 = vshll.u32 %v1857, 16
    %v1861 = vshrl.u32 %v1857, 16
    %v1862 = vshll.u32 %v1858, 16
    %v1863 = vshrl.u32 %v1858, 16
    %vm1864 = vc.u32 %v1856, %v1860
    %v1865 = vsel %vm1864, 1, 0
    %v1866 = vadd.s32 %v1856, %v1860
    %v1867 = vadd.s32 %v1859, %v1865
    %vm1868 = vc.u32 %v1866, %v1862
    %v1869 = vsel %vm1868, 1, 0
    %v1870 = vadd.s32 %v1866, %v1862
    %v1871 = vadd.s32 %v1867, %v1869
    %v1872 = vadd.s32 %v1871, %v1861
    %v1873 = vadd.s32 %v1872, %v1863
    %v1874 = vand.u32 %v1851, 65535
    %v1875 = vshrl.u32 %v1851, 16
    %v1876 = vand.u32 %v1846, 65535
    %v1877 = vshrl.u32 %v1846, 16
    %v1878 = vmul.u32 %v1874, %v1876
    %v1879 = vmul.u32 %v1874, %v1877
    %v1880 = vmul.u32 %v1875, %v1876
    %v1881 = vmul.u32 %v1875, %v1877
    %v1882 = vshll.u32 %v1879, 16
    %v1883 = vshrl.u32 %v1879, 16
    %v1884 = vshll.u32 %v1880, 16
    %v1885 = vshrl.u32 %v1880, 16
    %vm1886 = vc.u32 %v1878, %v1882
    %v1887 = vsel %vm1886, 1, 0
    %v1888 = vadd.s32 %v1878, %v1882
    %v1889 = vadd.s32 %v1881, %v1887
    %vm1890 = vc.u32 %v1888, %v1884
    %v1891 = vsel %vm1890, 1, 0
    %v1892 = vadd.s32 %v1888, %v1884
    %v1893 = vadd.s32 %v1889, %v1891
    %v1894 = vadd.s32 %v1893, %v1883
    %v1895 = vadd.s32 %v1894, %v1885
    %v1896 = vmul.u32 %v1851, %v1842
    %v1897 = vadd.s32 %v1873, %v1892
    %vm1898 = vc.u32 %v1873, %v1892
    %v1899 = vadd.s32 %v1895, 1
    %v1900 = vsel %vm1898, %v1899, %v1895
    %v1901 = vadd.s32 %v1896, %v1900
    %v1902 = vadd.s32 %v1901, 536870912
    %v1903 = vshrl.u32 %v1902, 30
    %v1904 = vshll.u32 %v1903, 30
    %v1905 = vsub.s32 %v1901, %v1904
    %vm1906 = vcmp.lt.s32.totalorder %v1905, 0
    %v1907 = vsub.s32 0, %v1905
    %v1908 = vsel %vm1906, %v1907, %v1905
    %v1909 = vclz %v1908
    %v1910 = vsub.s32 %v1909, 2
    %vm1911 = vcmp.gt.s32.totalorder 0, %v1910
    %v1912 = vsel %vm1911, 0, %v1910
    %v1913 = vsub.s32 32, %v1912
    %v1914 = vshll.u32 %v1905, %v1912
    %v1915 = vshrl.u32 %v1897, %v1913
    %v1916 = vor.u32 %v1914, %v1915
    %v1917 = vsub.s32 4294967266, %v1912
    %v1918 = vadd.s32 %v1917, 127
    %v1919 = vshll.u32 %v1918, 23
    %v1920 = vor.u32 4788187, %v1919
    %v1921 = vand.u32 2147483647, %v1920
    %v1923 = vcvt.s32.f32 %v1916
    %v1924 = vmul.f32 %v1923, %v1921
    %v1925 = vxor.u32 %v1924, 2147483648
    %v1926 = vsel %vm1805, %v1925, %v1924
    %v1927 = vsub.s32 4, %v1903
    %v1928 = vsel %vm1805, %v1927, %v1903
    %v1929 = vsel %vm1804, %v724, %v1926
    %v1930 = vsel %vm1804, 0, %v1928
    %v1931 = vmul.f32 %v1929, %v1929
    %v1932 = vmul.f32 %v1931, -0.001358992
    %v1933 = vadd.f32 %v1932, 0.041655596
    %v1934 = vmul.f32 %v1931, %v1933
    %v1935 = vadd.f32 %v1934, -0.4999988
    %v1936 = vmul.f32 %v1931, %v1935
    %v1937 = vadd.f32 1.0, %v1936
    %v1938 = vmul.f32 %v1929, %v1929
    %v1939 = vmul.f32 %v1938, -0.00019511016
    %v1940 = vadd.f32 %v1939, 0.008332121
    %v1941 = vmul.f32 %v1938, %v1940
    %v1942 = vadd.f32 %v1941, -0.16666654
    %v1943 = vmul.f32 %v1938, %v1942
    %v1944 = vadd.f32 %v1943, 1.0
    %v1945 = vmul.f32 %v1944, %v1929
    %vm1946 = vweird.f32 %v724
    %v1947 = vand.u32 %v1930, 3
    %vm1948 = vcmp.lt.s32.totalorder %v1947, 2
    %vm1949 = vcmp.eq.s32.totalorder %v1947, 0
    %v1950 = vxor.u32 %v1945, 2147483648
    %v1951 = vsel %vm1949, %v1937, %v1950
    %vm1952 = vcmp.eq.s32.totalorder %v1947, 2
    %v1953 = vxor.u32 %v1937, 2147483648
    %v1954 = vsel %vm1952, %v1953, %v1945
    %v1955 = vsel %vm1948, %v1951, %v1954
    %v1956 = vsel %vm1946, nan, %v1955
    %v1957 = vmul.f32 %v632, %v878
    %v1958 = vmul.f32 %v644, %v1032
    %v1959 = vmul.f32 %v656, %v1186
    %v1960 = vmul.f32 %v668, %v1340
    %v1961 = vmul.f32 %v680, %v1494
    %v1962 = vmul.f32 %v692, %v1648
    %v1963 = vmul.f32 %v704, %v1802
    %v1964 = vmul.f32 %v716, %v1956
    %v1965 = vmul.f32 %v242, %v1957
    %v1966 = vmul.f32 %v243, %v1958
    %v1967 = vmul.f32 %v244, %v1959
    %v1968 = vmul.f32 %v245, %v1960
    %v1969 = vmul.f32 %v246, %v1961
    %v1970 = vmul.f32 %v247, %v1962
    %v1971 = vmul.f32 %v248, %v1963
    %v1972 = vmul.f32 %v249, %v1964
    %v1973 = vadd.f32 %v154, %v1965
    %v1974 = vadd.f32 %v155, %v1966
    %v1975 = vadd.f32 %v156, %v1967
    %v1976 = vadd.f32 %v157, %v1968
    %v1977 = vadd.f32 %v158, %v1969
    %v1978 = vadd.f32 %v159, %v1970
    %v1979 = vadd.f32 %v160, %v1971
    %v1980 = vadd.f32 %v161, %v1972
    %v1981 = vld [vmem:[%s4] sm:$0xff]
    %v1982 = vld [vmem:[%s4 + $0x8] sm:$0xff]
    %v1983 = vld [vmem:[%s4 + $0x10] sm:$0xff]
    %v1984 = vld [vmem:[%s4 + $0x18] sm:$0xff]
    %v1985 = vld [vmem:[%s4 + $0x20] sm:$0xff]
    %v1986 = vld [vmem:[%s4 + $0x28] sm:$0xff]
    %v1987 = vld [vmem:[%s4 + $0x30] sm:$0xff]
    %v1988 = vld [vmem:[%s4 + $0x38] sm:$0xff]
    %v1989 = vld [vmem:[%s4 + $0x40] sm:$0xff]
    %v1990 = vld [vmem:[%s4 + $0x48] sm:$0xff]
    %v1991 = vld [vmem:[%s4 + $0x50] sm:$0xff]
    %v1992 = vld [vmem:[%s4 + $0x58] sm:$0xff]
    %v1993 = vld [vmem:[%s4 + $0x60] sm:$0xff]
    %v1994 = vld [vmem:[%s4 + $0x68] sm:$0xff]
    %v1995 = vld [vmem:[%s4 + $0x70] sm:$0xff]
    %v1996 = vld [vmem:[%s4 + $0x78] sm:$0xff]
    %v1997 = vld [vmem:[%s4 + $0x80] sm:$0xff]
    %v1998 = vld [vmem:[%s4 + $0x88] sm:$0xff]
    %v1999 = vld [vmem:[%s4 + $0x90] sm:$0xff]
    %v2000 = vld [vmem:[%s4 + $0x98] sm:$0xff]
    %v2001 = vld [vmem:[%s4 + $0xa0] sm:$0xff]
    %v2002 = vld [vmem:[%s4 + $0xa8] sm:$0xff]
    %v2003 = vld [vmem:[%s4 + $0xb0] sm:$0xff]
    %v2004 = vld [vmem:[%s4 + $0xb8] sm:$0xff]
    %v2005 = vld [vmem:[%s4 + $0xc0] sm:$0xff]
    %v2006 = vld [vmem:[%s4 + $0xc8] sm:$0xff]
    %v2007 = vld [vmem:[%s4 + $0xd0] sm:$0xff]
    %v2008 = vld [vmem:[%s4 + $0xd8] sm:$0xff]
    %v2009 = vld [vmem:[%s4 + $0xe0] sm:$0xff]
    %v2010 = vld [vmem:[%s4 + $0xe8] sm:$0xff]
    %v2011 = vld [vmem:[%s4 + $0xf0] sm:$0xff]
    %v2012 = vld [vmem:[%s4 + $0xf8] sm:$0xff]
    %v2013 = vld [vmem:[%s4 + $0x100] sm:$0xff]
    %v2014 = vld [vmem:[%s4 + $0x108] sm:$0xff]
    %v2015 = vld [vmem:[%s4 + $0x110] sm:$0xff]
    %v2016 = vld [vmem:[%s4 + $0x118] sm:$0xff]
    %v2017 = vld [vmem:[%s4 + $0x120] sm:$0xff]
    %v2018 = vld [vmem:[%s4 + $0x128] sm:$0xff]
    %v2019 = vld [vmem:[%s4 + $0x130] sm:$0xff]
    %v2020 = vld [vmem:[%s4 + $0x138] sm:$0xff]
    %v2021 = vld [vmem:[%s4 + $0x140] sm:$0xff]
    %v2022 = vld [vmem:[%s4 + $0x148] sm:$0xff]
    %v2023 = vld [vmem:[%s4 + $0x150] sm:$0xff]
    %v2024 = vld [vmem:[%s4 + $0x158] sm:$0xff]
    %v2025 = vld [vmem:[%s4 + $0x160] sm:$0xff]
    %v2026 = vld [vmem:[%s4 + $0x168] sm:$0xff]
    %v2027 = vld [vmem:[%s4 + $0x170] sm:$0xff]
    %v2028 = vld [vmem:[%s4 + $0x178] sm:$0xff]
    %v2029 = vld [vmem:[%s4 + $0x180] sm:$0xff]
    %v2030 = vld [vmem:[%s4 + $0x188] sm:$0xff]
    %v2031 = vld [vmem:[%s4 + $0x190] sm:$0xff]
    %v2032 = vld [vmem:[%s4 + $0x198] sm:$0xff]
    %v2033 = vld [vmem:[%s4 + $0x1a0] sm:$0xff]
    %v2034 = vld [vmem:[%s4 + $0x1a8] sm:$0xff]
    %v2035 = vld [vmem:[%s4 + $0x1b0] sm:$0xff]
    %v2036 = vld [vmem:[%s4 + $0x1b8] sm:$0xff]
    %v2037 = vld [vmem:[%s4 + $0x1c0] sm:$0xff]
    %v2038 = vld [vmem:[%s4 + $0x1c8] sm:$0xff]
    %v2039 = vld [vmem:[%s4 + $0x1d0] sm:$0xff]
    %v2040 = vld [vmem:[%s4 + $0x1d8] sm:$0xff]
    %v2041 = vld [vmem:[%s4 + $0x1e0] sm:$0xff]
    %v2042 = vld [vmem:[%s4 + $0x1e8] sm:$0xff]
    %v2043 = vld [vmem:[%s4 + $0x1f0] sm:$0xff]
    %v2044 = vld [vmem:[%s4 + $0x1f8] sm:$0xff]
    %v2045 = vld [vmem:[#allocation3] sm:$0xff]
    %v2046 = vld [vmem:[#allocation3 + $0x8] sm:$0xff]
    %v2047 = vld [vmem:[#allocation3 + $0x10] sm:$0xff]
    %v2048 = vld [vmem:[#allocation3 + $0x18] sm:$0xff]
    %v2049 = vld [vmem:[#allocation3 + $0x20] sm:$0xff]
    %v2050 = vld [vmem:[#allocation3 + $0x28] sm:$0xff]
    %v2051 = vld [vmem:[#allocation3 + $0x30] sm:$0xff]
    %v2052 = vld [vmem:[#allocation3 + $0x38] sm:$0xff]
    %v2053 = vld [vmem:[#allocation3 + $0x40] sm:$0xff]
    %v2054 = vld [vmem:[#allocation3 + $0x48] sm:$0xff]
    %v2055 = vld [vmem:[#allocation3 + $0x50] sm:$0xff]
    %v2056 = vld [vmem:[#allocation3 + $0x58] sm:$0xff]
    %v2057 = vld [vmem:[#allocation3 + $0x60] sm:$0xff]
    %v2058 = vld [vmem:[#allocation3 + $0x68] sm:$0xff]
    %v2059 = vld [vmem:[#allocation3 + $0x70] sm:$0xff]
    %v2060 = vld [vmem:[#allocation3 + $0x78] sm:$0xff]
    %v2061 = vld [vmem:[#allocation3 + $0x80] sm:$0xff]
    %v2062 = vld [vmem:[#allocation3 + $0x88] sm:$0xff]
    %v2063 = vld [vmem:[#allocation3 + $0x90] sm:$0xff]
    %v2064 = vld [vmem:[#allocation3 + $0x98] sm:$0xff]
    %v2065 = vld [vmem:[#allocation3 + $0xa0] sm:$0xff]
    %v2066 = vld [vmem:[#allocation3 + $0xa8] sm:$0xff]
    %v2067 = vld [vmem:[#allocation3 + $0xb0] sm:$0xff]
    %v2068 = vld [vmem:[#allocation3 + $0xb8] sm:$0xff]
    %v2069 = vld [vmem:[#allocation3 + $0xc0] sm:$0xff]
    %v2070 = vld [vmem:[#allocation3 + $0xc8] sm:$0xff]
    %v2071 = vld [vmem:[#allocation3 + $0xd0] sm:$0xff]
    %v2072 = vld [vmem:[#allocation3 + $0xd8] sm:$0xff]
    %v2073 = vld [vmem:[#allocation3 + $0xe0] sm:$0xff]
    %v2074 = vld [vmem:[#allocation3 + $0xe8] sm:$0xff]
    %v2075 = vld [vmem:[#allocation3 + $0xf0] sm:$0xff]
    %v2076 = vld [vmem:[#allocation3 + $0xf8] sm:$0xff]
    %v2077 = vld [vmem:[#allocation3 + $0x100] sm:$0xff]
    %v2078 = vld [vmem:[#allocation3 + $0x108] sm:$0xff]
    %v2079 = vld [vmem:[#allocation3 + $0x110] sm:$0xff]
    %v2080 = vld [vmem:[#allocation3 + $0x118] sm:$0xff]
    %v2081 = vld [vmem:[#allocation3 + $0x120] sm:$0xff]
    %v2082 = vld [vmem:[#allocation3 + $0x128] sm:$0xff]
    %v2083 = vld [vmem:[#allocation3 + $0x130] sm:$0xff]
    %v2084 = vld [vmem:[#allocation3 + $0x138] sm:$0xff]
    %v2085 = vld [vmem:[#allocation3 + $0x140] sm:$0xff]
    %v2086 = vld [vmem:[#allocation3 + $0x148] sm:$0xff]
    %v2087 = vld [vmem:[#allocation3 + $0x150] sm:$0xff]
    %v2088 = vld [vmem:[#allocation3 + $0x158] sm:$0xff]
    %v2089 = vld [vmem:[#allocation3 + $0x160] sm:$0xff]
    %v2090 = vld [vmem:[#allocation3 + $0x168] sm:$0xff]
    %v2091 = vld [vmem:[#allocation3 + $0x170] sm:$0xff]
    %v2092 = vld [vmem:[#allocation3 + $0x178] sm:$0xff]
    %v2093 = vld [vmem:[#allocation3 + $0x180] sm:$0xff]
    %v2094 = vld [vmem:[#allocation3 + $0x188] sm:$0xff]
    %v2095 = vld [vmem:[#allocation3 + $0x190] sm:$0xff]
    %v2096 = vld [vmem:[#allocation3 + $0x198] sm:$0xff]
    %v2097 = vld [vmem:[#allocation3 + $0x1a0] sm:$0xff]
    %v2098 = vld [vmem:[#allocation3 + $0x1a8] sm:$0xff]
    %v2099 = vld [vmem:[#allocation3 + $0x1b0] sm:$0xff]
    %v2100 = vld [vmem:[#allocation3 + $0x1b8] sm:$0xff]
    %v2101 = vld [vmem:[#allocation3 + $0x1c0] sm:$0xff]
    %v2102 = vld [vmem:[#allocation3 + $0x1c8] sm:$0xff]
    %v2103 = vld [vmem:[#allocation3 + $0x1d0] sm:$0xff]
    %v2104 = vld [vmem:[#allocation3 + $0x1d8] sm:$0xff]
    %v2105 = vld [vmem:[#allocation3 + $0x1e0] sm:$0xff]
    %v2106 = vld [vmem:[#allocation3 + $0x1e8] sm:$0xff]
    %v2107 = vld [vmem:[#allocation3 + $0x1f0] sm:$0xff]
    %v2108 = vld [vmem:[#allocation3 + $0x1f8] sm:$0xff]
    %2109 = vmatpush.xpose.msra.mxu0 0.0
    %2110 = vmatpush.xpose.msra.mxu0 0.0
    %2111 = vmatpush.xpose.msra.mxu0 0.0
    %2112 = vmatpush.xpose.msra.mxu0 0.0
    %2113 = vmatpush.xpose.msra.mxu0 0.0
    %2114 = vmatpush.xpose.msra.mxu0 0.0
    %2115 = vmatpush.xpose.msra.mxu0 0.0
    %2116 = vmatpush.xpose.msra.mxu0 0.0
    %2117 = vmatpush.xpose.msra.mxu0 %v1980
    %2118 = vmatpush.xpose.msra.mxu0 %v1979
    %2119 = vmatpush.xpose.msra.mxu0 %v1978
    %2120 = vmatpush.xpose.msra.mxu0 %v1977
    %2121 = vmatpush.xpose.msra.mxu0 %v1976
    %2122 = vmatpush.xpose.msra.mxu0 %v1975
    %2123 = vmatpush.xpose.msra.mxu0 %v1974
    %2124 = vmatpush.xpose.msra.mxu0 %v1973
    %2125 = vmatmul.f32.gmra.mxu0 %v2045
    %v2126 = vpop.f32.mrf.mxu0
    %v2127 = vadd.f32 0.0, %v2126
    %2128 = vmatmul.f32.gmra.mxu0 %v2046
    %v2129 = vpop.f32.mrf.mxu0
    %v2130 = vadd.f32 0.0, %v2129
    %2131 = vmatmul.f32.gmra.mxu0 %v2047
    %v2132 = vpop.f32.mrf.mxu0
    %v2133 = vadd.f32 0.0, %v2132
    %2134 = vmatmul.f32.gmra.mxu0 %v2048
    %v2135 = vpop.f32.mrf.mxu0
    %v2136 = vadd.f32 0.0, %v2135
    %2137 = vmatmul.f32.gmra.mxu0 %v2049
    %v2138 = vpop.f32.mrf.mxu0
    %v2139 = vadd.f32 0.0, %v2138
    %2140 = vmatmul.f32.gmra.mxu0 %v2050
    %v2141 = vpop.f32.mrf.mxu0
    %v2142 = vadd.f32 0.0, %v2141
    %2143 = vmatmul.f32.gmra.mxu0 %v2051
    %v2144 = vpop.f32.mrf.mxu0
    %v2145 = vadd.f32 0.0, %v2144
    %2146 = vmatmul.f32.gmra.mxu0 %v2052
    %v2147 = vpop.f32.mrf.mxu0
    %v2148 = vadd.f32 0.0, %v2147
    %2149 = vmatmul.f32.gmra.mxu0 %v2053
    %v2150 = vpop.f32.mrf.mxu0
    %v2151 = vadd.f32 0.0, %v2150
    %2152 = vmatmul.f32.gmra.mxu0 %v2054
    %v2153 = vpop.f32.mrf.mxu0
    %v2154 = vadd.f32 0.0, %v2153
    %2155 = vmatmul.f32.gmra.mxu0 %v2055
    %v2156 = vpop.f32.mrf.mxu0
    %v2157 = vadd.f32 0.0, %v2156
    %2158 = vmatmul.f32.gmra.mxu0 %v2056
    %v2159 = vpop.f32.mrf.mxu0
    %v2160 = vadd.f32 0.0, %v2159
    %2161 = vmatmul.f32.gmra.mxu0 %v2057
    %v2162 = vpop.f32.mrf.mxu0
    %v2163 = vadd.f32 0.0, %v2162
    %2164 = vmatmul.f32.gmra.mxu0 %v2058
    %v2165 = vpop.f32.mrf.mxu0
    %v2166 = vadd.f32 0.0, %v2165
    %2167 = vmatmul.f32.gmra.mxu0 %v2059
    %v2168 = vpop.f32.mrf.mxu0
    %v2169 = vadd.f32 0.0, %v2168
    %2170 = vmatmul.f32.gmra.mxu0 %v2060
    %v2171 = vpop.f32.mrf.mxu0
    %v2172 = vadd.f32 0.0, %v2171
    %2173 = vmatmul.f32.gmra.mxu0 %v2061
    %v2174 = vpop.f32.mrf.mxu0
    %v2175 = vadd.f32 0.0, %v2174
    %2176 = vmatmul.f32.gmra.mxu0 %v2062
    %v2177 = vpop.f32.mrf.mxu0
    %v2178 = vadd.f32 0.0, %v2177
    %2179 = vmatmul.f32.gmra.mxu0 %v2063
    %v2180 = vpop.f32.mrf.mxu0
    %v2181 = vadd.f32 0.0, %v2180
    %2182 = vmatmul.f32.gmra.mxu0 %v2064
    %v2183 = vpop.f32.mrf.mxu0
    %v2184 = vadd.f32 0.0, %v2183
    %2185 = vmatmul.f32.gmra.mxu0 %v2065
    %v2186 = vpop.f32.mrf.mxu0
    %v2187 = vadd.f32 0.0, %v2186
    %2188 = vmatmul.f32.gmra.mxu0 %v2066
    %v2189 = vpop.f32.mrf.mxu0
    %v2190 = vadd.f32 0.0, %v2189
    %2191 = vmatmul.f32.gmra.mxu0 %v2067
    %v2192 = vpop.f32.mrf.mxu0
    %v2193 = vadd.f32 0.0, %v2192
    %2194 = vmatmul.f32.gmra.mxu0 %v2068
    %v2195 = vpop.f32.mrf.mxu0
    %v2196 = vadd.f32 0.0, %v2195
    %2197 = vmatmul.f32.gmra.mxu0 %v2069
    %v2198 = vpop.f32.mrf.mxu0
    %v2199 = vadd.f32 0.0, %v2198
    %2200 = vmatmul.f32.gmra.mxu0 %v2070
    %v2201 = vpop.f32.mrf.mxu0
    %v2202 = vadd.f32 0.0, %v2201
    %2203 = vmatmul.f32.gmra.mxu0 %v2071
    %v2204 = vpop.f32.mrf.mxu0
    %v2205 = vadd.f32 0.0, %v2204
    %2206 = vmatmul.f32.gmra.mxu0 %v2072
    %v2207 = vpop.f32.mrf.mxu0
    %v2208 = vadd.f32 0.0, %v2207
    %2209 = vmatmul.f32.gmra.mxu0 %v2073
    %v2210 = vpop.f32.mrf.mxu0
    %v2211 = vadd.f32 0.0, %v2210
    %2212 = vmatmul.f32.gmra.mxu0 %v2074
    %v2213 = vpop.f32.mrf.mxu0
    %v2214 = vadd.f32 0.0, %v2213
    %2215 = vmatmul.f32.gmra.mxu0 %v2075
    %v2216 = vpop.f32.mrf.mxu0
    %v2217 = vadd.f32 0.0, %v2216
    %2218 = vmatmul.f32.gmra.mxu0 %v2076
    %v2219 = vpop.f32.mrf.mxu0
    %v2220 = vadd.f32 0.0, %v2219
    %2221 = vmatmul.f32.gmra.mxu0 %v2077
    %v2222 = vpop.f32.mrf.mxu0
    %v2223 = vadd.f32 0.0, %v2222
    %2224 = vmatmul.f32.gmra.mxu0 %v2078
    %v2225 = vpop.f32.mrf.mxu0
    %v2226 = vadd.f32 0.0, %v2225
    %2227 = vmatmul.f32.gmra.mxu0 %v2079
    %v2228 = vpop.f32.mrf.mxu0
    %v2229 = vadd.f32 0.0, %v2228
    %2230 = vmatmul.f32.gmra.mxu0 %v2080
    %v2231 = vpop.f32.mrf.mxu0
    %v2232 = vadd.f32 0.0, %v2231
    %2233 = vmatmul.f32.gmra.mxu0 %v2081
    %v2234 = vpop.f32.mrf.mxu0
    %v2235 = vadd.f32 0.0, %v2234
    %2236 = vmatmul.f32.gmra.mxu0 %v2082
    %v2237 = vpop.f32.mrf.mxu0
    %v2238 = vadd.f32 0.0, %v2237
    %2239 = vmatmul.f32.gmra.mxu0 %v2083
    %v2240 = vpop.f32.mrf.mxu0
    %v2241 = vadd.f32 0.0, %v2240
    %2242 = vmatmul.f32.gmra.mxu0 %v2084
    %v2243 = vpop.f32.mrf.mxu0
    %v2244 = vadd.f32 0.0, %v2243
    %2245 = vmatmul.f32.gmra.mxu0 %v2085
    %v2246 = vpop.f32.mrf.mxu0
    %v2247 = vadd.f32 0.0, %v2246
    %2248 = vmatmul.f32.gmra.mxu0 %v2086
    %v2249 = vpop.f32.mrf.mxu0
    %v2250 = vadd.f32 0.0, %v2249
    %2251 = vmatmul.f32.gmra.mxu0 %v2087
    %v2252 = vpop.f32.mrf.mxu0
    %v2253 = vadd.f32 0.0, %v2252
    %2254 = vmatmul.f32.gmra.mxu0 %v2088
    %v2255 = vpop.f32.mrf.mxu0
    %v2256 = vadd.f32 0.0, %v2255
    %2257 = vmatmul.f32.gmra.mxu0 %v2089
    %v2258 = vpop.f32.mrf.mxu0
    %v2259 = vadd.f32 0.0, %v2258
    %2260 = vmatmul.f32.gmra.mxu0 %v2090
    %v2261 = vpop.f32.mrf.mxu0
    %v2262 = vadd.f32 0.0, %v2261
    %2263 = vmatmul.f32.gmra.mxu0 %v2091
    %v2264 = vpop.f32.mrf.mxu0
    %v2265 = vadd.f32 0.0, %v2264
    %2266 = vmatmul.f32.gmra.mxu0 %v2092
    %v2267 = vpop.f32.mrf.mxu0
    %v2268 = vadd.f32 0.0, %v2267
    %2269 = vmatmul.f32.gmra.mxu0 %v2093
    %v2270 = vpop.f32.mrf.mxu0
    %v2271 = vadd.f32 0.0, %v2270
    %2272 = vmatmul.f32.gmra.mxu0 %v2094
    %v2273 = vpop.f32.mrf.mxu0
    %v2274 = vadd.f32 0.0, %v2273
    %2275 = vmatmul.f32.gmra.mxu0 %v2095
    %v2276 = vpop.f32.mrf.mxu0
    %v2277 = vadd.f32 0.0, %v2276
    %2278 = vmatmul.f32.gmra.mxu0 %v2096
    %v2279 = vpop.f32.mrf.mxu0
    %v2280 = vadd.f32 0.0, %v2279
    %2281 = vmatmul.f32.gmra.mxu0 %v2097
    %v2282 = vpop.f32.mrf.mxu0
    %v2283 = vadd.f32 0.0, %v2282
    %2284 = vmatmul.f32.gmra.mxu0 %v2098
    %v2285 = vpop.f32.mrf.mxu0
    %v2286 = vadd.f32 0.0, %v2285
    %2287 = vmatmul.f32.gmra.mxu0 %v2099
    %v2288 = vpop.f32.mrf.mxu0
    %v2289 = vadd.f32 0.0, %v2288
    %2290 = vmatmul.f32.gmra.mxu0 %v2100
    %v2291 = vpop.f32.mrf.mxu0
    %v2292 = vadd.f32 0.0, %v2291
    %2293 = vmatmul.f32.gmra.mxu0 %v2101
    %v2294 = vpop.f32.mrf.mxu0
    %v2295 = vadd.f32 0.0, %v2294
    %2296 = vmatmul.f32.gmra.mxu0 %v2102
    %v2297 = vpop.f32.mrf.mxu0
    %v2298 = vadd.f32 0.0, %v2297
    %2299 = vmatmul.f32.gmra.mxu0 %v2103
    %v2300 = vpop.f32.mrf.mxu0
    %v2301 = vadd.f32 0.0, %v2300
    %2302 = vmatmul.f32.gmra.mxu0 %v2104
    %v2303 = vpop.f32.mrf.mxu0
    %v2304 = vadd.f32 0.0, %v2303
    %2305 = vmatmul.f32.gmra.mxu0 %v2105
    %v2306 = vpop.f32.mrf.mxu0
    %v2307 = vadd.f32 0.0, %v2306
    %2308 = vmatmul.f32.gmra.mxu0 %v2106
    %v2309 = vpop.f32.mrf.mxu0
    %v2310 = vadd.f32 0.0, %v2309
    %2311 = vmatmul.f32.gmra.mxu0 %v2107
    %v2312 = vpop.f32.mrf.mxu0
    %v2313 = vadd.f32 0.0, %v2312
    %2314 = vmatmul.f32.gmra.mxu0 %v2108
    %v2315 = vpop.f32.mrf.mxu0
    %v2316 = vadd.f32 0.0, %v2315
    %2317 = vdwg.mxu0
    %v2318 = vadd.f32 %v1981, %v2127
    %v2319 = vadd.f32 %v1982, %v2130
    %v2320 = vadd.f32 %v1983, %v2133
    %v2321 = vadd.f32 %v1984, %v2136
    %v2322 = vadd.f32 %v1985, %v2139
    %v2323 = vadd.f32 %v1986, %v2142
    %v2324 = vadd.f32 %v1987, %v2145
    %v2325 = vadd.f32 %v1988, %v2148
    %v2326 = vadd.f32 %v1989, %v2151
    %v2327 = vadd.f32 %v1990, %v2154
    %v2328 = vadd.f32 %v1991, %v2157
    %v2329 = vadd.f32 %v1992, %v2160
    %v2330 = vadd.f32 %v1993, %v2163
    %v2331 = vadd.f32 %v1994, %v2166
    %v2332 = vadd.f32 %v1995, %v2169
    %v2333 = vadd.f32 %v1996, %v2172
    %v2334 = vadd.f32 %v1997, %v2175
    %v2335 = vadd.f32 %v1998, %v2178
    %v2336 = vadd.f32 %v1999, %v2181
    %v2337 = vadd.f32 %v2000, %v2184
    %v2338 = vadd.f32 %v2001, %v2187
    %v2339 = vadd.f32 %v2002, %v2190
    %v2340 = vadd.f32 %v2003, %v2193
    %v2341 = vadd.f32 %v2004, %v2196
    %v2342 = vadd.f32 %v2005, %v2199
    %v2343 = vadd.f32 %v2006, %v2202
    %v2344 = vadd.f32 %v2007, %v2205
    %v2345 = vadd.f32 %v2008, %v2208
    %v2346 = vadd.f32 %v2009, %v2211
    %v2347 = vadd.f32 %v2010, %v2214
    %v2348 = vadd.f32 %v2011, %v2217
    %v2349 = vadd.f32 %v2012, %v2220
    %v2350 = vadd.f32 %v2013, %v2223
    %v2351 = vadd.f32 %v2014, %v2226
    %v2352 = vadd.f32 %v2015, %v2229
    %v2353 = vadd.f32 %v2016, %v2232
    %v2354 = vadd.f32 %v2017, %v2235
    %v2355 = vadd.f32 %v2018, %v2238
    %v2356 = vadd.f32 %v2019, %v2241
    %v2357 = vadd.f32 %v2020, %v2244
    %v2358 = vadd.f32 %v2021, %v2247
    %v2359 = vadd.f32 %v2022, %v2250
    %v2360 = vadd.f32 %v2023, %v2253
    %v2361 = vadd.f32 %v2024, %v2256
    %v2362 = vadd.f32 %v2025, %v2259
    %v2363 = vadd.f32 %v2026, %v2262
    %v2364 = vadd.f32 %v2027, %v2265
    %v2365 = vadd.f32 %v2028, %v2268
    %v2366 = vadd.f32 %v2029, %v2271
    %v2367 = vadd.f32 %v2030, %v2274
    %v2368 = vadd.f32 %v2031, %v2277
    %v2369 = vadd.f32 %v2032, %v2280
    %v2370 = vadd.f32 %v2033, %v2283
    %v2371 = vadd.f32 %v2034, %v2286
    %v2372 = vadd.f32 %v2035, %v2289
    %v2373 = vadd.f32 %v2036, %v2292
    %v2374 = vadd.f32 %v2037, %v2295
    %v2375 = vadd.f32 %v2038, %v2298
    %v2376 = vadd.f32 %v2039, %v2301
    %v2377 = vadd.f32 %v2040, %v2304
    %v2378 = vadd.f32 %v2041, %v2307
    %v2379 = vadd.f32 %v2042, %v2310
    %v2380 = vadd.f32 %v2043, %v2313
    %v2381 = vadd.f32 %v2044, %v2316
    %vm2382 = vcmask 523264
    %2383 = vst.msk [vmem:[%s4] sm:$0xff] %vm2382, %v2318
    %2384 = vst.msk [vmem:[%s4 + $0x8] sm:$0xff] %vm2382, %v2319
    %2385 = vst.msk [vmem:[%s4 + $0x10] sm:$0xff] %vm2382, %v2320
    %2386 = vst.msk [vmem:[%s4 + $0x18] sm:$0xff] %vm2382, %v2321
    %2387 = vst.msk [vmem:[%s4 + $0x20] sm:$0xff] %vm2382, %v2322
    %2388 = vst.msk [vmem:[%s4 + $0x28] sm:$0xff] %vm2382, %v2323
    %2389 = vst.msk [vmem:[%s4 + $0x30] sm:$0xff] %vm2382, %v2324
    %2390 = vst.msk [vmem:[%s4 + $0x38] sm:$0xff] %vm2382, %v2325
    %2391 = vst.msk [vmem:[%s4 + $0x40] sm:$0xff] %vm2382, %v2326
    %2392 = vst.msk [vmem:[%s4 + $0x48] sm:$0xff] %vm2382, %v2327
    %2393 = vst.msk [vmem:[%s4 + $0x50] sm:$0xff] %vm2382, %v2328
    %2394 = vst.msk [vmem:[%s4 + $0x58] sm:$0xff] %vm2382, %v2329
    %2395 = vst.msk [vmem:[%s4 + $0x60] sm:$0xff] %vm2382, %v2330
    %2396 = vst.msk [vmem:[%s4 + $0x68] sm:$0xff] %vm2382, %v2331
    %2397 = vst.msk [vmem:[%s4 + $0x70] sm:$0xff] %vm2382, %v2332
    %2398 = vst.msk [vmem:[%s4 + $0x78] sm:$0xff] %vm2382, %v2333
    %2399 = vst.msk [vmem:[%s4 + $0x80] sm:$0xff] %vm2382, %v2334
    %2400 = vst.msk [vmem:[%s4 + $0x88] sm:$0xff] %vm2382, %v2335
    %2401 = vst.msk [vmem:[%s4 + $0x90] sm:$0xff] %vm2382, %v2336
    %2402 = vst.msk [vmem:[%s4 + $0x98] sm:$0xff] %vm2382, %v2337
    %2403 = vst.msk [vmem:[%s4 + $0xa0] sm:$0xff] %vm2382, %v2338
    %2404 = vst.msk [vmem:[%s4 + $0xa8] sm:$0xff] %vm2382, %v2339
    %2405 = vst.msk [vmem:[%s4 + $0xb0] sm:$0xff] %vm2382, %v2340
    %2406 = vst.msk [vmem:[%s4 + $0xb8] sm:$0xff] %vm2382, %v2341
    %2407 = vst.msk [vmem:[%s4 + $0xc0] sm:$0xff] %vm2382, %v2342
    %2408 = vst.msk [vmem:[%s4 + $0xc8] sm:$0xff] %vm2382, %v2343
    %2409 = vst.msk [vmem:[%s4 + $0xd0] sm:$0xff] %vm2382, %v2344
    %2410 = vst.msk [vmem:[%s4 + $0xd8] sm:$0xff] %vm2382, %v2345
    %2411 = vst.msk [vmem:[%s4 + $0xe0] sm:$0xff] %vm2382, %v2346
    %2412 = vst.msk [vmem:[%s4 + $0xe8] sm:$0xff] %vm2382, %v2347
    %2413 = vst.msk [vmem:[%s4 + $0xf0] sm:$0xff] %vm2382, %v2348
    %2414 = vst.msk [vmem:[%s4 + $0xf8] sm:$0xff] %vm2382, %v2349
    %2415 = vst.msk [vmem:[%s4 + $0x100] sm:$0xff] %vm2382, %v2350
    %2416 = vst.msk [vmem:[%s4 + $0x108] sm:$0xff] %vm2382, %v2351
    %2417 = vst.msk [vmem:[%s4 + $0x110] sm:$0xff] %vm2382, %v2352
    %2418 = vst.msk [vmem:[%s4 + $0x118] sm:$0xff] %vm2382, %v2353
    %2419 = vst.msk [vmem:[%s4 + $0x120] sm:$0xff] %vm2382, %v2354
    %2420 = vst.msk [vmem:[%s4 + $0x128] sm:$0xff] %vm2382, %v2355
    %2421 = vst.msk [vmem:[%s4 + $0x130] sm:$0xff] %vm2382, %v2356
    %2422 = vst.msk [vmem:[%s4 + $0x138] sm:$0xff] %vm2382, %v2357
    %2423 = vst.msk [vmem:[%s4 + $0x140] sm:$0xff] %vm2382, %v2358
    %2424 = vst.msk [vmem:[%s4 + $0x148] sm:$0xff] %vm2382, %v2359
    %2425 = vst.msk [vmem:[%s4 + $0x150] sm:$0xff] %vm2382, %v2360
    %2426 = vst.msk [vmem:[%s4 + $0x158] sm:$0xff] %vm2382, %v2361
    %2427 = vst.msk [vmem:[%s4 + $0x160] sm:$0xff] %vm2382, %v2362
    %2428 = vst.msk [vmem:[%s4 + $0x168] sm:$0xff] %vm2382, %v2363
    %2429 = vst.msk [vmem:[%s4 + $0x170] sm:$0xff] %vm2382, %v2364
    %2430 = vst.msk [vmem:[%s4 + $0x178] sm:$0xff] %vm2382, %v2365
    %2431 = vst.msk [vmem:[%s4 + $0x180] sm:$0xff] %vm2382, %v2366
    %2432 = vst.msk [vmem:[%s4 + $0x188] sm:$0xff] %vm2382, %v2367
    %2433 = vst.msk [vmem:[%s4 + $0x190] sm:$0xff] %vm2382, %v2368
    %2434 = vst.msk [vmem:[%s4 + $0x198] sm:$0xff] %vm2382, %v2369
    %2435 = vst.msk [vmem:[%s4 + $0x1a0] sm:$0xff] %vm2382, %v2370
    %2436 = vst.msk [vmem:[%s4 + $0x1a8] sm:$0xff] %vm2382, %v2371
    %2437 = vst.msk [vmem:[%s4 + $0x1b0] sm:$0xff] %vm2382, %v2372
    %2438 = vst.msk [vmem:[%s4 + $0x1b8] sm:$0xff] %vm2382, %v2373
    %2439 = vst.msk [vmem:[%s4 + $0x1c0] sm:$0xff] %vm2382, %v2374
    %2440 = vst.msk [vmem:[%s4 + $0x1c8] sm:$0xff] %vm2382, %v2375
    %2441 = vst.msk [vmem:[%s4 + $0x1d0] sm:$0xff] %vm2382, %v2376
    %2442 = vst.msk [vmem:[%s4 + $0x1d8] sm:$0xff] %vm2382, %v2377
    %2443 = vst.msk [vmem:[%s4 + $0x1e0] sm:$0xff] %vm2382, %v2378
    %2444 = vst.msk [vmem:[%s4 + $0x1e8] sm:$0xff] %vm2382, %v2379
    %2445 = vst.msk [vmem:[%s4 + $0x1f0] sm:$0xff] %vm2382, %v2380
    %2446 = vst.msk [vmem:[%s4 + $0x1f8] sm:$0xff] %vm2382, %v2381
    %v2447 = vlog2.pop %v242
    %v2448 = vmul.f32 %v2447, 0.6931472
    %v2449 = vlog2.pop %v243
    %v2450 = vmul.f32 %v2449, 0.6931472
    %v2451 = vlog2.pop %v244
    %v2452 = vmul.f32 %v2451, 0.6931472
    %v2453 = vlog2.pop %v245
    %v2454 = vmul.f32 %v2453, 0.6931472
    %v2455 = vlog2.pop %v246
    %v2456 = vmul.f32 %v2455, 0.6931472
    %v2457 = vlog2.pop %v247
    %v2458 = vmul.f32 %v2457, 0.6931472
    %v2459 = vlog2.pop %v248
    %v2460 = vmul.f32 %v2459, 0.6931472
    %v2461 = vlog2.pop %v249
    %v2462 = vmul.f32 %v2461, 0.6931472
    %v2463 = vsub.f32 -2.3025851, %v2448
    %v2464 = vsub.f32 -2.3025851, %v2450
    %v2465 = vsub.f32 -2.3025851, %v2452
    %v2466 = vsub.f32 -2.3025851, %v2454
    %v2467 = vsub.f32 -2.3025851, %v2456
    %v2468 = vsub.f32 -2.3025851, %v2458
    %v2469 = vsub.f32 -2.3025851, %v2460
    %v2470 = vsub.f32 -2.3025851, %v2462
    %v2471 = vmul.f32 %v242, %v242
    %v2472 = vmul.f32 %v243, %v243
    %v2473 = vmul.f32 %v244, %v244
    %v2474 = vmul.f32 %v245, %v245
    %v2475 = vmul.f32 %v246, %v246
    %v2476 = vmul.f32 %v247, %v247
    %v2477 = vmul.f32 %v248, %v248
    %v2478 = vmul.f32 %v249, %v249
    %v2479 = vmul.f32 %v154, %v154
    %v2480 = vmul.f32 %v155, %v155
    %v2481 = vmul.f32 %v156, %v156
    %v2482 = vmul.f32 %v157, %v157
    %v2483 = vmul.f32 %v158, %v158
    %v2484 = vmul.f32 %v159, %v159
    %v2485 = vmul.f32 %v160, %v160
    %v2486 = vmul.f32 %v161, %v161
    %v2487 = vadd.f32 %v2471, %v2479
    %v2488 = vadd.f32 %v2472, %v2480
    %v2489 = vadd.f32 %v2473, %v2481
    %v2490 = vadd.f32 %v2474, %v2482
    %v2491 = vadd.f32 %v2475, %v2483
    %v2492 = vadd.f32 %v2476, %v2484
    %v2493 = vadd.f32 %v2477, %v2485
    %v2494 = vadd.f32 %v2478, %v2486
    %v2495 = vmul.f32 %v2487, 50.0
    %v2496 = vmul.f32 %v2488, 50.0
    %v2497 = vmul.f32 %v2489, 50.0
    %v2498 = vmul.f32 %v2490, 50.0
    %v2499 = vmul.f32 %v2491, 50.0
    %v2500 = vmul.f32 %v2492, 50.0
    %v2501 = vmul.f32 %v2493, 50.0
    %v2502 = vmul.f32 %v2494, 50.0
    %v2503 = vadd.f32 %v2463, %v2495
    %v2504 = vadd.f32 %v2464, %v2496
    %v2505 = vadd.f32 %v2465, %v2497
    %v2506 = vadd.f32 %v2466, %v2498
    %v2507 = vadd.f32 %v2467, %v2499
    %v2508 = vadd.f32 %v2468, %v2500
    %v2509 = vadd.f32 %v2469, %v2501
    %v2510 = vadd.f32 %v2470, %v2502
    %v2511 = vsub.f32 %v2503, 0.5
    %v2512 = vsub.f32 %v2504, 0.5
    %v2513 = vsub.f32 %v2505, 0.5
    %v2514 = vsub.f32 %v2506, 0.5
    %v2515 = vsub.f32 %v2507, 0.5
    %v2516 = vsub.f32 %v2508, 0.5
    %v2517 = vsub.f32 %v2509, 0.5
    %v2518 = vsub.f32 %v2510, 0.5
    %vm2519 = vcmp.lt.s32.totalorder %v273, 49
    %v2520 = vsel %vm2519, %v2511, 0.0
    %v2521 = vsel %vm2519, %v2512, 0.0
    %v2522 = vsel %vm2519, %v2513, 0.0
    %v2523 = vsel %vm2519, %v2514, 0.0
    %v2524 = vsel %vm2519, %v2515, 0.0
    %v2525 = vsel %vm2519, %v2516, 0.0
    %v2526 = vsel %vm2519, %v2517, 0.0
    %v2527 = vsel %vm2519, %v2518, 0.0
    %v2528 = vld [vmem:[%s5] sm:$0xff]
    %v2529 = vld [vmem:[%s5 + $0x8] sm:$0xff]
    %v2530 = vld [vmem:[%s5 + $0x10] sm:$0xff]
    %v2531 = vld [vmem:[%s5 + $0x18] sm:$0xff]
    %v2532 = vld [vmem:[%s5 + $0x20] sm:$0xff]
    %v2533 = vld [vmem:[%s5 + $0x28] sm:$0xff]
    %v2534 = vld [vmem:[%s5 + $0x30] sm:$0xff]
    %v2535 = vld [vmem:[%s5 + $0x38] sm:$0xff]
    %2536 = vadd.xlane.f32.xlu0 %v2520
    %v2537 = vpop.xlane.xlu0 %2536
    %2538 = vadd.xlane.f32.xlu0 %v2521
    %v2539 = vpop.xlane.xlu0 %2538
    %2540 = vadd.xlane.f32.xlu0 %v2522
    %v2541 = vpop.xlane.xlu0 %2540
    %2542 = vadd.xlane.f32.xlu0 %v2523
    %v2543 = vpop.xlane.xlu0 %2542
    %2544 = vadd.xlane.f32.xlu0 %v2524
    %v2545 = vpop.xlane.xlu0 %2544
    %2546 = vadd.xlane.f32.xlu0 %v2525
    %v2547 = vpop.xlane.xlu0 %2546
    %2548 = vadd.xlane.f32.xlu0 %v2526
    %v2549 = vpop.xlane.xlu0 %2548
    %2550 = vadd.xlane.f32.xlu0 %v2527
    %v2551 = vpop.xlane.xlu0 %2550
    %v2552 = vadd.f32 %v2528, %v2537
    %v2553 = vadd.f32 %v2529, %v2539
    %v2554 = vadd.f32 %v2530, %v2541
    %v2555 = vadd.f32 %v2531, %v2543
    %v2556 = vadd.f32 %v2532, %v2545
    %v2557 = vadd.f32 %v2533, %v2547
    %v2558 = vadd.f32 %v2534, %v2549
    %v2559 = vadd.f32 %v2535, %v2551
    %vm2560 = vcmask 7168
    %2561 = vst.msk [vmem:[%s5] sm:$0xff] %vm2560, %v2552
    %2562 = vst.msk [vmem:[%s5 + $0x8] sm:$0xff] %vm2560, %v2553
    %2563 = vst.msk [vmem:[%s5 + $0x10] sm:$0xff] %vm2560, %v2554
    %2564 = vst.msk [vmem:[%s5 + $0x18] sm:$0xff] %vm2560, %v2555
    %2565 = vst.msk [vmem:[%s5 + $0x20] sm:$0xff] %vm2560, %v2556
    %2566 = vst.msk [vmem:[%s5 + $0x28] sm:$0xff] %vm2560, %v2557
    %2567 = vst.msk [vmem:[%s5 + $0x30] sm:$0xff] %vm2560, %v2558
    %2568 = vst.msk [vmem:[%s5 + $0x38] sm:$0xff] %vm2560, %v2559
    // Predicated region
    $region34: #{tpu_custom_call.1} parent=1 // pred_check
      %p2569 = pneg %p68
    $region35: #{tpu_custom_call.1} parent=1 // pred_check_branch
      %2571 = sbr.rel (%p2569) target = $region37
    $region36: #{tpu_custom_call.1} parent=1 // pred_region
      %v2572 = vld [vmem:[%s4] sm:$0xff]
      %v2573 = vld [vmem:[%s4 + $0x8] sm:$0xff]
      %v2574 = vld [vmem:[%s4 + $0x10] sm:$0xff]
      %v2575 = vld [vmem:[%s4 + $0x18] sm:$0xff]
      %v2576 = vld [vmem:[%s4 + $0x20] sm:$0xff]
      %v2577 = vld [vmem:[%s4 + $0x28] sm:$0xff]
      %v2578 = vld [vmem:[%s4 + $0x30] sm:$0xff]
      %v2579 = vld [vmem:[%s4 + $0x38] sm:$0xff]
      %v2580 = vld [vmem:[%s4 + $0x40] sm:$0xff]
      %v2581 = vld [vmem:[%s4 + $0x48] sm:$0xff]
      %v2582 = vld [vmem:[%s4 + $0x50] sm:$0xff]
      %v2583 = vld [vmem:[%s4 + $0x58] sm:$0xff]
      %v2584 = vld [vmem:[%s4 + $0x60] sm:$0xff]
      %v2585 = vld [vmem:[%s4 + $0x68] sm:$0xff]
      %v2586 = vld [vmem:[%s4 + $0x70] sm:$0xff]
      %v2587 = vld [vmem:[%s4 + $0x78] sm:$0xff]
      %v2588 = vld [vmem:[%s4 + $0x80] sm:$0xff]
      %v2589 = vld [vmem:[%s4 + $0x88] sm:$0xff]
      %v2590 = vld [vmem:[%s4 + $0x90] sm:$0xff]
      %v2591 = vld [vmem:[%s4 + $0x98] sm:$0xff]
      %v2592 = vld [vmem:[%s4 + $0xa0] sm:$0xff]
      %v2593 = vld [vmem:[%s4 + $0xa8] sm:$0xff]
      %v2594 = vld [vmem:[%s4 + $0xb0] sm:$0xff]
      %v2595 = vld [vmem:[%s4 + $0xb8] sm:$0xff]
      %v2596 = vld [vmem:[%s4 + $0xc0] sm:$0xff]
      %v2597 = vld [vmem:[%s4 + $0xc8] sm:$0xff]
      %v2598 = vld [vmem:[%s4 + $0xd0] sm:$0xff]
      %v2599 = vld [vmem:[%s4 + $0xd8] sm:$0xff]
      %v2600 = vld [vmem:[%s4 + $0xe0] sm:$0xff]
      %v2601 = vld [vmem:[%s4 + $0xe8] sm:$0xff]
      %v2602 = vld [vmem:[%s4 + $0xf0] sm:$0xff]
      %v2603 = vld [vmem:[%s4 + $0xf8] sm:$0xff]
      %v2604 = vld [vmem:[%s4 + $0x100] sm:$0xff]
      %v2605 = vld [vmem:[%s4 + $0x108] sm:$0xff]
      %v2606 = vld [vmem:[%s4 + $0x110] sm:$0xff]
      %v2607 = vld [vmem:[%s4 + $0x118] sm:$0xff]
      %v2608 = vld [vmem:[%s4 + $0x120] sm:$0xff]
      %v2609 = vld [vmem:[%s4 + $0x128] sm:$0xff]
      %v2610 = vld [vmem:[%s4 + $0x130] sm:$0xff]
      %v2611 = vld [vmem:[%s4 + $0x138] sm:$0xff]
      %v2612 = vld [vmem:[%s4 + $0x140] sm:$0xff]
      %v2613 = vld [vmem:[%s4 + $0x148] sm:$0xff]
      %v2614 = vld [vmem:[%s4 + $0x150] sm:$0xff]
      %v2615 = vld [vmem:[%s4 + $0x158] sm:$0xff]
      %v2616 = vld [vmem:[%s4 + $0x160] sm:$0xff]
      %v2617 = vld [vmem:[%s4 + $0x168] sm:$0xff]
      %v2618 = vld [vmem:[%s4 + $0x170] sm:$0xff]
      %v2619 = vld [vmem:[%s4 + $0x178] sm:$0xff]
      %v2620 = vld [vmem:[%s4 + $0x180] sm:$0xff]
      %v2621 = vld [vmem:[%s4 + $0x188] sm:$0xff]
      %v2622 = vld [vmem:[%s4 + $0x190] sm:$0xff]
      %v2623 = vld [vmem:[%s4 + $0x198] sm:$0xff]
      %v2624 = vld [vmem:[%s4 + $0x1a0] sm:$0xff]
      %v2625 = vld [vmem:[%s4 + $0x1a8] sm:$0xff]
      %v2626 = vld [vmem:[%s4 + $0x1b0] sm:$0xff]
      %v2627 = vld [vmem:[%s4 + $0x1b8] sm:$0xff]
      %v2628 = vld [vmem:[%s4 + $0x1c0] sm:$0xff]
      %v2629 = vld [vmem:[%s4 + $0x1c8] sm:$0xff]
      %v2630 = vld [vmem:[%s4 + $0x1d0] sm:$0xff]
      %v2631 = vld [vmem:[%s4 + $0x1d8] sm:$0xff]
      %v2632 = vld [vmem:[%s4 + $0x1e0] sm:$0xff]
      %v2633 = vld [vmem:[%s4 + $0x1e8] sm:$0xff]
      %v2634 = vld [vmem:[%s4 + $0x1f0] sm:$0xff]
      %v2635 = vld [vmem:[%s4 + $0x1f8] sm:$0xff]
      %v2636 = vsel %vm2382, %v2572, 0.0
      %v2637 = vsel %vm2382, %v2573, 0.0
      %v2638 = vadd.f32 %v2636, %v2637
      %v2639 = vsel %vm2382, %v2574, 0.0
      %v2640 = vadd.f32 %v2638, %v2639
      %v2641 = vsel %vm2382, %v2575, 0.0
      %v2642 = vadd.f32 %v2640, %v2641
      %v2643 = vsel %vm2382, %v2576, 0.0
      %v2644 = vadd.f32 %v2642, %v2643
      %v2645 = vsel %vm2382, %v2577, 0.0
      %v2646 = vadd.f32 %v2644, %v2645
      %v2647 = vsel %vm2382, %v2578, 0.0
      %v2648 = vadd.f32 %v2646, %v2647
      %v2649 = vsel %vm2382, %v2579, 0.0
      %v2650 = vadd.f32 %v2648, %v2649
      %v2651 = vsel %vm2382, %v2580, 0.0
      %v2652 = vadd.f32 %v2650, %v2651
      %v2653 = vsel %vm2382, %v2581, 0.0
      %v2654 = vadd.f32 %v2652, %v2653
      %v2655 = vsel %vm2382, %v2582, 0.0
      %v2656 = vadd.f32 %v2654, %v2655
      %v2657 = vsel %vm2382, %v2583, 0.0
      %v2658 = vadd.f32 %v2656, %v2657
      %v2659 = vsel %vm2382, %v2584, 0.0
      %v2660 = vadd.f32 %v2658, %v2659
      %v2661 = vsel %vm2382, %v2585, 0.0
      %v2662 = vadd.f32 %v2660, %v2661
      %v2663 = vsel %vm2382, %v2586, 0.0
      %v2664 = vadd.f32 %v2662, %v2663
      %v2665 = vsel %vm2382, %v2587, 0.0
      %v2666 = vadd.f32 %v2664, %v2665
      %v2667 = vsel %vm2382, %v2588, 0.0
      %v2668 = vadd.f32 %v2666, %v2667
      %v2669 = vsel %vm2382, %v2589, 0.0
      %v2670 = vadd.f32 %v2668, %v2669
      %v2671 = vsel %vm2382, %v2590, 0.0
      %v2672 = vadd.f32 %v2670, %v2671
      %v2673 = vsel %vm2382, %v2591, 0.0
      %v2674 = vadd.f32 %v2672, %v2673
      %v2675 = vsel %vm2382, %v2592, 0.0
      %v2676 = vadd.f32 %v2674, %v2675
      %v2677 = vsel %vm2382, %v2593, 0.0
      %v2678 = vadd.f32 %v2676, %v2677
      %v2679 = vsel %vm2382, %v2594, 0.0
      %v2680 = vadd.f32 %v2678, %v2679
      %v2681 = vsel %vm2382, %v2595, 0.0
      %v2682 = vadd.f32 %v2680, %v2681
      %v2683 = vsel %vm2382, %v2596, 0.0
      %v2684 = vadd.f32 %v2682, %v2683
      %v2685 = vsel %vm2382, %v2597, 0.0
      %v2686 = vadd.f32 %v2684, %v2685
      %v2687 = vsel %vm2382, %v2598, 0.0
      %v2688 = vadd.f32 %v2686, %v2687
      %v2689 = vsel %vm2382, %v2599, 0.0
      %v2690 = vadd.f32 %v2688, %v2689
      %v2691 = vsel %vm2382, %v2600, 0.0
      %v2692 = vadd.f32 %v2690, %v2691
      %v2693 = vsel %vm2382, %v2601, 0.0
      %v2694 = vadd.f32 %v2692, %v2693
      %v2695 = vsel %vm2382, %v2602, 0.0
      %v2696 = vadd.f32 %v2694, %v2695
      %v2697 = vsel %vm2382, %v2603, 0.0
      %v2698 = vadd.f32 %v2696, %v2697
      %v2699 = vsel %vm2382, %v2604, 0.0
      %v2700 = vadd.f32 %v2698, %v2699
      %v2701 = vsel %vm2382, %v2605, 0.0
      %v2702 = vadd.f32 %v2700, %v2701
      %v2703 = vsel %vm2382, %v2606, 0.0
      %v2704 = vadd.f32 %v2702, %v2703
      %v2705 = vsel %vm2382, %v2607, 0.0
      %v2706 = vadd.f32 %v2704, %v2705
      %v2707 = vsel %vm2382, %v2608, 0.0
      %v2708 = vadd.f32 %v2706, %v2707
      %v2709 = vsel %vm2382, %v2609, 0.0
      %v2710 = vadd.f32 %v2708, %v2709
      %v2711 = vsel %vm2382, %v2610, 0.0
      %v2712 = vadd.f32 %v2710, %v2711
      %v2713 = vsel %vm2382, %v2611, 0.0
      %v2714 = vadd.f32 %v2712, %v2713
      %v2715 = vsel %vm2382, %v2612, 0.0
      %v2716 = vadd.f32 %v2714, %v2715
      %v2717 = vsel %vm2382, %v2613, 0.0
      %v2718 = vadd.f32 %v2716, %v2717
      %v2719 = vsel %vm2382, %v2614, 0.0
      %v2720 = vadd.f32 %v2718, %v2719
      %v2721 = vsel %vm2382, %v2615, 0.0
      %v2722 = vadd.f32 %v2720, %v2721
      %v2723 = vsel %vm2382, %v2616, 0.0
      %v2724 = vadd.f32 %v2722, %v2723
      %v2725 = vsel %vm2382, %v2617, 0.0
      %v2726 = vadd.f32 %v2724, %v2725
      %v2727 = vsel %vm2382, %v2618, 0.0
      %v2728 = vadd.f32 %v2726, %v2727
      %v2729 = vsel %vm2382, %v2619, 0.0
      %v2730 = vadd.f32 %v2728, %v2729
      %v2731 = vsel %vm2382, %v2620, 0.0
      %v2732 = vadd.f32 %v2730, %v2731
      %v2733 = vsel %vm2382, %v2621, 0.0
      %v2734 = vadd.f32 %v2732, %v2733
      %v2735 = vsel %vm2382, %v2622, 0.0
      %v2736 = vadd.f32 %v2734, %v2735
      %v2737 = vsel %vm2382, %v2623, 0.0
      %v2738 = vadd.f32 %v2736, %v2737
      %v2739 = vsel %vm2382, %v2624, 0.0
      %v2740 = vadd.f32 %v2738, %v2739
      %v2741 = vsel %vm2382, %v2625, 0.0
      %v2742 = vadd.f32 %v2740, %v2741
      %v2743 = vsel %vm2382, %v2626, 0.0
      %v2744 = vadd.f32 %v2742, %v2743
      %v2745 = vsel %vm2382, %v2627, 0.0
      %v2746 = vadd.f32 %v2744, %v2745
      %v2747 = vsel %vm2382, %v2628, 0.0
      %v2748 = vadd.f32 %v2746, %v2747
      %v2749 = vsel %vm2382, %v2629, 0.0
      %v2750 = vadd.f32 %v2748, %v2749
      %v2751 = vsel %vm2382, %v2630, 0.0
      %v2752 = vadd.f32 %v2750, %v2751
      %v2753 = vsel %vm2382, %v2631, 0.0
      %v2754 = vadd.f32 %v2752, %v2753
      %v2755 = vsel %vm2382, %v2632, 0.0
      %v2756 = vadd.f32 %v2754, %v2755
      %v2757 = vsel %vm2382, %v2633, 0.0
      %v2758 = vadd.f32 %v2756, %v2757
      %v2759 = vsel %vm2382, %v2634, 0.0
      %v2760 = vadd.f32 %v2758, %v2759
      %v2761 = vsel %vm2382, %v2635, 0.0
      %v2762 = vadd.f32 %v2760, %v2761
      %v2763 = vrot.slane %v2762, 4
      %v2764 = vadd.f32 %v2762, %v2763
      %v2765 = vrot.slane %v2764, 2
      %v2766 = vadd.f32 %v2764, %v2765
      %v2767 = vrot.slane %v2766, 1
      %v2768 = vadd.f32 %v2766, %v2767
      %v2769 = vrcp.pop 512.0
      %v2770 = vmul.f32 512.0, %v2769
      %v2771 = vsub.f32 1.0, %v2770
      %v2772 = vmul.f32 %v2769, %v2771
      %v2773 = vadd.f32 %v2769, %v2772
      %vm2774 = vweird.f32 %v2769
      %v2775 = vsel %vm2774, %v2769, %v2773
      %v2776 = vmul.f32 %v2768, %v2775
      %v2777 = vsub.f32 %v2572, %v2776
      %v2778 = vsub.f32 %v2573, %v2776
      %v2779 = vsub.f32 %v2574, %v2776
      %v2780 = vsub.f32 %v2575, %v2776
      %v2781 = vsub.f32 %v2576, %v2776
      %v2782 = vsub.f32 %v2577, %v2776
      %v2783 = vsub.f32 %v2578, %v2776
      %v2784 = vsub.f32 %v2579, %v2776
      %v2785 = vsub.f32 %v2580, %v2776
      %v2786 = vsub.f32 %v2581, %v2776
      %v2787 = vsub.f32 %v2582, %v2776
      %v2788 = vsub.f32 %v2583, %v2776
      %v2789 = vsub.f32 %v2584, %v2776
      %v2790 = vsub.f32 %v2585, %v2776
      %v2791 = vsub.f32 %v2586, %v2776
      %v2792 = vsub.f32 %v2587, %v2776
      %v2793 = vsub.f32 %v2588, %v2776
      %v2794 = vsub.f32 %v2589, %v2776
      %v2795 = vsub.f32 %v2590, %v2776
      %v2796 = vsub.f32 %v2591, %v2776
      %v2797 = vsub.f32 %v2592, %v2776
      %v2798 = vsub.f32 %v2593, %v2776
      %v2799 = vsub.f32 %v2594, %v2776
      %v2800 = vsub.f32 %v2595, %v2776
      %v2801 = vsub.f32 %v2596, %v2776
      %v2802 = vsub.f32 %v2597, %v2776
      %v2803 = vsub.f32 %v2598, %v2776
      %v2804 = vsub.f32 %v2599, %v2776
      %v2805 = vsub.f32 %v2600, %v2776
      %v2806 = vsub.f32 %v2601, %v2776
      %v2807 = vsub.f32 %v2602, %v2776
      %v2808 = vsub.f32 %v2603, %v2776
      %v2809 = vsub.f32 %v2604, %v2776
      %v2810 = vsub.f32 %v2605, %v2776
      %v2811 = vsub.f32 %v2606, %v2776
      %v2812 = vsub.f32 %v2607, %v2776
      %v2813 = vsub.f32 %v2608, %v2776
      %v2814 = vsub.f32 %v2609, %v2776
      %v2815 = vsub.f32 %v2610, %v2776
      %v2816 = vsub.f32 %v2611, %v2776
      %v2817 = vsub.f32 %v2612, %v2776
      %v2818 = vsub.f32 %v2613, %v2776
      %v2819 = vsub.f32 %v2614, %v2776
      %v2820 = vsub.f32 %v2615, %v2776
      %v2821 = vsub.f32 %v2616, %v2776
      %v2822 = vsub.f32 %v2617, %v2776
      %v2823 = vsub.f32 %v2618, %v2776
      %v2824 = vsub.f32 %v2619, %v2776
      %v2825 = vsub.f32 %v2620, %v2776
      %v2826 = vsub.f32 %v2621, %v2776
      %v2827 = vsub.f32 %v2622, %v2776
      %v2828 = vsub.f32 %v2623, %v2776
      %v2829 = vsub.f32 %v2624, %v2776
      %v2830 = vsub.f32 %v2625, %v2776
      %v2831 = vsub.f32 %v2626, %v2776
      %v2832 = vsub.f32 %v2627, %v2776
      %v2833 = vsub.f32 %v2628, %v2776
      %v2834 = vsub.f32 %v2629, %v2776
      %v2835 = vsub.f32 %v2630, %v2776
      %v2836 = vsub.f32 %v2631, %v2776
      %v2837 = vsub.f32 %v2632, %v2776
      %v2838 = vsub.f32 %v2633, %v2776
      %v2839 = vsub.f32 %v2634, %v2776
      %v2840 = vsub.f32 %v2635, %v2776
      %v2841 = vmul.f32 %v2777, %v2777
      %v2842 = vmul.f32 %v2778, %v2778
      %v2843 = vmul.f32 %v2779, %v2779
      %v2844 = vmul.f32 %v2780, %v2780
      %v2845 = vmul.f32 %v2781, %v2781
      %v2846 = vmul.f32 %v2782, %v2782
      %v2847 = vmul.f32 %v2783, %v2783
      %v2848 = vmul.f32 %v2784, %v2784
      %v2849 = vmul.f32 %v2785, %v2785
      %v2850 = vmul.f32 %v2786, %v2786
      %v2851 = vmul.f32 %v2787, %v2787
      %v2852 = vmul.f32 %v2788, %v2788
      %v2853 = vmul.f32 %v2789, %v2789
      %v2854 = vmul.f32 %v2790, %v2790
      %v2855 = vmul.f32 %v2791, %v2791
      %v2856 = vmul.f32 %v2792, %v2792
      %v2857 = vmul.f32 %v2793, %v2793
      %v2858 = vmul.f32 %v2794, %v2794
      %v2859 = vmul.f32 %v2795, %v2795
      %v2860 = vmul.f32 %v2796, %v2796
      %v2861 = vmul.f32 %v2797, %v2797
      %v2862 = vmul.f32 %v2798, %v2798
      %v2863 = vmul.f32 %v2799, %v2799
      %v2864 = vmul.f32 %v2800, %v2800
      %v2865 = vmul.f32 %v2801, %v2801
      %v2866 = vmul.f32 %v2802, %v2802
      %v2867 = vmul.f32 %v2803, %v2803
      %v2868 = vmul.f32 %v2804, %v2804
      %v2869 = vmul.f32 %v2805, %v2805
      %v2870 = vmul.f32 %v2806, %v2806
      %v2871 = vmul.f32 %v2807, %v2807
      %v2872 = vmul.f32 %v2808, %v2808
      %v2873 = vmul.f32 %v2809, %v2809
      %v2874 = vmul.f32 %v2810, %v2810
      %v2875 = vmul.f32 %v2811, %v2811
      %v2876 = vmul.f32 %v2812, %v2812
      %v2877 = vmul.f32 %v2813, %v2813
      %v2878 = vmul.f32 %v2814, %v2814
      %v2879 = vmul.f32 %v2815, %v2815
      %v2880 = vmul.f32 %v2816, %v2816
      %v2881 = vmul.f32 %v2817, %v2817
      %v2882 = vmul.f32 %v2818, %v2818
      %v2883 = vmul.f32 %v2819, %v2819
      %v2884 = vmul.f32 %v2820, %v2820
      %v2885 = vmul.f32 %v2821, %v2821
      %v2886 = vmul.f32 %v2822, %v2822
      %v2887 = vmul.f32 %v2823, %v2823
      %v2888 = vmul.f32 %v2824, %v2824
      %v2889 = vmul.f32 %v2825, %v2825
      %v2890 = vmul.f32 %v2826, %v2826
      %v2891 = vmul.f32 %v2827, %v2827
      %v2892 = vmul.f32 %v2828, %v2828
      %v2893 = vmul.f32 %v2829, %v2829
      %v2894 = vmul.f32 %v2830, %v2830
      %v2895 = vmul.f32 %v2831, %v2831
      %v2896 = vmul.f32 %v2832, %v2832
      %v2897 = vmul.f32 %v2833, %v2833
      %v2898 = vmul.f32 %v2834, %v2834
      %v2899 = vmul.f32 %v2835, %v2835
      %v2900 = vmul.f32 %v2836, %v2836
      %v2901 = vmul.f32 %v2837, %v2837
      %v2902 = vmul.f32 %v2838, %v2838
      %v2903 = vmul.f32 %v2839, %v2839
      %v2904 = vmul.f32 %v2840, %v2840
      %v2905 = vsel %vm2382, %v2841, 0.0
      %v2906 = vsel %vm2382, %v2842, 0.0
      %v2907 = vadd.f32 %v2905, %v2906
      %v2908 = vsel %vm2382, %v2843, 0.0
      %v2909 = vadd.f32 %v2907, %v2908
      %v2910 = vsel %vm2382, %v2844, 0.0
      %v2911 = vadd.f32 %v2909, %v2910
      %v2912 = vsel %vm2382, %v2845, 0.0
      %v2913 = vadd.f32 %v2911, %v2912
      %v2914 = vsel %vm2382, %v2846, 0.0
      %v2915 = vadd.f32 %v2913, %v2914
      %v2916 = vsel %vm2382, %v2847, 0.0
      %v2917 = vadd.f32 %v2915, %v2916
      %v2918 = vsel %vm2382, %v2848, 0.0
      %v2919 = vadd.f32 %v2917, %v2918
      %v2920 = vsel %vm2382, %v2849, 0.0
      %v2921 = vadd.f32 %v2919, %v2920
      %v2922 = vsel %vm2382, %v2850, 0.0
      %v2923 = vadd.f32 %v2921, %v2922
      %v2924 = vsel %vm2382, %v2851, 0.0
      %v2925 = vadd.f32 %v2923, %v2924
      %v2926 = vsel %vm2382, %v2852, 0.0
      %v2927 = vadd.f32 %v2925, %v2926
      %v2928 = vsel %vm2382, %v2853, 0.0
      %v2929 = vadd.f32 %v2927, %v2928
      %v2930 = vsel %vm2382, %v2854, 0.0
      %v2931 = vadd.f32 %v2929, %v2930
      %v2932 = vsel %vm2382, %v2855, 0.0
      %v2933 = vadd.f32 %v2931, %v2932
      %v2934 = vsel %vm2382, %v2856, 0.0
      %v2935 = vadd.f32 %v2933, %v2934
      %v2936 = vsel %vm2382, %v2857, 0.0
      %v2937 = vadd.f32 %v2935, %v2936
      %v2938 = vsel %vm2382, %v2858, 0.0
      %v2939 = vadd.f32 %v2937, %v2938
      %v2940 = vsel %vm2382, %v2859, 0.0
      %v2941 = vadd.f32 %v2939, %v2940
      %v2942 = vsel %vm2382, %v2860, 0.0
      %v2943 = vadd.f32 %v2941, %v2942
      %v2944 = vsel %vm2382, %v2861, 0.0
      %v2945 = vadd.f32 %v2943, %v2944
      %v2946 = vsel %vm2382, %v2862, 0.0
      %v2947 = vadd.f32 %v2945, %v2946
      %v2948 = vsel %vm2382, %v2863, 0.0
      %v2949 = vadd.f32 %v2947, %v2948
      %v2950 = vsel %vm2382, %v2864, 0.0
      %v2951 = vadd.f32 %v2949, %v2950
      %v2952 = vsel %vm2382, %v2865, 0.0
      %v2953 = vadd.f32 %v2951, %v2952
      %v2954 = vsel %vm2382, %v2866, 0.0
      %v2955 = vadd.f32 %v2953, %v2954
      %v2956 = vsel %vm2382, %v2867, 0.0
      %v2957 = vadd.f32 %v2955, %v2956
      %v2958 = vsel %vm2382, %v2868, 0.0
      %v2959 = vadd.f32 %v2957, %v2958
      %v2960 = vsel %vm2382, %v2869, 0.0
      %v2961 = vadd.f32 %v2959, %v2960
      %v2962 = vsel %vm2382, %v2870, 0.0
      %v2963 = vadd.f32 %v2961, %v2962
      %v2964 = vsel %vm2382, %v2871, 0.0
      %v2965 = vadd.f32 %v2963, %v2964
      %v2966 = vsel %vm2382, %v2872, 0.0
      %v2967 = vadd.f32 %v2965, %v2966
      %v2968 = vsel %vm2382, %v2873, 0.0
      %v2969 = vadd.f32 %v2967, %v2968
      %v2970 = vsel %vm2382, %v2874, 0.0
      %v2971 = vadd.f32 %v2969, %v2970
      %v2972 = vsel %vm2382, %v2875, 0.0
      %v2973 = vadd.f32 %v2971, %v2972
      %v2974 = vsel %vm2382, %v2876, 0.0
      %v2975 = vadd.f32 %v2973, %v2974
      %v2976 = vsel %vm2382, %v2877, 0.0
      %v2977 = vadd.f32 %v2975, %v2976
      %v2978 = vsel %vm2382, %v2878, 0.0
      %v2979 = vadd.f32 %v2977, %v2978
      %v2980 = vsel %vm2382, %v2879, 0.0
      %v2981 = vadd.f32 %v2979, %v2980
      %v2982 = vsel %vm2382, %v2880, 0.0
      %v2983 = vadd.f32 %v2981, %v2982
      %v2984 = vsel %vm2382, %v2881, 0.0
      %v2985 = vadd.f32 %v2983, %v2984
      %v2986 = vsel %vm2382, %v2882, 0.0
      %v2987 = vadd.f32 %v2985, %v2986
      %v2988 = vsel %vm2382, %v2883, 0.0
      %v2989 = vadd.f32 %v2987, %v2988
      %v2990 = vsel %vm2382, %v2884, 0.0
      %v2991 = vadd.f32 %v2989, %v2990
      %v2992 = vsel %vm2382, %v2885, 0.0
      %v2993 = vadd.f32 %v2991, %v2992
      %v2994 = vsel %vm2382, %v2886, 0.0
      %v2995 = vadd.f32 %v2993, %v2994
      %v2996 = vsel %vm2382, %v2887, 0.0
      %v2997 = vadd.f32 %v2995, %v2996
      %v2998 = vsel %vm2382, %v2888, 0.0
      %v2999 = vadd.f32 %v2997, %v2998
      %v3000 = vsel %vm2382, %v2889, 0.0
      %v3001 = vadd.f32 %v2999, %v3000
      %v3002 = vsel %vm2382, %v2890, 0.0
      %v3003 = vadd.f32 %v3001, %v3002
      %v3004 = vsel %vm2382, %v2891, 0.0
      %v3005 = vadd.f32 %v3003, %v3004
      %v3006 = vsel %vm2382, %v2892, 0.0
      %v3007 = vadd.f32 %v3005, %v3006
      %v3008 = vsel %vm2382, %v2893, 0.0
      %v3009 = vadd.f32 %v3007, %v3008
      %v3010 = vsel %vm2382, %v2894, 0.0
      %v3011 = vadd.f32 %v3009, %v3010
      %v3012 = vsel %vm2382, %v2895, 0.0
      %v3013 = vadd.f32 %v3011, %v3012
      %v3014 = vsel %vm2382, %v2896, 0.0
      %v3015 = vadd.f32 %v3013, %v3014
      %v3016 = vsel %vm2382, %v2897, 0.0
      %v3017 = vadd.f32 %v3015, %v3016
      %v3018 = vsel %vm2382, %v2898, 0.0
      %v3019 = vadd.f32 %v3017, %v3018
      %v3020 = vsel %vm2382, %v2899, 0.0
      %v3021 = vadd.f32 %v3019, %v3020
      %v3022 = vsel %vm2382, %v2900, 0.0
      %v3023 = vadd.f32 %v3021, %v3022
      %v3024 = vsel %vm2382, %v2901, 0.0
      %v3025 = vadd.f32 %v3023, %v3024
      %v3026 = vsel %vm2382, %v2902, 0.0
      %v3027 = vadd.f32 %v3025, %v3026
      %v3028 = vsel %vm2382, %v2903, 0.0
      %v3029 = vadd.f32 %v3027, %v3028
      %v3030 = vsel %vm2382, %v2904, 0.0
      %v3031 = vadd.f32 %v3029, %v3030
      %v3032 = vrot.slane %v3031, 4
      %v3033 = vadd.f32 %v3031, %v3032
      %v3034 = vrot.slane %v3033, 2
      %v3035 = vadd.f32 %v3033, %v3034
      %v3036 = vrot.slane %v3035, 1
      %v3037 = vadd.f32 %v3035, %v3036
      %v3038 = vmul.f32 %v3037, %v2775
      %v3039 = vadd.f32 %v3038, 1e-05
      %v3040 = vrsqrt.pop %v3039
      %v3041 = vmul.f32 %v3040, %v3039
      %v3042 = vmul.f32 %v3041, %v3040
      %v3043 = vmul.f32 0.5, %v3042
      %v3044 = vsub.f32 1.5, %v3043
      %v3045 = vmul.f32 %v3040, %v3044
      %vm3046 = vweird.f32 %v3039
      %vm3047 = vweird.f32 %v3040
      %vm3048 = vmor %vm3046, %vm3047
      %v3049 = vsel %vm3048, %v3040, %v3045
      %v3050 = vmul.f32 %v2777, %v3049
      %v3051 = vmul.f32 %v2778, %v3049
      %v3052 = vmul.f32 %v2779, %v3049
      %v3053 = vmul.f32 %v2780, %v3049
      %v3054 = vmul.f32 %v2781, %v3049
      %v3055 = vmul.f32 %v2782, %v3049
      %v3056 = vmul.f32 %v2783, %v3049
      %v3057 = vmul.f32 %v2784, %v3049
      %v3058 = vmul.f32 %v2785, %v3049
      %v3059 = vmul.f32 %v2786, %v3049
      %v3060 = vmul.f32 %v2787, %v3049
      %v3061 = vmul.f32 %v2788, %v3049
      %v3062 = vmul.f32 %v2789, %v3049
      %v3063 = vmul.f32 %v2790, %v3049
      %v3064 = vmul.f32 %v2791, %v3049
      %v3065 = vmul.f32 %v2792, %v3049
      %v3066 = vmul.f32 %v2793, %v3049
      %v3067 = vmul.f32 %v2794, %v3049
      %v3068 = vmul.f32 %v2795, %v3049
      %v3069 = vmul.f32 %v2796, %v3049
      %v3070 = vmul.f32 %v2797, %v3049
      %v3071 = vmul.f32 %v2798, %v3049
      %v3072 = vmul.f32 %v2799, %v3049
      %v3073 = vmul.f32 %v2800, %v3049
      %v3074 = vmul.f32 %v2801, %v3049
      %v3075 = vmul.f32 %v2802, %v3049
      %v3076 = vmul.f32 %v2803, %v3049
      %v3077 = vmul.f32 %v2804, %v3049
      %v3078 = vmul.f32 %v2805, %v3049
      %v3079 = vmul.f32 %v2806, %v3049
      %v3080 = vmul.f32 %v2807, %v3049
      %v3081 = vmul.f32 %v2808, %v3049
      %v3082 = vmul.f32 %v2809, %v3049
      %v3083 = vmul.f32 %v2810, %v3049
      %v3084 = vmul.f32 %v2811, %v3049
      %v3085 = vmul.f32 %v2812, %v3049
      %v3086 = vmul.f32 %v2813, %v3049
      %v3087 = vmul.f32 %v2814, %v3049
      %v3088 = vmul.f32 %v2815, %v3049
      %v3089 = vmul.f32 %v2816, %v3049
      %v3090 = vmul.f32 %v2817, %v3049
      %v3091 = vmul.f32 %v2818, %v3049
      %v3092 = vmul.f32 %v2819, %v3049
      %v3093 = vmul.f32 %v2820, %v3049
      %v3094 = vmul.f32 %v2821, %v3049
      %v3095 = vmul.f32 %v2822, %v3049
      %v3096 = vmul.f32 %v2823, %v3049
      %v3097 = vmul.f32 %v2824, %v3049
      %v3098 = vmul.f32 %v2825, %v3049
      %v3099 = vmul.f32 %v2826, %v3049
      %v3100 = vmul.f32 %v2827, %v3049
      %v3101 = vmul.f32 %v2828, %v3049
      %v3102 = vmul.f32 %v2829, %v3049
      %v3103 = vmul.f32 %v2830, %v3049
      %v3104 = vmul.f32 %v2831, %v3049
      %v3105 = vmul.f32 %v2832, %v3049
      %v3106 = vmul.f32 %v2833, %v3049
      %v3107 = vmul.f32 %v2834, %v3049
      %v3108 = vmul.f32 %v2835, %v3049
      %v3109 = vmul.f32 %v2836, %v3049
      %v3110 = vmul.f32 %v2837, %v3049
      %v3111 = vmul.f32 %v2838, %v3049
      %v3112 = vmul.f32 %v2839, %v3049
      %v3113 = vmul.f32 %v2840, %v3049
      %v3114 = vmax.f32 %v3050, 0.0
      %v3115 = vmax.f32 %v3051, 0.0
      %v3116 = vmax.f32 %v3052, 0.0
      %v3117 = vmax.f32 %v3053, 0.0
      %v3118 = vmax.f32 %v3054, 0.0
      %v3119 = vmax.f32 %v3055, 0.0
      %v3120 = vmax.f32 %v3056, 0.0
      %v3121 = vmax.f32 %v3057, 0.0
      %v3122 = vmax.f32 %v3058, 0.0
      %v3123 = vmax.f32 %v3059, 0.0
      %v3124 = vmax.f32 %v3060, 0.0
      %v3125 = vmax.f32 %v3061, 0.0
      %v3126 = vmax.f32 %v3062, 0.0
      %v3127 = vmax.f32 %v3063, 0.0
      %v3128 = vmax.f32 %v3064, 0.0
      %v3129 = vmax.f32 %v3065, 0.0
      %v3130 = vmax.f32 %v3066, 0.0
      %v3131 = vmax.f32 %v3067, 0.0
      %v3132 = vmax.f32 %v3068, 0.0
      %v3133 = vmax.f32 %v3069, 0.0
      %v3134 = vmax.f32 %v3070, 0.0
      %v3135 = vmax.f32 %v3071, 0.0
      %v3136 = vmax.f32 %v3072, 0.0
      %v3137 = vmax.f32 %v3073, 0.0
      %v3138 = vmax.f32 %v3074, 0.0
      %v3139 = vmax.f32 %v3075, 0.0
      %v3140 = vmax.f32 %v3076, 0.0
      %v3141 = vmax.f32 %v3077, 0.0
      %v3142 = vmax.f32 %v3078, 0.0
      %v3143 = vmax.f32 %v3079, 0.0
      %v3144 = vmax.f32 %v3080, 0.0
      %v3145 = vmax.f32 %v3081, 0.0
      %v3146 = vmax.f32 %v3082, 0.0
      %v3147 = vmax.f32 %v3083, 0.0
      %v3148 = vmax.f32 %v3084, 0.0
      %v3149 = vmax.f32 %v3085, 0.0
      %v3150 = vmax.f32 %v3086, 0.0
      %v3151 = vmax.f32 %v3087, 0.0
      %v3152 = vmax.f32 %v3088, 0.0
      %v3153 = vmax.f32 %v3089, 0.0
      %v3154 = vmax.f32 %v3090, 0.0
      %v3155 = vmax.f32 %v3091, 0.0
      %v3156 = vmax.f32 %v3092, 0.0
      %v3157 = vmax.f32 %v3093, 0.0
      %v3158 = vmax.f32 %v3094, 0.0
      %v3159 = vmax.f32 %v3095, 0.0
      %v3160 = vmax.f32 %v3096, 0.0
      %v3161 = vmax.f32 %v3097, 0.0
      %v3162 = vmax.f32 %v3098, 0.0
      %v3163 = vmax.f32 %v3099, 0.0
      %v3164 = vmax.f32 %v3100, 0.0
      %v3165 = vmax.f32 %v3101, 0.0
      %v3166 = vmax.f32 %v3102, 0.0
      %v3167 = vmax.f32 %v3103, 0.0
      %v3168 = vmax.f32 %v3104, 0.0
      %v3169 = vmax.f32 %v3105, 0.0
      %v3170 = vmax.f32 %v3106, 0.0
      %v3171 = vmax.f32 %v3107, 0.0
      %v3172 = vmax.f32 %v3108, 0.0
      %v3173 = vmax.f32 %v3109, 0.0
      %v3174 = vmax.f32 %v3110, 0.0
      %v3175 = vmax.f32 %v3111, 0.0
      %v3176 = vmax.f32 %v3112, 0.0
      %v3177 = vmax.f32 %v3113, 0.0
      %3178 = vst.msk [vmem:[%s4] sm:$0xff] %vm2382, %v3114
      %3179 = vst.msk [vmem:[%s4 + $0x8] sm:$0xff] %vm2382, %v3115
      %3180 = vst.msk [vmem:[%s4 + $0x10] sm:$0xff] %vm2382, %v3116
      %3181 = vst.msk [vmem:[%s4 + $0x18] sm:$0xff] %vm2382, %v3117
      %3182 = vst.msk [vmem:[%s4 + $0x20] sm:$0xff] %vm2382, %v3118
      %3183 = vst.msk [vmem:[%s4 + $0x28] sm:$0xff] %vm2382, %v3119
      %3184 = vst.msk [vmem:[%s4 + $0x30] sm:$0xff] %vm2382, %v3120
      %3185 = vst.msk [vmem:[%s4 + $0x38] sm:$0xff] %vm2382, %v3121
      %3186 = vst.msk [vmem:[%s4 + $0x40] sm:$0xff] %vm2382, %v3122
      %3187 = vst.msk [vmem:[%s4 + $0x48] sm:$0xff] %vm2382, %v3123
      %3188 = vst.msk [vmem:[%s4 + $0x50] sm:$0xff] %vm2382, %v3124
      %3189 = vst.msk [vmem:[%s4 + $0x58] sm:$0xff] %vm2382, %v3125
      %3190 = vst.msk [vmem:[%s4 + $0x60] sm:$0xff] %vm2382, %v3126
      %3191 = vst.msk [vmem:[%s4 + $0x68] sm:$0xff] %vm2382, %v3127
      %3192 = vst.msk [vmem:[%s4 + $0x70] sm:$0xff] %vm2382, %v3128
      %3193 = vst.msk [vmem:[%s4 + $0x78] sm:$0xff] %vm2382, %v3129
      %3194 = vst.msk [vmem:[%s4 + $0x80] sm:$0xff] %vm2382, %v3130
      %3195 = vst.msk [vmem:[%s4 + $0x88] sm:$0xff] %vm2382, %v3131
      %3196 = vst.msk [vmem:[%s4 + $0x90] sm:$0xff] %vm2382, %v3132
      %3197 = vst.msk [vmem:[%s4 + $0x98] sm:$0xff] %vm2382, %v3133
      %3198 = vst.msk [vmem:[%s4 + $0xa0] sm:$0xff] %vm2382, %v3134
      %3199 = vst.msk [vmem:[%s4 + $0xa8] sm:$0xff] %vm2382, %v3135
      %3200 = vst.msk [vmem:[%s4 + $0xb0] sm:$0xff] %vm2382, %v3136
      %3201 = vst.msk [vmem:[%s4 + $0xb8] sm:$0xff] %vm2382, %v3137
      %3202 = vst.msk [vmem:[%s4 + $0xc0] sm:$0xff] %vm2382, %v3138
      %3203 = vst.msk [vmem:[%s4 + $0xc8] sm:$0xff] %vm2382, %v3139
      %3204 = vst.msk [vmem:[%s4 + $0xd0] sm:$0xff] %vm2382, %v3140
      %3205 = vst.msk [vmem:[%s4 + $0xd8] sm:$0xff] %vm2382, %v3141
      %3206 = vst.msk [vmem:[%s4 + $0xe0] sm:$0xff] %vm2382, %v3142
      %3207 = vst.msk [vmem:[%s4 + $0xe8] sm:$0xff] %vm2382, %v3143
      %3208 = vst.msk [vmem:[%s4 + $0xf0] sm:$0xff] %vm2382, %v3144
      %3209 = vst.msk [vmem:[%s4 + $0xf8] sm:$0xff] %vm2382, %v3145
      %3210 = vst.msk [vmem:[%s4 + $0x100] sm:$0xff] %vm2382, %v3146
      %3211 = vst.msk [vmem:[%s4 + $0x108] sm:$0xff] %vm2382, %v3147
      %3212 = vst.msk [vmem:[%s4 + $0x110] sm:$0xff] %vm2382, %v3148
      %3213 = vst.msk [vmem:[%s4 + $0x118] sm:$0xff] %vm2382, %v3149
      %3214 = vst.msk [vmem:[%s4 + $0x120] sm:$0xff] %vm2382, %v3150
      %3215 = vst.msk [vmem:[%s4 + $0x128] sm:$0xff] %vm2382, %v3151
      %3216 = vst.msk [vmem:[%s4 + $0x130] sm:$0xff] %vm2382, %v3152
      %3217 = vst.msk [vmem:[%s4 + $0x138] sm:$0xff] %vm2382, %v3153
      %3218 = vst.msk [vmem:[%s4 + $0x140] sm:$0xff] %vm2382, %v3154
      %3219 = vst.msk [vmem:[%s4 + $0x148] sm:$0xff] %vm2382, %v3155
      %3220 = vst.msk [vmem:[%s4 + $0x150] sm:$0xff] %vm2382, %v3156
      %3221 = vst.msk [vmem:[%s4 + $0x158] sm:$0xff] %vm2382, %v3157
      %3222 = vst.msk [vmem:[%s4 + $0x160] sm:$0xff] %vm2382, %v3158
      %3223 = vst.msk [vmem:[%s4 + $0x168] sm:$0xff] %vm2382, %v3159
      %3224 = vst.msk [vmem:[%s4 + $0x170] sm:$0xff] %vm2382, %v3160
      %3225 = vst.msk [vmem:[%s4 + $0x178] sm:$0xff] %vm2382, %v3161
      %3226 = vst.msk [vmem:[%s4 + $0x180] sm:$0xff] %vm2382, %v3162
      %3227 = vst.msk [vmem:[%s4 + $0x188] sm:$0xff] %vm2382, %v3163
      %3228 = vst.msk [vmem:[%s4 + $0x190] sm:$0xff] %vm2382, %v3164
      %3229 = vst.msk [vmem:[%s4 + $0x198] sm:$0xff] %vm2382, %v3165
      %3230 = vst.msk [vmem:[%s4 + $0x1a0] sm:$0xff] %vm2382, %v3166
      %3231 = vst.msk [vmem:[%s4 + $0x1a8] sm:$0xff] %vm2382, %v3167
      %3232 = vst.msk [vmem:[%s4 + $0x1b0] sm:$0xff] %vm2382, %v3168
      %3233 = vst.msk [vmem:[%s4 + $0x1b8] sm:$0xff] %vm2382, %v3169
      %3234 = vst.msk [vmem:[%s4 + $0x1c0] sm:$0xff] %vm2382, %v3170
      %3235 = vst.msk [vmem:[%s4 + $0x1c8] sm:$0xff] %vm2382, %v3171
      %3236 = vst.msk [vmem:[%s4 + $0x1d0] sm:$0xff] %vm2382, %v3172
      %3237 = vst.msk [vmem:[%s4 + $0x1d8] sm:$0xff] %vm2382, %v3173
      %3238 = vst.msk [vmem:[%s4 + $0x1e0] sm:$0xff] %vm2382, %v3174
      %3239 = vst.msk [vmem:[%s4 + $0x1e8] sm:$0xff] %vm2382, %v3175
      %3240 = vst.msk [vmem:[%s4 + $0x1f0] sm:$0xff] %vm2382, %v3176
      %3241 = vst.msk [vmem:[%s4 + $0x1f8] sm:$0xff] %vm2382, %v3177
    $region37: #{tpu_custom_call.1} parent=1 // pred_fallthru
      _
    // Predicated region
    $region38: #{tpu_custom_call.1} parent=1 // pred_check
      _
    $region39: #{tpu_custom_call.1} parent=1 // pred_check_branch
      %3243 = sbr.rel (0) target = $region41
    $region40: #{tpu_custom_call.1} parent=1 // pred_region
      _
    $region41: #{tpu_custom_call.1} parent=1 // pred_fallthru
      _
    // Predicated region
    $region42: #{tpu_custom_call.1} parent=1 // pred_check
      _
    $region43: #{tpu_custom_call.1} parent=1 // pred_check_branch
      %3245 = sbr.rel (0) target = $region45
    $region44: #{tpu_custom_call.1} parent=1 // pred_region
      _
    $region45: #{tpu_custom_call.1} parent=1 // pred_fallthru
      _
    // Predicated region
    $region46: #{tpu_custom_call.1} parent=1 // pred_check
      _
    $region47: #{tpu_custom_call.1} parent=1 // pred_check_branch
      %3247 = sbr.rel (0) target = $region49
    $region48: #{tpu_custom_call.1} parent=1 // pred_region
      _
    $region49: #{tpu_custom_call.1} parent=1 // pred_fallthru
      _
    // Predicated region
    $region50: #{tpu_custom_call.1} parent=1 // pred_check
      _
    $region51: #{tpu_custom_call.1} parent=1 // pred_check_branch
      %3249 = sbr.rel (0) target = $region53
    $region52: #{tpu_custom_call.1} parent=1 // pred_region
      _
    $region53: #{tpu_custom_call.1} parent=1 // pred_fallthru
      _
    %3250 = vsyncpa [#allocation4], 1
    %3251 = vsyncpa [#allocation6], 1

</llo_original>
